<compile_context>
chip_gen: v5e
topology: v5e:2x2
jax: 0.10.0
libtpu: 0.0.40
codegen_flags: <defaults>
</compile_context>

<pallas_src>
import jax
import jax.numpy as jnp
from jax.experimental import pallas as pl
from jax.experimental.pallas import tpu as pltpu

N_BATCH = 2
C_IN = 36
L_IN = 400

# Derived lengths (architecture pins these).
L1 = L_IN - 3        # 397  conv0a
L2 = L1 - 3          # 394  conv0b
LP = (L2 + 2) // 2   # 198  maxpool(k=2, s=2, p=1)
L3 = LP - 3          # 195  conv1a
L4 = L3 - 3          # 192  conv1b
assert L4 == 192, "VSBNet requires input length 400 (conv1b output must be 192)"


def _fused_kernel(x_ref,
                  w0a_ref, b0a_ref, w0b_ref, b0b_ref,
                  sel_ref,
                  w1a_ref, b1a_ref, w1b_ref, b1b_ref,
                  wf0_ref, bf0_ref, wf1_ref, bf1_ref, wf2_ref, bf2_ref,
                  out_ref,
                  stage_a, stage_b):
    """One batch element per grid step.  Channel-first everywhere."""
    f32 = jnp.float32

    def conv_relu(read_tap, w_ref, b_ref):
        # Direct 4-tap accumulation: y[:, j] = sum_k W_k @ in[:, j+k] + b.
        # Shifted reads feed the MXU directly; no patch buffer, no tap stores.
        y = jnp.dot(w_ref[0], read_tap(0), preferred_element_type=f32)
        for k in range(1, 4):
            y = y + jnp.dot(w_ref[k], read_tap(k), preferred_element_type=f32)
        return jnp.maximum(y + b_ref[...], 0.0)

    # --- conv0a: (36, 400) -> (64, 397) ------------------------------------
    y = conv_relu(lambda k: x_ref[:, k:k + L1], w0a_ref, b0a_ref)
    stage_a[:, 0:L1] = y

    # --- conv0b: (64, 397) -> (64, 394) ------------------------------------
    h = conv_relu(lambda k: stage_a[:, k:k + L2], w0b_ref, b0b_ref)

    # --- MaxPool1d(2, stride 2, padding 1): (64, 394) -> (64, 198) ----------
    # h >= 0 (post-ReLU), so zero padding is exact (no -inf in VMEM).
    #   pooled[0]          = h[0]
    #   pooled[j], j>=1    = max(h[2j-1], h[2j]) = inner[2j-1]
    # where inner[i] = max(h[i], h[i+1]) (with h[394] := 0).
    stage_b[:, 0:L2] = h                               # offset-0, full-width store
    stage_b[:, L2:L2 + 1] = jnp.zeros((64, 1), f32)    # one zero column for the shift
    inner = jnp.maximum(h, stage_b[:, 1:L2 + 1])       # (64, 394)
    pooled = jnp.dot(inner, sel_ref[...], preferred_element_type=f32)  # (64,198), col0=0
    stage_a[:, 0:LP] = pooled
    stage_a[:, 0:1] = h[:, 0:1]                        # fix boundary column 0

    # --- conv1a: (64, 198) -> (20, 195) ------------------------------------
    y = conv_relu(lambda k: stage_a[:, k:k + L3], w1a_ref, b1a_ref)
    stage_b[0:20, 0:L3] = y

    # --- conv1b: (20, 195) -> (20, 192) ------------------------------------
    h4 = conv_relu(lambda k: stage_b[0:20, k:k + L4], w1b_ref, b1b_ref)

    # --- AvgPool1d(192) + fc stack (dropout = identity at eval) -------------
    g = jnp.mean(h4, axis=1, keepdims=True)                               # (20, 1)
    z = jnp.tanh(jnp.dot(wf0_ref[...], g, preferred_element_type=f32) + bf0_ref[...])
    z = jnp.tanh(jnp.dot(wf1_ref[...], z, preferred_element_type=f32) + bf1_ref[...])
    z = jnp.dot(wf2_ref[...], z, preferred_element_type=f32) + bf2_ref[...]   # (1, 1)
    out_ref[0] = z


def vsb_forward(x_ncl, p):
    """x_ncl: (N, 36, 400) in the PyTorch NCL convention.  Returns (N, 1)."""
    n, c, l = x_ncl.shape
    assert c == C_IN and l == L_IN, "VSBNet requires input of shape (N, 36, 400)"
    x = x_ncl.astype(jnp.float32)

    def taps(w):
        # PyTorch Conv1d weight (Cout, Cin, K) -> (K, Cout, Cin) per-tap matrices.
        return jnp.transpose(w, (2, 0, 1))

    def col_vec(b):
        return b.reshape(-1, 1)

    # Host-built even-window selection matrix for the pool:
    #   sel[i, j] = 1  iff  i == 2j - 1   (column 0 is all zeros; fixed in-kernel).
    sel = (jnp.arange(L2, dtype=jnp.int32)[:, None]
           == (2 * jnp.arange(LP, dtype=jnp.int32)[None, :] - 1)).astype(jnp.float32)

    args = (x,
            taps(p['w0a']), col_vec(p['b0a']),
            taps(p['w0b']), col_vec(p['b0b']),
            sel,
            taps(p['w1a']), col_vec(p['b1a']),
            taps(p['w1b']), col_vec(p['b1b']),
            p['wf0'], col_vec(p['bf0']),
            p['wf1'], col_vec(p['bf1']),
            p['wf2'], col_vec(p['bf2']))

    def resident(a):
        nd = a.ndim
        return pl.BlockSpec(a.shape, lambda b, _nd=nd: (0,) * _nd)

    in_specs = ([pl.BlockSpec((None, C_IN, L_IN), lambda b: (b, 0, 0))]
                + [resident(a) for a in args[1:]])

    out = pl.pallas_call(
        _fused_kernel,
        out_shape=jax.ShapeDtypeStruct((n, 1, 1), jnp.float32),
        grid=(n,),
        in_specs=in_specs,
        out_specs=pl.BlockSpec((1, 1, 1), lambda b: (b, 0, 0)),
        scratch_shapes=[pltpu.VMEM((64, L_IN), jnp.float32),   # stage A (ping)
                        pltpu.VMEM((64, L_IN), jnp.float32)],  # stage B (pong)
        compiler_params=pltpu.CompilerParams(
            dimension_semantics=("parallel",)),
    )(*args)
    return out.reshape(n, 1)


def init_params(key):
    """Parameters in PyTorch-native layouts (conv: (Cout,Cin,K), linear: (out,in))."""
    ks = jax.random.split(key, 14)

    def conv_w(k, cout, cin, kk):
        bound = 1.0 / (cin * kk) ** 0.5
        return jax.random.uniform(k, (cout, cin, kk), jnp.float32, -bound, bound)

    def conv_b(k, cout, cin, kk):
        bound = 1.0 / (cin * kk) ** 0.5
        return jax.random.uniform(k, (cout,), jnp.float32, -bound, bound)

    def xavier(k, fout, fin):
        lim = (6.0 / (fin + fout)) ** 0.5
        return jax.random.uniform(k, (fout, fin), jnp.float32, -lim, lim)

    def lin_b(k, fout, fin):
        bound = 1.0 / fin ** 0.5
        return jax.random.uniform(k, (fout,), jnp.float32, -bound, bound)

    return dict(
        w0a=conv_w(ks[0], 64, 36, 4), b0a=conv_b(ks[1], 64, 36, 4),
        w0b=conv_w(ks[2], 64, 64, 4), b0b=conv_b(ks[3], 64, 64, 4),
        w1a=conv_w(ks[4], 20, 64, 4), b1a=conv_b(ks[5], 20, 64, 4),
        w1b=conv_w(ks[6], 20, 20, 4), b1b=conv_b(ks[7], 20, 20, 4),
        wf0=xavier(ks[8], 32, 20), bf0=lin_b(ks[9], 32, 20),
        wf1=xavier(ks[10], 8, 32), bf1=lin_b(ks[11], 8, 32),
        wf2=xavier(ks[12], 1, 8), bf2=lin_b(ks[13], 1, 8),
    )


def ref_forward(x_ncl, p):
    """Pure-JAX reference (same math, no Pallas) for a sanity check."""
    x = x_ncl.astype(jnp.float32)

    def conv(h, w, b):                       # h: (N, Cin, L), w: (Cout, Cin, K)
        kk = w.shape[2]
        lo = h.shape[2] - kk + 1
        acc = jnp.zeros((h.shape[0], w.shape[0], lo), jnp.float32)
        for k in range(kk):
            acc = acc + jnp.einsum('ncl,oc->nol', h[:, :, k:k + lo], w[:, :, k])
        return acc + b[None, :, None]

    h = jax.nn.relu(conv(x, p['w0a'], p['b0a']))
    h = jax.nn.relu(conv(h, p['w0b'], p['b0b']))
    n, c, l = h.shape
    neg = jnp.full((n, c, 1), -jnp.inf, h.dtype)
    hp = jnp.concatenate([neg, h, neg], axis=2)
    h = hp.reshape(n, c, (l + 2) // 2, 2).max(axis=3)
    h = jax.nn.relu(conv(h, p['w1a'], p['b1a']))
    h = jax.nn.relu(conv(h, p['w1b'], p['b1b']))
    g = jnp.mean(h, axis=2)                              # (N, 20)
    z = jnp.tanh(g @ p['wf0'].T + p['bf0'])
    z = jnp.tanh(z @ p['wf1'].T + p['bf1'])
    return z @ p['wf2'].T + p['bf2']                     # (N, 1)


if __name__ == "__main__":
    key = jax.random.PRNGKey(0)
    pkey, xkey = jax.random.split(key)
    params = init_params(pkey)

    # Input in the PyTorch convention: (N, C=36, L=400)
    x = jax.random.normal(xkey, (N_BATCH, C_IN, L_IN), jnp.float32)

    fwd = jax.jit(vsb_forward)
    y = jax.block_until_ready(fwd(x, params))
    assert y.shape == (N_BATCH, 1)

    y_ref = ref_forward(x, params)
    assert jnp.allclose(y, y_ref, atol=2e-4, rtol=2e-4), (y, y_ref)

    print("KERNEL_OK")
</pallas_src>

<mosaic_0001>
module attributes {stable_mosaic.version = 11 : i64} {
  func.func @_fused_kernel(%arg0: i32, %arg1: memref<1x36x400xf32, #tpu.memory_space<vmem>>, %arg2: memref<4x64x36xf32, #tpu.memory_space<vmem>>, %arg3: memref<64x1xf32, #tpu.memory_space<vmem>>, %arg4: memref<4x64x64xf32, #tpu.memory_space<vmem>>, %arg5: memref<64x1xf32, #tpu.memory_space<vmem>>, %arg6: memref<394x198xf32, #tpu.memory_space<vmem>>, %arg7: memref<4x20x64xf32, #tpu.memory_space<vmem>>, %arg8: memref<20x1xf32, #tpu.memory_space<vmem>>, %arg9: memref<4x20x20xf32, #tpu.memory_space<vmem>>, %arg10: memref<20x1xf32, #tpu.memory_space<vmem>>, %arg11: memref<32x20xf32, #tpu.memory_space<vmem>>, %arg12: memref<32x1xf32, #tpu.memory_space<vmem>>, %arg13: memref<8x32xf32, #tpu.memory_space<vmem>>, %arg14: memref<8x1xf32, #tpu.memory_space<vmem>>, %arg15: memref<1x8xf32, #tpu.memory_space<vmem>>, %arg16: memref<1x1xf32, #tpu.memory_space<vmem>>, %arg17: memref<1x1x1xf32, #tpu.memory_space<vmem>>, %arg18: memref<64x400xf32, #tpu.memory_space<vmem>>, %arg19: memref<64x400xf32, #tpu.memory_space<vmem>>) attributes {dimension_semantics = [#tpu.dimension_semantics<parallel>], iteration_bounds = array<i64: 2>, scalar_prefetch = 0 : i64, scratch_operands = 2 : i64, tpu.core_type = #tpu.core_type<tc>, window_params = [{transform_indices = @transform_0, window_bounds = array<i64: 1, 36, 400>}, {pipeline_mode = #tpu.pipeline_mode<synchronous>, transform_indices = @transform_1, window_bounds = array<i64: 4, 64, 36>}, {pipeline_mode = #tpu.pipeline_mode<synchronous>, transform_indices = @transform_2, window_bounds = array<i64: 64, 1>}, {pipeline_mode = #tpu.pipeline_mode<synchronous>, transform_indices = @transform_3, window_bounds = array<i64: 4, 64, 64>}, {pipeline_mode = #tpu.pipeline_mode<synchronous>, transform_indices = @transform_4, window_bounds = array<i64: 64, 1>}, {pipeline_mode = #tpu.pipeline_mode<synchronous>, transform_indices = @transform_5, window_bounds = array<i64: 394, 198>}, {pipeline_mode = #tpu.pipeline_mode<synchronous>, transform_indices = @transform_6, window_bounds = array<i64: 4, 20, 64>}, {pipeline_mode = #tpu.pipeline_mode<synchronous>, transform_indices = @transform_7, window_bounds = array<i64: 20, 1>}, {pipeline_mode = #tpu.pipeline_mode<synchronous>, transform_indices = @transform_8, window_bounds = array<i64: 4, 20, 20>}, {pipeline_mode = #tpu.pipeline_mode<synchronous>, transform_indices = @transform_9, window_bounds = array<i64: 20, 1>}, {pipeline_mode = #tpu.pipeline_mode<synchronous>, transform_indices = @transform_10, window_bounds = array<i64: 32, 20>}, {pipeline_mode = #tpu.pipeline_mode<synchronous>, transform_indices = @transform_11, window_bounds = array<i64: 32, 1>}, {pipeline_mode = #tpu.pipeline_mode<synchronous>, transform_indices = @transform_12, window_bounds = array<i64: 8, 32>}, {pipeline_mode = #tpu.pipeline_mode<synchronous>, transform_indices = @transform_13, window_bounds = array<i64: 8, 1>}, {pipeline_mode = #tpu.pipeline_mode<synchronous>, transform_indices = @transform_14, window_bounds = array<i64: 1, 8>}, {pipeline_mode = #tpu.pipeline_mode<synchronous>, transform_indices = @transform_15, window_bounds = array<i64: 1, 1>}, {transform_indices = @transform_16, window_bounds = array<i64: 1, 1, 1>}]} {
    %c0 = arith.constant 0 : index
    %c0_0 = arith.constant 0 : index
    %c0_1 = arith.constant 0 : index
    %0 = vector.load %arg2[%c0, %c0_0, %c0_1] : memref<4x64x36xf32, #tpu.memory_space<vmem>>, vector<1x64x36xf32>
    %1 = vector.shape_cast %0 : vector<1x64x36xf32> to vector<64x36xf32>
    %c0_2 = arith.constant 0 : index
    %c0_3 = arith.constant 0 : index
    %c0_4 = arith.constant 0 : index
    %2 = vector.load %arg1[%c0_2, %c0_3, %c0_4] : memref<1x36x400xf32, #tpu.memory_space<vmem>>, vector<1x36x397xf32>
    %3 = vector.shape_cast %2 : vector<1x36x397xf32> to vector<36x397xf32>
    %cst = arith.constant dense<0.000000e+00> : vector<64x397xf32>
    %4 = tpu.matmul %1, %3, %cst {dimension_numbers = #tpu.dot_dimension_numbers<[1], [0], [0], [1], [0, 0, 1, 1], [], []>} : vector<64x36xf32>, vector<36x397xf32>, vector<64x397xf32> -> vector<64x397xf32>
    %c1 = arith.constant 1 : index
    %c0_5 = arith.constant 0 : index
    %c0_6 = arith.constant 0 : index
    %5 = vector.load %arg2[%c1, %c0_5, %c0_6] : memref<4x64x36xf32, #tpu.memory_space<vmem>>, vector<1x64x36xf32>
    %6 = vector.shape_cast %5 : vector<1x64x36xf32> to vector<64x36xf32>
    %c0_7 = arith.constant 0 : index
    %c0_8 = arith.constant 0 : index
    %c1_9 = arith.constant 1 : index
    %7 = vector.load %arg1[%c0_7, %c0_8, %c1_9] : memref<1x36x400xf32, #tpu.memory_space<vmem>>, vector<1x36x397xf32>
    %8 = vector.shape_cast %7 : vector<1x36x397xf32> to vector<36x397xf32>
    %cst_10 = arith.constant dense<0.000000e+00> : vector<64x397xf32>
    %9 = tpu.matmul %6, %8, %cst_10 {dimension_numbers = #tpu.dot_dimension_numbers<[1], [0], [0], [1], [0, 0, 1, 1], [], []>} : vector<64x36xf32>, vector<36x397xf32>, vector<64x397xf32> -> vector<64x397xf32>
    %10 = arith.addf %4, %9 : vector<64x397xf32>
    %c2 = arith.constant 2 : index
    %c0_11 = arith.constant 0 : index
    %c0_12 = arith.constant 0 : index
    %11 = vector.load %arg2[%c2, %c0_11, %c0_12] : memref<4x64x36xf32, #tpu.memory_space<vmem>>, vector<1x64x36xf32>
    %12 = vector.shape_cast %11 : vector<1x64x36xf32> to vector<64x36xf32>
    %c0_13 = arith.constant 0 : index
    %c0_14 = arith.constant 0 : index
    %c2_15 = arith.constant 2 : index
    %13 = vector.load %arg1[%c0_13, %c0_14, %c2_15] : memref<1x36x400xf32, #tpu.memory_space<vmem>>, vector<1x36x397xf32>
    %14 = vector.shape_cast %13 : vector<1x36x397xf32> to vector<36x397xf32>
    %cst_16 = arith.constant dense<0.000000e+00> : vector<64x397xf32>
    %15 = tpu.matmul %12, %14, %cst_16 {dimension_numbers = #tpu.dot_dimension_numbers<[1], [0], [0], [1], [0, 0, 1, 1], [], []>} : vector<64x36xf32>, vector<36x397xf32>, vector<64x397xf32> -> vector<64x397xf32>
    %16 = arith.addf %10, %15 : vector<64x397xf32>
    %c3 = arith.constant 3 : index
    %c0_17 = arith.constant 0 : index
    %c0_18 = arith.constant 0 : index
    %17 = vector.load %arg2[%c3, %c0_17, %c0_18] : memref<4x64x36xf32, #tpu.memory_space<vmem>>, vector<1x64x36xf32>
    %18 = vector.shape_cast %17 : vector<1x64x36xf32> to vector<64x36xf32>
    %c0_19 = arith.constant 0 : index
    %c0_20 = arith.constant 0 : index
    %c3_21 = arith.constant 3 : index
    %19 = vector.load %arg1[%c0_19, %c0_20, %c3_21] : memref<1x36x400xf32, #tpu.memory_space<vmem>>, vector<1x36x397xf32>
    %20 = vector.shape_cast %19 : vector<1x36x397xf32> to vector<36x397xf32>
    %cst_22 = arith.constant dense<0.000000e+00> : vector<64x397xf32>
    %21 = tpu.matmul %18, %20, %cst_22 {dimension_numbers = #tpu.dot_dimension_numbers<[1], [0], [0], [1], [0, 0, 1, 1], [], []>} : vector<64x36xf32>, vector<36x397xf32>, vector<64x397xf32> -> vector<64x397xf32>
    %22 = arith.addf %16, %21 : vector<64x397xf32>
    %c0_23 = arith.constant 0 : index
    %c0_24 = arith.constant 0 : index
    %23 = vector.load %arg3[%c0_23, %c0_24] : memref<64x1xf32, #tpu.memory_space<vmem>>, vector<64x1xf32>
    %24 = vector.broadcast %23 : vector<64x1xf32> to vector<64x397xf32>
    %25 = arith.addf %22, %24 : vector<64x397xf32>
    %cst_25 = arith.constant 0.000000e+00 : f32
    %26 = vector.broadcast %cst_25 : f32 to vector<64x397xf32>
    %27 = arith.maximumf %25, %26 : vector<64x397xf32>
    %c0_26 = arith.constant 0 : index
    %c0_27 = arith.constant 0 : index
    %28 = vector.load %arg18[%c0_26, %c0_27] : memref<64x400xf32, #tpu.memory_space<vmem>>, vector<64x397xf32>
    tpu.vector_store %arg18[%c0_26, %c0_27], %27 {strides = array<i32>} : memref<64x400xf32, #tpu.memory_space<vmem>>, vector<64x397xf32>,
    %c0_28 = arith.constant 0 : index
    %c0_29 = arith.constant 0 : index
    %c0_30 = arith.constant 0 : index
    %29 = vector.load %arg4[%c0_28, %c0_29, %c0_30] : memref<4x64x64xf32, #tpu.memory_space<vmem>>, vector<1x64x64xf32>
    %30 = vector.shape_cast %29 : vector<1x64x64xf32> to vector<64x64xf32>
    %c0_31 = arith.constant 0 : index
    %c0_32 = arith.constant 0 : index
    %31 = vector.load %arg18[%c0_31, %c0_32] : memref<64x400xf32, #tpu.memory_space<vmem>>, vector<64x394xf32>
    %cst_33 = arith.constant dense<0.000000e+00> : vector<64x394xf32>
    %32 = tpu.matmul %30, %31, %cst_33 {dimension_numbers = #tpu.dot_dimension_numbers<[1], [0], [0], [1], [0, 0, 1, 1], [], []>} : vector<64x64xf32>, vector<64x394xf32>, vector<64x394xf32> -> vector<64x394xf32>
    %c1_34 = arith.constant 1 : index
    %c0_35 = arith.constant 0 : index
    %c0_36 = arith.constant 0 : index
    %33 = vector.load %arg4[%c1_34, %c0_35, %c0_36] : memref<4x64x64xf32, #tpu.memory_space<vmem>>, vector<1x64x64xf32>
    %34 = vector.shape_cast %33 : vector<1x64x64xf32> to vector<64x64xf32>
    %c0_37 = arith.constant 0 : index
    %c1_38 = arith.constant 1 : index
    %35 = vector.load %arg18[%c0_37, %c1_38] : memref<64x400xf32, #tpu.memory_space<vmem>>, vector<64x394xf32>
    %cst_39 = arith.constant dense<0.000000e+00> : vector<64x394xf32>
    %36 = tpu.matmul %34, %35, %cst_39 {dimension_numbers = #tpu.dot_dimension_numbers<[1], [0], [0], [1], [0, 0, 1, 1], [], []>} : vector<64x64xf32>, vector<64x394xf32>, vector<64x394xf32> -> vector<64x394xf32>
    %37 = arith.addf %32, %36 : vector<64x394xf32>
    %c2_40 = arith.constant 2 : index
    %c0_41 = arith.constant 0 : index
    %c0_42 = arith.constant 0 : index
    %38 = vector.load %arg4[%c2_40, %c0_41, %c0_42] : memref<4x64x64xf32, #tpu.memory_space<vmem>>, vector<1x64x64xf32>
    %39 = vector.shape_cast %38 : vector<1x64x64xf32> to vector<64x64xf32>
    %c0_43 = arith.constant 0 : index
    %c2_44 = arith.constant 2 : index
    %40 = vector.load %arg18[%c0_43, %c2_44] : memref<64x400xf32, #tpu.memory_space<vmem>>, vector<64x394xf32>
    %cst_45 = arith.constant dense<0.000000e+00> : vector<64x394xf32>
    %41 = tpu.matmul %39, %40, %cst_45 {dimension_numbers = #tpu.dot_dimension_numbers<[1], [0], [0], [1], [0, 0, 1, 1], [], []>} : vector<64x64xf32>, vector<64x394xf32>, vector<64x394xf32> -> vector<64x394xf32>
    %42 = arith.addf %37, %41 : vector<64x394xf32>
    %c3_46 = arith.constant 3 : index
    %c0_47 = arith.constant 0 : index
    %c0_48 = arith.constant 0 : index
    %43 = vector.load %arg4[%c3_46, %c0_47, %c0_48] : memref<4x64x64xf32, #tpu.memory_space<vmem>>, vector<1x64x64xf32>
    %44 = vector.shape_cast %43 : vector<1x64x64xf32> to vector<64x64xf32>
    %c0_49 = arith.constant 0 : index
    %c3_50 = arith.constant 3 : index
    %45 = vector.load %arg18[%c0_49, %c3_50] : memref<64x400xf32, #tpu.memory_space<vmem>>, vector<64x394xf32>
    %cst_51 = arith.constant dense<0.000000e+00> : vector<64x394xf32>
    %46 = tpu.matmul %44, %45, %cst_51 {dimension_numbers = #tpu.dot_dimension_numbers<[1], [0], [0], [1], [0, 0, 1, 1], [], []>} : vector<64x64xf32>, vector<64x394xf32>, vector<64x394xf32> -> vector<64x394xf32>
    %47 = arith.addf %42, %46 : vector<64x394xf32>
    %c0_52 = arith.constant 0 : index
    %c0_53 = arith.constant 0 : index
    %48 = vector.load %arg5[%c0_52, %c0_53] : memref<64x1xf32, #tpu.memory_space<vmem>>, vector<64x1xf32>
    %49 = vector.broadcast %48 : vector<64x1xf32> to vector<64x394xf32>
    %50 = arith.addf %47, %49 : vector<64x394xf32>
    %cst_54 = arith.constant 0.000000e+00 : f32
    %51 = vector.broadcast %cst_54 : f32 to vector<64x394xf32>
    %52 = arith.maximumf %50, %51 : vector<64x394xf32>
    %c0_55 = arith.constant 0 : index
    %c0_56 = arith.constant 0 : index
    %53 = vector.load %arg19[%c0_55, %c0_56] : memref<64x400xf32, #tpu.memory_space<vmem>>, vector<64x394xf32>
    tpu.vector_store %arg19[%c0_55, %c0_56], %52 {strides = array<i32>} : memref<64x400xf32, #tpu.memory_space<vmem>>, vector<64x394xf32>,
    %cst_57 = arith.constant 0.000000e+00 : f32
    %54 = vector.broadcast %cst_57 : f32 to vector<64x1xf32>
    %c0_58 = arith.constant 0 : index
    %c394 = arith.constant 394 : index
    %55 = vector.load %arg19[%c0_58, %c394] : memref<64x400xf32, #tpu.memory_space<vmem>>, vector<64x1xf32>
    tpu.vector_store %arg19[%c0_58, %c394], %54 {strides = array<i32>} : memref<64x400xf32, #tpu.memory_space<vmem>>, vector<64x1xf32>,
    %c0_59 = arith.constant 0 : index
    %c1_60 = arith.constant 1 : index
    %56 = vector.load %arg19[%c0_59, %c1_60] : memref<64x400xf32, #tpu.memory_space<vmem>>, vector<64x394xf32>
    %57 = arith.maximumf %52, %56 : vector<64x394xf32>
    %c0_61 = arith.constant 0 : index
    %c0_62 = arith.constant 0 : index
    %58 = vector.load %arg6[%c0_61, %c0_62] : memref<394x198xf32, #tpu.memory_space<vmem>>, vector<394x198xf32>
    %cst_63 = arith.constant dense<0.000000e+00> : vector<64x198xf32>
    %59 = tpu.matmul %57, %58, %cst_63 {dimension_numbers = #tpu.dot_dimension_numbers<[1], [0], [0], [1], [0, 0, 1, 1], [], []>} : vector<64x394xf32>, vector<394x198xf32>, vector<64x198xf32> -> vector<64x198xf32>
    %c0_64 = arith.constant 0 : index
    %c0_65 = arith.constant 0 : index
    %60 = vector.load %arg18[%c0_64, %c0_65] : memref<64x400xf32, #tpu.memory_space<vmem>>, vector<64x198xf32>
    tpu.vector_store %arg18[%c0_64, %c0_65], %59 {strides = array<i32>} : memref<64x400xf32, #tpu.memory_space<vmem>>, vector<64x198xf32>,
    %61 = vector.extract_strided_slice %52 {offsets = [0, 0], sizes = [64, 1], strides = [1, 1]} : vector<64x394xf32> to vector<64x1xf32>
    %c0_66 = arith.constant 0 : index
    %c0_67 = arith.constant 0 : index
    %62 = vector.load %arg18[%c0_66, %c0_67] : memref<64x400xf32, #tpu.memory_space<vmem>>, vector<64x1xf32>
    tpu.vector_store %arg18[%c0_66, %c0_67], %61 {strides = array<i32>} : memref<64x400xf32, #tpu.memory_space<vmem>>, vector<64x1xf32>,
    %c0_68 = arith.constant 0 : index
    %c0_69 = arith.constant 0 : index
    %c0_70 = arith.constant 0 : index
    %63 = vector.load %arg7[%c0_68, %c0_69, %c0_70] : memref<4x20x64xf32, #tpu.memory_space<vmem>>, vector<1x20x64xf32>
    %64 = vector.shape_cast %63 : vector<1x20x64xf32> to vector<20x64xf32>
    %c0_71 = arith.constant 0 : index
    %c0_72 = arith.constant 0 : index
    %65 = vector.load %arg18[%c0_71, %c0_72] : memref<64x400xf32, #tpu.memory_space<vmem>>, vector<64x195xf32>
    %cst_73 = arith.constant dense<0.000000e+00> : vector<20x195xf32>
    %66 = tpu.matmul %64, %65, %cst_73 {dimension_numbers = #tpu.dot_dimension_numbers<[1], [0], [0], [1], [0, 0, 1, 1], [], []>} : vector<20x64xf32>, vector<64x195xf32>, vector<20x195xf32> -> vector<20x195xf32>
    %c1_74 = arith.constant 1 : index
    %c0_75 = arith.constant 0 : index
    %c0_76 = arith.constant 0 : index
    %67 = vector.load %arg7[%c1_74, %c0_75, %c0_76] : memref<4x20x64xf32, #tpu.memory_space<vmem>>, vector<1x20x64xf32>
    %68 = vector.shape_cast %67 : vector<1x20x64xf32> to vector<20x64xf32>
    %c0_77 = arith.constant 0 : index
    %c1_78 = arith.constant 1 : index
    %69 = vector.load %arg18[%c0_77, %c1_78] : memref<64x400xf32, #tpu.memory_space<vmem>>, vector<64x195xf32>
    %cst_79 = arith.constant dense<0.000000e+00> : vector<20x195xf32>
    %70 = tpu.matmul %68, %69, %cst_79 {dimension_numbers = #tpu.dot_dimension_numbers<[1], [0], [0], [1], [0, 0, 1, 1], [], []>} : vector<20x64xf32>, vector<64x195xf32>, vector<20x195xf32> -> vector<20x195xf32>
    %71 = arith.addf %66, %70 : vector<20x195xf32>
    %c2_80 = arith.constant 2 : index
    %c0_81 = arith.constant 0 : index
    %c0_82 = arith.constant 0 : index
    %72 = vector.load %arg7[%c2_80, %c0_81, %c0_82] : memref<4x20x64xf32, #tpu.memory_space<vmem>>, vector<1x20x64xf32>
    %73 = vector.shape_cast %72 : vector<1x20x64xf32> to vector<20x64xf32>
    %c0_83 = arith.constant 0 : index
    %c2_84 = arith.constant 2 : index
    %74 = vector.load %arg18[%c0_83, %c2_84] : memref<64x400xf32, #tpu.memory_space<vmem>>, vector<64x195xf32>
    %cst_85 = arith.constant dense<0.000000e+00> : vector<20x195xf32>
    %75 = tpu.matmul %73, %74, %cst_85 {dimension_numbers = #tpu.dot_dimension_numbers<[1], [0], [0], [1], [0, 0, 1, 1], [], []>} : vector<20x64xf32>, vector<64x195xf32>, vector<20x195xf32> -> vector<20x195xf32>
    %76 = arith.addf %71, %75 : vector<20x195xf32>
    %c3_86 = arith.constant 3 : index
    %c0_87 = arith.constant 0 : index
    %c0_88 = arith.constant 0 : index
    %77 = vector.load %arg7[%c3_86, %c0_87, %c0_88] : memref<4x20x64xf32, #tpu.memory_space<vmem>>, vector<1x20x64xf32>
    %78 = vector.shape_cast %77 : vector<1x20x64xf32> to vector<20x64xf32>
    %c0_89 = arith.constant 0 : index
    %c3_90 = arith.constant 3 : index
    %79 = vector.load %arg18[%c0_89, %c3_90] : memref<64x400xf32, #tpu.memory_space<vmem>>, vector<64x195xf32>
    %cst_91 = arith.constant dense<0.000000e+00> : vector<20x195xf32>
    %80 = tpu.matmul %78, %79, %cst_91 {dimension_numbers = #tpu.dot_dimension_numbers<[1], [0], [0], [1], [0, 0, 1, 1], [], []>} : vector<20x64xf32>, vector<64x195xf32>, vector<20x195xf32> -> vector<20x195xf32>
    %81 = arith.addf %76, %80 : vector<20x195xf32>
    %c0_92 = arith.constant 0 : index
    %c0_93 = arith.constant 0 : index
    %82 = vector.load %arg8[%c0_92, %c0_93] : memref<20x1xf32, #tpu.memory_space<vmem>>, vector<20x1xf32>
    %83 = vector.broadcast %82 : vector<20x1xf32> to vector<20x195xf32>
    %84 = arith.addf %81, %83 : vector<20x195xf32>
    %cst_94 = arith.constant 0.000000e+00 : f32
    %85 = vector.broadcast %cst_94 : f32 to vector<20x195xf32>
    %86 = arith.maximumf %84, %85 : vector<20x195xf32>
    %c0_95 = arith.constant 0 : index
    %c0_96 = arith.constant 0 : index
    %87 = vector.load %arg19[%c0_95, %c0_96] : memref<64x400xf32, #tpu.memory_space<vmem>>, vector<20x195xf32>
    tpu.vector_store %arg19[%c0_95, %c0_96], %86 {strides = array<i32>} : memref<64x400xf32, #tpu.memory_space<vmem>>, vector<20x195xf32>,
    %c0_97 = arith.constant 0 : index
    %c0_98 = arith.constant 0 : index
    %c0_99 = arith.constant 0 : index
    %88 = vector.load %arg9[%c0_97, %c0_98, %c0_99] : memref<4x20x20xf32, #tpu.memory_space<vmem>>, vector<1x20x20xf32>
    %89 = vector.shape_cast %88 : vector<1x20x20xf32> to vector<20x20xf32>
    %c0_100 = arith.constant 0 : index
    %c0_101 = arith.constant 0 : index
    %90 = vector.load %arg19[%c0_100, %c0_101] : memref<64x400xf32, #tpu.memory_space<vmem>>, vector<20x192xf32>
    %cst_102 = arith.constant dense<0.000000e+00> : vector<20x192xf32>
    %91 = tpu.matmul %89, %90, %cst_102 {dimension_numbers = #tpu.dot_dimension_numbers<[1], [0], [0], [1], [0, 0, 1, 1], [], []>} : vector<20x20xf32>, vector<20x192xf32>, vector<20x192xf32> -> vector<20x192xf32>
    %c1_103 = arith.constant 1 : index
    %c0_104 = arith.constant 0 : index
    %c0_105 = arith.constant 0 : index
    %92 = vector.load %arg9[%c1_103, %c0_104, %c0_105] : memref<4x20x20xf32, #tpu.memory_space<vmem>>, vector<1x20x20xf32>
    %93 = vector.shape_cast %92 : vector<1x20x20xf32> to vector<20x20xf32>
    %c0_106 = arith.constant 0 : index
    %c1_107 = arith.constant 1 : index
    %94 = vector.load %arg19[%c0_106, %c1_107] : memref<64x400xf32, #tpu.memory_space<vmem>>, vector<20x192xf32>
    %cst_108 = arith.constant dense<0.000000e+00> : vector<20x192xf32>
    %95 = tpu.matmul %93, %94, %cst_108 {dimension_numbers = #tpu.dot_dimension_numbers<[1], [0], [0], [1], [0, 0, 1, 1], [], []>} : vector<20x20xf32>, vector<20x192xf32>, vector<20x192xf32> -> vector<20x192xf32>
    %96 = arith.addf %91, %95 : vector<20x192xf32>
    %c2_109 = arith.constant 2 : index
    %c0_110 = arith.constant 0 : index
    %c0_111 = arith.constant 0 : index
    %97 = vector.load %arg9[%c2_109, %c0_110, %c0_111] : memref<4x20x20xf32, #tpu.memory_space<vmem>>, vector<1x20x20xf32>
    %98 = vector.shape_cast %97 : vector<1x20x20xf32> to vector<20x20xf32>
    %c0_112 = arith.constant 0 : index
    %c2_113 = arith.constant 2 : index
    %99 = vector.load %arg19[%c0_112, %c2_113] : memref<64x400xf32, #tpu.memory_space<vmem>>, vector<20x192xf32>
    %cst_114 = arith.constant dense<0.000000e+00> : vector<20x192xf32>
    %100 = tpu.matmul %98, %99, %cst_114 {dimension_numbers = #tpu.dot_dimension_numbers<[1], [0], [0], [1], [0, 0, 1, 1], [], []>} : vector<20x20xf32>, vector<20x192xf32>, vector<20x192xf32> -> vector<20x192xf32>
    %101 = arith.addf %96, %100 : vector<20x192xf32>
    %c3_115 = arith.constant 3 : index
    %c0_116 = arith.constant 0 : index
    %c0_117 = arith.constant 0 : index
    %102 = vector.load %arg9[%c3_115, %c0_116, %c0_117] : memref<4x20x20xf32, #tpu.memory_space<vmem>>, vector<1x20x20xf32>
    %103 = vector.shape_cast %102 : vector<1x20x20xf32> to vector<20x20xf32>
    %c0_118 = arith.constant 0 : index
    %c3_119 = arith.constant 3 : index
    %104 = vector.load %arg19[%c0_118, %c3_119] : memref<64x400xf32, #tpu.memory_space<vmem>>, vector<20x192xf32>
    %cst_120 = arith.constant dense<0.000000e+00> : vector<20x192xf32>
    %105 = tpu.matmul %103, %104, %cst_120 {dimension_numbers = #tpu.dot_dimension_numbers<[1], [0], [0], [1], [0, 0, 1, 1], [], []>} : vector<20x20xf32>, vector<20x192xf32>, vector<20x192xf32> -> vector<20x192xf32>
    %106 = arith.addf %101, %105 : vector<20x192xf32>
    %c0_121 = arith.constant 0 : index
    %c0_122 = arith.constant 0 : index
    %107 = vector.load %arg10[%c0_121, %c0_122] : memref<20x1xf32, #tpu.memory_space<vmem>>, vector<20x1xf32>
    %108 = vector.broadcast %107 : vector<20x1xf32> to vector<20x192xf32>
    %109 = arith.addf %106, %108 : vector<20x192xf32>
    %cst_123 = arith.constant 0.000000e+00 : f32
    %110 = vector.broadcast %cst_123 : f32 to vector<20x192xf32>
    %111 = arith.maximumf %109, %110 : vector<20x192xf32>
    %cst_124 = arith.constant dense<0.000000e+00> : vector<20xf32>
    %112 = vector.multi_reduction <add>, %111, %cst_124 [1] : vector<20x192xf32> to vector<20xf32>
    %113 = vector.shape_cast %112 : vector<20xf32> to vector<20x1xf32>
    %cst_125 = arith.constant 1.920000e+02 : f32
    %114 = vector.broadcast %cst_125 : f32 to vector<20x1xf32>
    %115 = arith.divf %113, %114 : vector<20x1xf32>
    %c0_126 = arith.constant 0 : index
    %c0_127 = arith.constant 0 : index
    %116 = vector.load %arg11[%c0_126, %c0_127] : memref<32x20xf32, #tpu.memory_space<vmem>>, vector<32x20xf32>
    %cst_128 = arith.constant dense<0.000000e+00> : vector<32x1xf32>
    %117 = tpu.matmul %116, %115, %cst_128 {dimension_numbers = #tpu.dot_dimension_numbers<[1], [0], [0], [1], [0, 0, 1, 1], [], []>} : vector<32x20xf32>, vector<20x1xf32>, vector<32x1xf32> -> vector<32x1xf32>
    %c0_129 = arith.constant 0 : index
    %c0_130 = arith.constant 0 : index
    %118 = vector.load %arg12[%c0_129, %c0_130] : memref<32x1xf32, #tpu.memory_space<vmem>>, vector<32x1xf32>
    %119 = arith.addf %117, %118 : vector<32x1xf32>
    %120 = math.tanh %119 : vector<32x1xf32>
    %c0_131 = arith.constant 0 : index
    %c0_132 = arith.constant 0 : index
    %121 = vector.load %arg13[%c0_131, %c0_132] : memref<8x32xf32, #tpu.memory_space<vmem>>, vector<8x32xf32>
    %cst_133 = arith.constant dense<0.000000e+00> : vector<8x1xf32>
    %122 = tpu.matmul %121, %120, %cst_133 {dimension_numbers = #tpu.dot_dimension_numbers<[1], [0], [0], [1], [0, 0, 1, 1], [], []>} : vector<8x32xf32>, vector<32x1xf32>, vector<8x1xf32> -> vector<8x1xf32>
    %c0_134 = arith.constant 0 : index
    %c0_135 = arith.constant 0 : index
    %123 = vector.load %arg14[%c0_134, %c0_135] : memref<8x1xf32, #tpu.memory_space<vmem>>, vector<8x1xf32>
    %124 = arith.addf %122, %123 : vector<8x1xf32>
    %125 = math.tanh %124 : vector<8x1xf32>
    %c0_136 = arith.constant 0 : index
    %c0_137 = arith.constant 0 : index
    %126 = vector.load %arg15[%c0_136, %c0_137] : memref<1x8xf32, #tpu.memory_space<vmem>>, vector<1x8xf32>
    %cst_138 = arith.constant dense<0.000000e+00> : vector<1x1xf32>
    %127 = tpu.matmul %126, %125, %cst_138 {dimension_numbers = #tpu.dot_dimension_numbers<[1], [0], [0], [1], [0, 0, 1, 1], [], []>} : vector<1x8xf32>, vector<8x1xf32>, vector<1x1xf32> -> vector<1x1xf32>
    %c0_139 = arith.constant 0 : index
    %c0_140 = arith.constant 0 : index
    %128 = vector.load %arg16[%c0_139, %c0_140] : memref<1x1xf32, #tpu.memory_space<vmem>>, vector<1x1xf32>
    %129 = arith.addf %127, %128 : vector<1x1xf32>
    %c0_141 = arith.constant 0 : index
    %c0_142 = arith.constant 0 : index
    %c0_143 = arith.constant 0 : index
    %130 = vector.load %arg17[%c0_141, %c0_142, %c0_143] : memref<1x1x1xf32, #tpu.memory_space<vmem>>, vector<1x1x1xf32>
    %131 = vector.shape_cast %130 : vector<1x1x1xf32> to vector<1x1xf32>
    %132 = vector.shape_cast %129 : vector<1x1xf32> to vector<1x1x1xf32>
    tpu.vector_store %arg17[%c0_141, %c0_142, %c0_143], %132 {strides = array<i32>} : memref<1x1x1xf32, #tpu.memory_space<vmem>>, vector<1x1x1xf32>,
    return
  }
  func.func @transform_0(%arg0: i32) -> (i32, i32, i32) {
    %c0_i32 = arith.constant 0 : i32
    %c0_i32_0 = arith.constant 0 : i32
    %c0_i32_1 = arith.constant 0 : i32
    return %arg0, %c0_i32, %c0_i32_0 : i32, i32, i32
  }
  func.func @transform_1(%arg0: i32) -> (i32, i32, i32) {
    %c0_i32 = arith.constant 0 : i32
    %c0_i32_0 = arith.constant 0 : i32
    %c0_i32_1 = arith.constant 0 : i32
    %c0_i32_2 = arith.constant 0 : i32
    return %c0_i32, %c0_i32_0, %c0_i32_1 : i32, i32, i32
  }
  func.func @transform_2(%arg0: i32) -> (i32, i32) {
    %c0_i32 = arith.constant 0 : i32
    %c0_i32_0 = arith.constant 0 : i32
    %c0_i32_1 = arith.constant 0 : i32
    return %c0_i32, %c0_i32_0 : i32, i32
  }
  func.func @transform_3(%arg0: i32) -> (i32, i32, i32) {
    %c0_i32 = arith.constant 0 : i32
    %c0_i32_0 = arith.constant 0 : i32
    %c0_i32_1 = arith.constant 0 : i32
    %c0_i32_2 = arith.constant 0 : i32
    return %c0_i32, %c0_i32_0, %c0_i32_1 : i32, i32, i32
  }
  func.func @transform_4(%arg0: i32) -> (i32, i32) {
    %c0_i32 = arith.constant 0 : i32
    %c0_i32_0 = arith.constant 0 : i32
    %c0_i32_1 = arith.constant 0 : i32
    return %c0_i32, %c0_i32_0 : i32, i32
  }
  func.func @transform_5(%arg0: i32) -> (i32, i32) {
    %c0_i32 = arith.constant 0 : i32
    %c0_i32_0 = arith.constant 0 : i32
    %c0_i32_1 = arith.constant 0 : i32
    return %c0_i32, %c0_i32_0 : i32, i32
  }
  func.func @transform_6(%arg0: i32) -> (i32, i32, i32) {
    %c0_i32 = arith.constant 0 : i32
    %c0_i32_0 = arith.constant 0 : i32
    %c0_i32_1 = arith.constant 0 : i32
    %c0_i32_2 = arith.constant 0 : i32
    return %c0_i32, %c0_i32_0, %c0_i32_1 : i32, i32, i32
  }
  func.func @transform_7(%arg0: i32) -> (i32, i32) {
    %c0_i32 = arith.constant 0 : i32
    %c0_i32_0 = arith.constant 0 : i32
    %c0_i32_1 = arith.constant 0 : i32
    return %c0_i32, %c0_i32_0 : i32, i32
  }
  func.func @transform_8(%arg0: i32) -> (i32, i32, i32) {
    %c0_i32 = arith.constant 0 : i32
    %c0_i32_0 = arith.constant 0 : i32
    %c0_i32_1 = arith.constant 0 : i32
    %c0_i32_2 = arith.constant 0 : i32
    return %c0_i32, %c0_i32_0, %c0_i32_1 : i32, i32, i32
  }
  func.func @transform_9(%arg0: i32) -> (i32, i32) {
    %c0_i32 = arith.constant 0 : i32
    %c0_i32_0 = arith.constant 0 : i32
    %c0_i32_1 = arith.constant 0 : i32
    return %c0_i32, %c0_i32_0 : i32, i32
  }
  func.func @transform_10(%arg0: i32) -> (i32, i32) {
    %c0_i32 = arith.constant 0 : i32
    %c0_i32_0 = arith.constant 0 : i32
    %c0_i32_1 = arith.constant 0 : i32
    return %c0_i32, %c0_i32_0 : i32, i32
  }
  func.func @transform_11(%arg0: i32) -> (i32, i32) {
    %c0_i32 = arith.constant 0 : i32
    %c0_i32_0 = arith.constant 0 : i32
    %c0_i32_1 = arith.constant 0 : i32
    return %c0_i32, %c0_i32_0 : i32, i32
  }
  func.func @transform_12(%arg0: i32) -> (i32, i32) {
    %c0_i32 = arith.constant 0 : i32
    %c0_i32_0 = arith.constant 0 : i32
    %c0_i32_1 = arith.constant 0 : i32
    return %c0_i32, %c0_i32_0 : i32, i32
  }
  func.func @transform_13(%arg0: i32) -> (i32, i32) {
    %c0_i32 = arith.constant 0 : i32
    %c0_i32_0 = arith.constant 0 : i32
    %c0_i32_1 = arith.constant 0 : i32
    return %c0_i32, %c0_i32_0 : i32, i32
  }
  func.func @transform_14(%arg0: i32) -> (i32, i32) {
    %c0_i32 = arith.constant 0 : i32
    %c0_i32_0 = arith.constant 0 : i32
    %c0_i32_1 = arith.constant 0 : i32
    return %c0_i32, %c0_i32_0 : i32, i32
  }
  func.func @transform_15(%arg0: i32) -> (i32, i32) {
    %c0_i32 = arith.constant 0 : i32
    %c0_i32_0 = arith.constant 0 : i32
    %c0_i32_1 = arith.constant 0 : i32
    return %c0_i32, %c0_i32_0 : i32, i32
  }
  func.func @transform_16(%arg0: i32) -> (i32, i32, i32) {
    %c0_i32 = arith.constant 0 : i32
    %c0_i32_0 = arith.constant 0 : i32
    %c0_i32_1 = arith.constant 0 : i32
    return %arg0, %c0_i32, %c0_i32_0 : i32, i32, i32
  }
}

</mosaic_0001>

<llo_original>
// kernel: vsb_forward.1
$region0: #{vsb_forward.1}
  #allocation0 [shape = 'u32[]', space=smem, size = 0x4, offset = 0x4, fixed_abs, tag = 'smem constant byte address 0x4 - core index']
  #allocation1 [shape = 'u32[72,128]{1,0:T(1,128)}', space=vmem, size = 0x9000, scoped, tag = 'internal scratch']
  #allocation2 [shape = 'f32[64,400]{1,0:T(8,128)}', space=vmem, size = 0x20000, scoped, tag = 'scratch operand']
  #allocation3 [shape = 'f32[64,400]{1,0:T(8,128)}', space=vmem, size = 0x20000, scoped, tag = 'scratch operand']
  #allocation4 [shape = 'f32[1,1]{1,0:T(1,128)S(1)}', space=vmem, size = 0x200, scoped, tag = 'scoped memory for vsb_forward.1']
  %s0 = inlined_call_operand.vmem [shape: f32[2,36,400], index: 0, kind: input, shape index: {}]
  %s1 = inlined_call_operand.vmem [shape: f32[4,64,36], index: 1, kind: input, shape index: {}]
  %s2 = inlined_call_operand.vmem [shape: f32[64,1], index: 2, kind: input, shape index: {}]
  %s3 = inlined_call_operand.vmem [shape: f32[4,64,64], index: 3, kind: input, shape index: {}]
  %s4 = inlined_call_operand.vmem [shape: f32[64,1], index: 4, kind: input, shape index: {}]
  %s5 = inlined_call_operand.vmem [shape: f32[394,198], index: 5, kind: input, shape index: {}]
  %s6 = inlined_call_operand.vmem [shape: f32[4,20,64], index: 6, kind: input, shape index: {}]
  %s7 = inlined_call_operand.vmem [shape: f32[20,1], index: 7, kind: input, shape index: {}]
  %s8 = inlined_call_operand.vmem [shape: f32[4,20,20], index: 8, kind: input, shape index: {}]
  %s9 = inlined_call_operand.vmem [shape: f32[20,1], index: 9, kind: input, shape index: {}]
  %s10 = inlined_call_operand.vmem [shape: f32[32,20], index: 10, kind: input, shape index: {}]
  %s11 = inlined_call_operand.vmem [shape: f32[32,1], index: 11, kind: input, shape index: {}]
  %s12 = inlined_call_operand.vmem [shape: f32[8,32], index: 12, kind: input, shape index: {}]
  %s13 = inlined_call_operand.vmem [shape: f32[8,1], index: 13, kind: input, shape index: {}]
  %s14 = inlined_call_operand.vmem [shape: f32[1,8], index: 14, kind: input, shape index: {}]
  %s15 = inlined_call_operand.<no memory space> [shape: f32[1,1], index: 15, kind: input, shape index: {}]
  %s16 = inlined_call_operand.vmem [shape: f32[2,1,1], index: 16, kind: output, shape index: {}]
  %s17 = sld [smem:[#allocation0]]
  $region97: #{vsb_forward.1} parent=0
    _
  %s19 = ssub.s32 1, %s17
  %s20 = scalar_select 0, %s19, %s17
  %v21 = vstv %s15
  %22 = vst [vmem:[#allocation4] sm:$0x1] %v21
  loop: start=0, step=1, limit=4
  $region2: #{vsb_forward.1} parent=0 // loop_pre_header
    _
  $region3: #{vsb_forward.1} parent=0 // loop_header
    %s24 = sphi 0, %s28
    %p25 = scmp.ge.s32.totalorder %s24, 4
    %s34 = sphi 0, %s36
    %s37 = sphi 0, %s34
    %s38 = sphi 0, %s37
    %s54 = sphi 0, %s38
    %s58 = sphi 0, %s58
    %s60 = sphi 0, %s58
    %s61 = sphi 0, %s60
    %s75 = sphi 0, %s61
    %s79 = sphi 0, %s79
    %s81 = sphi 0, %s79
    %s82 = sphi 0, %s81
    %s96 = sphi 0, %s82
    %s100 = sphi 0, %s100
    %s102 = sphi 0, %s100
    %s103 = sphi 0, %s102
    %s117 = sphi 0, %s103
    %s121 = sphi 0, %s121
    %s123 = sphi 0, %s121
    %s124 = sphi 0, %s123
    %s138 = sphi 0, %s124
    %s142 = sphi 0, %s142
    %s144 = sphi 0, %s142
    %s145 = sphi 0, %s144
    %s159 = sphi 0, %s145
    %s163 = sphi 0, %s163
    %s165 = sphi 0, %s163
    %s166 = sphi 0, %s165
    %s180 = sphi 0, %s166
    %s184 = sphi 0, %s184
    %s186 = sphi 0, %s184
    %s187 = sphi 0, %s186
    %s201 = sphi 0, %s187
    %s205 = sphi 0, %s205
    %s207 = sphi 0, %s205
    %s208 = sphi 0, %s207
    %s222 = sphi 0, %s208
    %s226 = sphi 0, %s226
    %s228 = sphi 0, %s226
    %s229 = sphi 0, %s228
    %s243 = sphi 0, %s229
    %s247 = sphi 0, %s247
    %s249 = sphi 0, %s247
    %s250 = sphi 0, %s249
    %s264 = sphi 0, %s250
    %s268 = sphi 0, %s268
    %s270 = sphi 0, %s268
    %s271 = sphi 0, %s270
    %s285 = sphi 0, %s271
    %s289 = sphi 0, %s289
    %s291 = sphi 0, %s289
    %s292 = sphi 0, %s291
    %s306 = sphi 0, %s292
    %s310 = sphi 0, %s310
    %s312 = sphi 0, %s310
    %s313 = sphi 0, %s312
    %s327 = sphi 0, %s313
    %s331 = sphi 0, %s331
    %s333 = sphi 0, %s331
    %s334 = sphi 0, %s333
    %s348 = sphi 0, %s334
    %s352 = sphi 0, %s352
    %s354 = sphi 0, %s352
    %s355 = sphi 0, %s354
    %s369 = sphi 0, %s355
    %s375 = sphi 0, %s377
    %s378 = sphi 0, %s375
    %s379 = sphi 0, %s378
    %s395 = sphi 0, %s379
  $region4: #{vsb_forward.1} parent=0 // loop_header_branch
    %27 = sbr.rel (%p25) target = $region8
  $region5: #{vsb_forward.1} parent=0 // loop_body
    %s29 = ssub.s32 %s24, 1
    %s30 = ssub.s32 %s24, 2
    %s31 = sadd.s32 %s24, 1
    %s32 = ssub.s32 %s24, %s31
    %p33 = scmp.eq.s32.totalorder %s32, 0
    %s35 = sadd.s32 %s34, 1
    %s36 = scalar_select %p33, %s34, %s35
    %p39 = pneg %p33
    %p40 = scmp.eq.s32.totalorder %s24, 1
    %p41 = por %p39, %p40
    %p42 = scmp.ne.s32.totalorder %s34, %s37
    %p43 = scmp.eq.s32.totalorder %s24, 0
    %p44 = por %p42, %p43
    %p45 = scmp.ne.s32.totalorder %s34, %s37
    %p46 = scmp.eq.s32.totalorder %s29, 1
    %p47 = por %p45, %p46
    %p48 = scmp.ne.s32.totalorder %s37, %s38
    %p49 = scmp.eq.s32.totalorder %s29, 0
    %p50 = por %p48, %p49
    %p51 = scmp.ne.s32.totalorder %s37, %s38
    %p52 = scmp.eq.s32.totalorder %s30, 1
    %p53 = por %p51, %p52
    %p55 = scmp.ne.s32.totalorder %s38, %s54
    %p56 = scmp.eq.s32.totalorder %s30, 0
    %p57 = por %p55, %p56
    %s59 = sadd.s32 %s58, 1
    %p62 = scmp.eq.s32.totalorder %s24, 1
    %p63 = scmp.ne.s32.totalorder %s58, %s60
    %p64 = scmp.eq.s32.totalorder %s24, 0
    %p65 = por %p63, %p64
    %p66 = scmp.ne.s32.totalorder %s58, %s60
    %p67 = scmp.eq.s32.totalorder %s29, 1
    %p68 = por %p66, %p67
    %p69 = scmp.ne.s32.totalorder %s60, %s61
    %p70 = scmp.eq.s32.totalorder %s29, 0
    %p71 = por %p69, %p70
    %p72 = scmp.ne.s32.totalorder %s60, %s61
    %p73 = scmp.eq.s32.totalorder %s30, 1
    %p74 = por %p72, %p73
    %p76 = scmp.ne.s32.totalorder %s61, %s75
    %p77 = scmp.eq.s32.totalorder %s30, 0
    %p78 = por %p76, %p77
    %s80 = sadd.s32 %s79, 1
    %p83 = scmp.eq.s32.totalorder %s24, 1
    %p84 = scmp.ne.s32.totalorder %s79, %s81
    %p85 = scmp.eq.s32.totalorder %s24, 0
    %p86 = por %p84, %p85
    %p87 = scmp.ne.s32.totalorder %s79, %s81
    %p88 = scmp.eq.s32.totalorder %s29, 1
    %p89 = por %p87, %p88
    %p90 = scmp.ne.s32.totalorder %s81, %s82
    %p91 = scmp.eq.s32.totalorder %s29, 0
    %p92 = por %p90, %p91
    %p93 = scmp.ne.s32.totalorder %s81, %s82
    %p94 = scmp.eq.s32.totalorder %s30, 1
    %p95 = por %p93, %p94
    %p97 = scmp.ne.s32.totalorder %s82, %s96
    %p98 = scmp.eq.s32.totalorder %s30, 0
    %p99 = por %p97, %p98
    %s101 = sadd.s32 %s100, 1
    %p104 = scmp.eq.s32.totalorder %s24, 1
    %p105 = scmp.ne.s32.totalorder %s100, %s102
    %p106 = scmp.eq.s32.totalorder %s24, 0
    %p107 = por %p105, %p106
    %p108 = scmp.ne.s32.totalorder %s100, %s102
    %p109 = scmp.eq.s32.totalorder %s29, 1
    %p110 = por %p108, %p109
    %p111 = scmp.ne.s32.totalorder %s102, %s103
    %p112 = scmp.eq.s32.totalorder %s29, 0
    %p113 = por %p111, %p112
    %p114 = scmp.ne.s32.totalorder %s102, %s103
    %p115 = scmp.eq.s32.totalorder %s30, 1
    %p116 = por %p114, %p115
    %p118 = scmp.ne.s32.totalorder %s103, %s117
    %p119 = scmp.eq.s32.totalorder %s30, 0
    %p120 = por %p118, %p119
    %s122 = sadd.s32 %s121, 1
    %p125 = scmp.eq.s32.totalorder %s24, 1
    %p126 = scmp.ne.s32.totalorder %s121, %s123
    %p127 = scmp.eq.s32.totalorder %s24, 0
    %p128 = por %p126, %p127
    %p129 = scmp.ne.s32.totalorder %s121, %s123
    %p130 = scmp.eq.s32.totalorder %s29, 1
    %p131 = por %p129, %p130
    %p132 = scmp.ne.s32.totalorder %s123, %s124
    %p133 = scmp.eq.s32.totalorder %s29, 0
    %p134 = por %p132, %p133
    %p135 = scmp.ne.s32.totalorder %s123, %s124
    %p136 = scmp.eq.s32.totalorder %s30, 1
    %p137 = por %p135, %p136
    %p139 = scmp.ne.s32.totalorder %s124, %s138
    %p140 = scmp.eq.s32.totalorder %s30, 0
    %p141 = por %p139, %p140
    %s143 = sadd.s32 %s142, 1
    %p146 = scmp.eq.s32.totalorder %s24, 1
    %p147 = scmp.ne.s32.totalorder %s142, %s144
    %p148 = scmp.eq.s32.totalorder %s24, 0
    %p149 = por %p147, %p148
    %p150 = scmp.ne.s32.totalorder %s142, %s144
    %p151 = scmp.eq.s32.totalorder %s29, 1
    %p152 = por %p150, %p151
    %p153 = scmp.ne.s32.totalorder %s144, %s145
    %p154 = scmp.eq.s32.totalorder %s29, 0
    %p155 = por %p153, %p154
    %p156 = scmp.ne.s32.totalorder %s144, %s145
    %p157 = scmp.eq.s32.totalorder %s30, 1
    %p158 = por %p156, %p157
    %p160 = scmp.ne.s32.totalorder %s145, %s159
    %p161 = scmp.eq.s32.totalorder %s30, 0
    %p162 = por %p160, %p161
    %s164 = sadd.s32 %s163, 1
    %p167 = scmp.eq.s32.totalorder %s24, 1
    %p168 = scmp.ne.s32.totalorder %s163, %s165
    %p169 = scmp.eq.s32.totalorder %s24, 0
    %p170 = por %p168, %p169
    %p171 = scmp.ne.s32.totalorder %s163, %s165
    %p172 = scmp.eq.s32.totalorder %s29, 1
    %p173 = por %p171, %p172
    %p174 = scmp.ne.s32.totalorder %s165, %s166
    %p175 = scmp.eq.s32.totalorder %s29, 0
    %p176 = por %p174, %p175
    %p177 = scmp.ne.s32.totalorder %s165, %s166
    %p178 = scmp.eq.s32.totalorder %s30, 1
    %p179 = por %p177, %p178
    %p181 = scmp.ne.s32.totalorder %s166, %s180
    %p182 = scmp.eq.s32.totalorder %s30, 0
    %p183 = por %p181, %p182
    %s185 = sadd.s32 %s184, 1
    %p188 = scmp.eq.s32.totalorder %s24, 1
    %p189 = scmp.ne.s32.totalorder %s184, %s186
    %p190 = scmp.eq.s32.totalorder %s24, 0
    %p191 = por %p189, %p190
    %p192 = scmp.ne.s32.totalorder %s184, %s186
    %p193 = scmp.eq.s32.totalorder %s29, 1
    %p194 = por %p192, %p193
    %p195 = scmp.ne.s32.totalorder %s186, %s187
    %p196 = scmp.eq.s32.totalorder %s29, 0
    %p197 = por %p195, %p196
    %p198 = scmp.ne.s32.totalorder %s186, %s187
    %p199 = scmp.eq.s32.totalorder %s30, 1
    %p200 = por %p198, %p199
    %p202 = scmp.ne.s32.totalorder %s187, %s201
    %p203 = scmp.eq.s32.totalorder %s30, 0
    %p204 = por %p202, %p203
    %s206 = sadd.s32 %s205, 1
    %p209 = scmp.eq.s32.totalorder %s24, 1
    %p210 = scmp.ne.s32.totalorder %s205, %s207
    %p211 = scmp.eq.s32.totalorder %s24, 0
    %p212 = por %p210, %p211
    %p213 = scmp.ne.s32.totalorder %s205, %s207
    %p214 = scmp.eq.s32.totalorder %s29, 1
    %p215 = por %p213, %p214
    %p216 = scmp.ne.s32.totalorder %s207, %s208
    %p217 = scmp.eq.s32.totalorder %s29, 0
    %p218 = por %p216, %p217
    %p219 = scmp.ne.s32.totalorder %s207, %s208
    %p220 = scmp.eq.s32.totalorder %s30, 1
    %p221 = por %p219, %p220
    %p223 = scmp.ne.s32.totalorder %s208, %s222
    %p224 = scmp.eq.s32.totalorder %s30, 0
    %p225 = por %p223, %p224
    %s227 = sadd.s32 %s226, 1
    %p230 = scmp.eq.s32.totalorder %s24, 1
    %p231 = scmp.ne.s32.totalorder %s226, %s228
    %p232 = scmp.eq.s32.totalorder %s24, 0
    %p233 = por %p231, %p232
    %p234 = scmp.ne.s32.totalorder %s226, %s228
    %p235 = scmp.eq.s32.totalorder %s29, 1
    %p236 = por %p234, %p235
    %p237 = scmp.ne.s32.totalorder %s228, %s229
    %p238 = scmp.eq.s32.totalorder %s29, 0
    %p239 = por %p237, %p238
    %p240 = scmp.ne.s32.totalorder %s228, %s229
    %p241 = scmp.eq.s32.totalorder %s30, 1
    %p242 = por %p240, %p241
    %p244 = scmp.ne.s32.totalorder %s229, %s243
    %p245 = scmp.eq.s32.totalorder %s30, 0
    %p246 = por %p244, %p245
    %s248 = sadd.s32 %s247, 1
    %p251 = scmp.eq.s32.totalorder %s24, 1
    %p252 = scmp.ne.s32.totalorder %s247, %s249
    %p253 = scmp.eq.s32.totalorder %s24, 0
    %p254 = por %p252, %p253
    %p255 = scmp.ne.s32.totalorder %s247, %s249
    %p256 = scmp.eq.s32.totalorder %s29, 1
    %p257 = por %p255, %p256
    %p258 = scmp.ne.s32.totalorder %s249, %s250
    %p259 = scmp.eq.s32.totalorder %s29, 0
    %p260 = por %p258, %p259
    %p261 = scmp.ne.s32.totalorder %s249, %s250
    %p262 = scmp.eq.s32.totalorder %s30, 1
    %p263 = por %p261, %p262
    %p265 = scmp.ne.s32.totalorder %s250, %s264
    %p266 = scmp.eq.s32.totalorder %s30, 0
    %p267 = por %p265, %p266
    %s269 = sadd.s32 %s268, 1
    %p272 = scmp.eq.s32.totalorder %s24, 1
    %p273 = scmp.ne.s32.totalorder %s268, %s270
    %p274 = scmp.eq.s32.totalorder %s24, 0
    %p275 = por %p273, %p274
    %p276 = scmp.ne.s32.totalorder %s268, %s270
    %p277 = scmp.eq.s32.totalorder %s29, 1
    %p278 = por %p276, %p277
    %p279 = scmp.ne.s32.totalorder %s270, %s271
    %p280 = scmp.eq.s32.totalorder %s29, 0
    %p281 = por %p279, %p280
    %p282 = scmp.ne.s32.totalorder %s270, %s271
    %p283 = scmp.eq.s32.totalorder %s30, 1
    %p284 = por %p282, %p283
    %p286 = scmp.ne.s32.totalorder %s271, %s285
    %p287 = scmp.eq.s32.totalorder %s30, 0
    %p288 = por %p286, %p287
    %s290 = sadd.s32 %s289, 1
    %p293 = scmp.eq.s32.totalorder %s24, 1
    %p294 = scmp.ne.s32.totalorder %s289, %s291
    %p295 = scmp.eq.s32.totalorder %s24, 0
    %p296 = por %p294, %p295
    %p297 = scmp.ne.s32.totalorder %s289, %s291
    %p298 = scmp.eq.s32.totalorder %s29, 1
    %p299 = por %p297, %p298
    %p300 = scmp.ne.s32.totalorder %s291, %s292
    %p301 = scmp.eq.s32.totalorder %s29, 0
    %p302 = por %p300, %p301
    %p303 = scmp.ne.s32.totalorder %s291, %s292
    %p304 = scmp.eq.s32.totalorder %s30, 1
    %p305 = por %p303, %p304
    %p307 = scmp.ne.s32.totalorder %s292, %s306
    %p308 = scmp.eq.s32.totalorder %s30, 0
    %p309 = por %p307, %p308
    %s311 = sadd.s32 %s310, 1
    %p314 = scmp.eq.s32.totalorder %s24, 1
    %p315 = scmp.ne.s32.totalorder %s310, %s312
    %p316 = scmp.eq.s32.totalorder %s24, 0
    %p317 = por %p315, %p316
    %p318 = scmp.ne.s32.totalorder %s310, %s312
    %p319 = scmp.eq.s32.totalorder %s29, 1
    %p320 = por %p318, %p319
    %p321 = scmp.ne.s32.totalorder %s312, %s313
    %p322 = scmp.eq.s32.totalorder %s29, 0
    %p323 = por %p321, %p322
    %p324 = scmp.ne.s32.totalorder %s312, %s313
    %p325 = scmp.eq.s32.totalorder %s30, 1
    %p326 = por %p324, %p325
    %p328 = scmp.ne.s32.totalorder %s313, %s327
    %p329 = scmp.eq.s32.totalorder %s30, 0
    %p330 = por %p328, %p329
    %s332 = sadd.s32 %s331, 1
    %p335 = scmp.eq.s32.totalorder %s24, 1
    %p336 = scmp.ne.s32.totalorder %s331, %s333
    %p337 = scmp.eq.s32.totalorder %s24, 0
    %p338 = por %p336, %p337
    %p339 = scmp.ne.s32.totalorder %s331, %s333
    %p340 = scmp.eq.s32.totalorder %s29, 1
    %p341 = por %p339, %p340
    %p342 = scmp.ne.s32.totalorder %s333, %s334
    %p343 = scmp.eq.s32.totalorder %s29, 0
    %p344 = por %p342, %p343
    %p345 = scmp.ne.s32.totalorder %s333, %s334
    %p346 = scmp.eq.s32.totalorder %s30, 1
    %p347 = por %p345, %p346
    %p349 = scmp.ne.s32.totalorder %s334, %s348
    %p350 = scmp.eq.s32.totalorder %s30, 0
    %p351 = por %p349, %p350
    %s353 = sadd.s32 %s352, 1
    %p356 = scmp.eq.s32.totalorder %s24, 1
    %p357 = scmp.ne.s32.totalorder %s352, %s354
    %p358 = scmp.eq.s32.totalorder %s24, 0
    %p359 = por %p357, %p358
    %p360 = scmp.ne.s32.totalorder %s352, %s354
    %p361 = scmp.eq.s32.totalorder %s29, 1
    %p362 = por %p360, %p361
    %p363 = scmp.ne.s32.totalorder %s354, %s355
    %p364 = scmp.eq.s32.totalorder %s29, 0
    %p365 = por %p363, %p364
    %p366 = scmp.ne.s32.totalorder %s354, %s355
    %p367 = scmp.eq.s32.totalorder %s30, 1
    %p368 = por %p366, %p367
    %p370 = scmp.ne.s32.totalorder %s355, %s369
    %p371 = scmp.eq.s32.totalorder %s30, 0
    %p372 = por %p370, %p371
    %s373 = ssub.s32 %s24, %s31
    %p374 = scmp.eq.s32.totalorder %s373, 0
    %s376 = sadd.s32 %s375, 1
    %s377 = scalar_select %p374, %s375, %s376
    %p380 = pneg %p374
    %p381 = scmp.eq.s32.totalorder %s24, 1
    %p382 = por %p380, %p381
    %p383 = scmp.ne.s32.totalorder %s375, %s378
    %p384 = scmp.eq.s32.totalorder %s24, 0
    %p385 = por %p383, %p384
    %p386 = scmp.ne.s32.totalorder %s375, %s378
    %p387 = scmp.eq.s32.totalorder %s29, 1
    %p388 = por %p386, %p387
    %p389 = scmp.ne.s32.totalorder %s378, %s379
    %p390 = scmp.eq.s32.totalorder %s29, 0
    %p391 = por %p389, %p390
    %p392 = scmp.ne.s32.totalorder %s378, %s379
    %p393 = scmp.eq.s32.totalorder %s30, 1
    %p394 = por %p392, %p393
    %p396 = scmp.ne.s32.totalorder %s379, %s395
    %p397 = scmp.eq.s32.totalorder %s30, 0
    %p398 = por %p396, %p397
    %p399 = scmp.le.s32.totalorder 1, %s24
    %p400 = scmp.lt.s32.totalorder %s24, 3
    %p401 = pnand %p399, %p400
    %p402 = pneg %p401
    // Predicated region
    $region9: #{vsb_forward.1} parent=5 // pred_check
      _
    $region10: #{vsb_forward.1} parent=5 // pred_check_branch
      %404 = sbr.rel (%p401) target = $region12
    $region11: #{vsb_forward.1} parent=5 // pred_region
      %s405 = ssub.s32 %s24, 1
      // Predicated region
      $region13: #{vsb_forward.1} parent=11 // pred_check
        %p406 = pneg %p71
      $region14: #{vsb_forward.1} parent=11 // pred_check_branch
        %408 = sbr.rel (%p406) target = $region16
      $region15: #{vsb_forward.1} parent=11 // pred_region
        _
      $region16: #{vsb_forward.1} parent=11 // pred_fallthru
        _
      // Predicated region
      $region17: #{vsb_forward.1} parent=11 // pred_check
        %p409 = pneg %p92
      $region18: #{vsb_forward.1} parent=11 // pred_check_branch
        %411 = sbr.rel (%p409) target = $region20
      $region19: #{vsb_forward.1} parent=11 // pred_region
        _
      $region20: #{vsb_forward.1} parent=11 // pred_fallthru
        _
      // Predicated region
      $region21: #{vsb_forward.1} parent=11 // pred_check
        %p412 = pneg %p113
      $region22: #{vsb_forward.1} parent=11 // pred_check_branch
        %414 = sbr.rel (%p412) target = $region24
      $region23: #{vsb_forward.1} parent=11 // pred_region
        _
      $region24: #{vsb_forward.1} parent=11 // pred_fallthru
        _
      // Predicated region
      $region25: #{vsb_forward.1} parent=11 // pred_check
        %p415 = pneg %p134
      $region26: #{vsb_forward.1} parent=11 // pred_check_branch
        %417 = sbr.rel (%p415) target = $region28
      $region27: #{vsb_forward.1} parent=11 // pred_region
        _
      $region28: #{vsb_forward.1} parent=11 // pred_fallthru
        _
      // Predicated region
      $region29: #{vsb_forward.1} parent=11 // pred_check
        %p418 = pneg %p155
      $region30: #{vsb_forward.1} parent=11 // pred_check_branch
        %420 = sbr.rel (%p418) target = $region32
      $region31: #{vsb_forward.1} parent=11 // pred_region
        _
      $region32: #{vsb_forward.1} parent=11 // pred_fallthru
        _
      // Predicated region
      $region33: #{vsb_forward.1} parent=11 // pred_check
        %p421 = pneg %p176
      $region34: #{vsb_forward.1} parent=11 // pred_check_branch
        %423 = sbr.rel (%p421) target = $region36
      $region35: #{vsb_forward.1} parent=11 // pred_region
        _
      $region36: #{vsb_forward.1} parent=11 // pred_fallthru
        _
      // Predicated region
      $region37: #{vsb_forward.1} parent=11 // pred_check
        %p424 = pneg %p197
      $region38: #{vsb_forward.1} parent=11 // pred_check_branch
        %426 = sbr.rel (%p424) target = $region40
      $region39: #{vsb_forward.1} parent=11 // pred_region
        _
      $region40: #{vsb_forward.1} parent=11 // pred_fallthru
        _
      // Predicated region
      $region41: #{vsb_forward.1} parent=11 // pred_check
        %p427 = pneg %p218
      $region42: #{vsb_forward.1} parent=11 // pred_check_branch
        %429 = sbr.rel (%p427) target = $region44
      $region43: #{vsb_forward.1} parent=11 // pred_region
        _
      $region44: #{vsb_forward.1} parent=11 // pred_fallthru
        _
      // Predicated region
      $region45: #{vsb_forward.1} parent=11 // pred_check
        %p430 = pneg %p239
      $region46: #{vsb_forward.1} parent=11 // pred_check_branch
        %432 = sbr.rel (%p430) target = $region48
      $region47: #{vsb_forward.1} parent=11 // pred_region
        _
      $region48: #{vsb_forward.1} parent=11 // pred_fallthru
        _
      // Predicated region
      $region49: #{vsb_forward.1} parent=11 // pred_check
        %p433 = pneg %p260
      $region50: #{vsb_forward.1} parent=11 // pred_check_branch
        %435 = sbr.rel (%p433) target = $region52
      $region51: #{vsb_forward.1} parent=11 // pred_region
        _
      $region52: #{vsb_forward.1} parent=11 // pred_fallthru
        _
      // Predicated region
      $region53: #{vsb_forward.1} parent=11 // pred_check
        %p436 = pneg %p281
      $region54: #{vsb_forward.1} parent=11 // pred_check_branch
        %438 = sbr.rel (%p436) target = $region56
      $region55: #{vsb_forward.1} parent=11 // pred_region
        _
      $region56: #{vsb_forward.1} parent=11 // pred_fallthru
        _
      // Predicated region
      $region57: #{vsb_forward.1} parent=11 // pred_check
        %p439 = pneg %p302
      $region58: #{vsb_forward.1} parent=11 // pred_check_branch
        %441 = sbr.rel (%p439) target = $region60
      $region59: #{vsb_forward.1} parent=11 // pred_region
        _
      $region60: #{vsb_forward.1} parent=11 // pred_fallthru
        _
      // Predicated region
      $region61: #{vsb_forward.1} parent=11 // pred_check
        %p442 = pneg %p323
      $region62: #{vsb_forward.1} parent=11 // pred_check_branch
        %444 = sbr.rel (%p442) target = $region64
      $region63: #{vsb_forward.1} parent=11 // pred_region
        _
      $region64: #{vsb_forward.1} parent=11 // pred_fallthru
        _
      // Predicated region
      $region65: #{vsb_forward.1} parent=11 // pred_check
        %p445 = pneg %p344
      $region66: #{vsb_forward.1} parent=11 // pred_check_branch
        %447 = sbr.rel (%p445) target = $region68
      $region67: #{vsb_forward.1} parent=11 // pred_region
        _
      $region68: #{vsb_forward.1} parent=11 // pred_fallthru
        _
      // Predicated region
      $region69: #{vsb_forward.1} parent=11 // pred_check
        %p448 = pneg %p365
      $region70: #{vsb_forward.1} parent=11 // pred_check_branch
        %450 = sbr.rel (%p448) target = $region72
      $region71: #{vsb_forward.1} parent=11 // pred_region
        _
      $region72: #{vsb_forward.1} parent=11 // pred_fallthru
        _
    $region12: #{vsb_forward.1} parent=5 // pred_fallthru
      _
    %p451 = scmp.lt.s32.totalorder %s24, 2
    // Predicated region
    $region73: #{vsb_forward.1} parent=5 // pred_check
      %p452 = pneg %p451
    $region74: #{vsb_forward.1} parent=5 // pred_check_branch
      %454 = sbr.rel (%p452) target = $region76
    $region75: #{vsb_forward.1} parent=5 // pred_region
      // Predicated region
      $region77: #{vsb_forward.1} parent=75 // pred_check
        %p455 = pneg %p44
      $region78: #{vsb_forward.1} parent=75 // pred_check_branch
        %457 = sbr.rel (%p455) target = $region80
      $region79: #{vsb_forward.1} parent=75 // pred_region
        %p458 = scmp.lt.s32.totalorder %s24, 1
        %s459 = scalar_select %p458, %s24, 1
        %s460 = smul.addr %s459, 20
        %s461 = smul.addr %s460, 8
        %s462 = scalar_lea.vmem %s0, %s461
      $region80: #{vsb_forward.1} parent=75 // pred_fallthru
        _
    $region76: #{vsb_forward.1} parent=5 // pred_fallthru
      _
    %p463 = scmp.le.s32.totalorder 1, %s24
    %p464 = scmp.lt.s32.totalorder %s24, 3
    %p465 = pnand %p463, %p464
    %p466 = pneg %p465
    // Predicated region
    $region81: #{vsb_forward.1} parent=5 // pred_check
      _
    $region82: #{vsb_forward.1} parent=5 // pred_check_branch
      %468 = sbr.rel (%p465) target = $region84
    $region83: #{vsb_forward.1} parent=5 // pred_region
      %s469 = ssub.s32 %s24, 1
      %p470 = scmp.lt.s32.totalorder %s29, 1
      %s471 = scalar_select %p470, %s29, 1
      %s472 = smul.addr %s471, 20
      %s473 = smul.addr %s472, 8
      %s474 = scalar_lea.vmem %s0, %s473
      %p475 = pneg %p50
      %p476 = pneg %p47
      %p477 = pneg %p71
      %p478 = pneg %p68
      %p479 = pneg %p92
      %p480 = pneg %p89
      %p481 = pneg %p113
      %p482 = pneg %p110
      %p483 = pneg %p134
      %p484 = pneg %p131
      %p485 = pneg %p155
      %p486 = pneg %p152
      %p487 = pneg %p176
      %p488 = pneg %p173
      %p489 = pneg %p197
      %p490 = pneg %p194
      %p491 = pneg %p218
      %p492 = pneg %p215
      %p493 = pneg %p239
      %p494 = pneg %p236
      %p495 = pneg %p260
      %p496 = pneg %p257
      %p497 = pneg %p281
      %p498 = pneg %p278
      %p499 = pneg %p302
      %p500 = pneg %p299
      %p501 = pneg %p323
      %p502 = pneg %p320
      %p503 = pneg %p344
      %p504 = pneg %p341
      %p505 = pneg %p365
      %p506 = pneg %p362
      %p507 = pneg %p391
      %p508 = pneg %p388
      %p509 = scmp.lt.s32.totalorder %s29, 1
      %s510 = scalar_select %p509, %s29, 1
      %s511 = scalar_lea.vmem %s16, %s510
      %p512 = scmp.lt.s32.totalorder %s29, 1
      %s513 = scalar_select %p512, %s29, 1
      %s514 = smul.addr %s513, 20
      %s515 = smul.addr %s514, 8
      %s516 = scalar_lea.vmem %s0, %s515
      %p517 = scmp.lt.s32.totalorder %s29, 1
      %s518 = scalar_select %p517, %s29, 1
      %s519 = scalar_lea.vmem %s16, %s518
      %v520 = vld [vmem:[%s1] sm:$0xff]
      %v521 = vld [vmem:[%s1 + $0x8] sm:$0xff]
      %v522 = vld [vmem:[%s1 + $0x10] sm:$0xff]
      %v523 = vld [vmem:[%s1 + $0x18] sm:$0xff]
      %v524 = vld [vmem:[%s1 + $0x20] sm:$0xff]
      %v525 = vld [vmem:[%s1 + $0x28] sm:$0xff]
      %v526 = vld [vmem:[%s1 + $0x30] sm:$0xff]
      %v527 = vld [vmem:[%s1 + $0x38] sm:$0xff]
      %v528 = vld [vmem:[%s516] sm:$0xff]
      %v529 = vld [vmem:[%s516 + $0x8] sm:$0xff]
      %v530 = vld [vmem:[%s516 + $0x10] sm:$0xff]
      %v531 = vld [vmem:[%s516 + $0x18] sm:$0xff]
      %v532 = vld [vmem:[%s516 + $0x20] sm:$0xff]
      %v533 = vld [vmem:[%s516 + $0x28] sm:$0xff]
      %v534 = vld [vmem:[%s516 + $0x30] sm:$0xff]
      %v535 = vld [vmem:[%s516 + $0x38] sm:$0xff]
      %v536 = vld [vmem:[%s516 + $0x40] sm:$0xff]
      %v537 = vld [vmem:[%s516 + $0x48] sm:$0xff]
      %v538 = vld [vmem:[%s516 + $0x50] sm:$0xff]
      %v539 = vld [vmem:[%s516 + $0x58] sm:$0xff]
      %v540 = vld [vmem:[%s516 + $0x60] sm:$0xff]
      %v541 = vld [vmem:[%s516 + $0x68] sm:$0xff]
      %v542 = vld [vmem:[%s516 + $0x70] sm:$0xff]
      %v543 = vld [vmem:[%s516 + $0x78] sm:$0xff]
      %v544 = vld [vmem:[%s516 + $0x80] sm:$0xf]
      %v545 = vld [vmem:[%s516 + $0x88] sm:$0xf]
      %v546 = vld [vmem:[%s516 + $0x90] sm:$0xf]
      %v547 = vld [vmem:[%s516 + $0x98] sm:$0xf]
      %s548 = scalar_lea.vmem %s1, 64
      %v549 = vld [vmem:[%s548] sm:$0xff]
      %v550 = vld [vmem:[%s548 + $0x8] sm:$0xff]
      %v551 = vld [vmem:[%s548 + $0x10] sm:$0xff]
      %v552 = vld [vmem:[%s548 + $0x18] sm:$0xff]
      %v553 = vld [vmem:[%s548 + $0x20] sm:$0xff]
      %v554 = vld [vmem:[%s548 + $0x28] sm:$0xff]
      %v555 = vld [vmem:[%s548 + $0x30] sm:$0xff]
      %v556 = vld [vmem:[%s548 + $0x38] sm:$0xff]
      %577 = vrot.lane.b32.xlu0 %v528, 127
      %v578 = vpop.permute.xlu0 %577
      %579 = vrot.lane.b32.xlu0 %v529, 127
      %v580 = vpop.permute.xlu0 %579
      %581 = vrot.lane.b32.xlu0 %v530, 127
      %v582 = vpop.permute.xlu0 %581
      %583 = vrot.lane.b32.xlu0 %v531, 127
      %v584 = vpop.permute.xlu0 %583
      %585 = vrot.lane.b32.xlu0 %v532, 127
      %v586 = vpop.permute.xlu0 %585
      %587 = vrot.lane.b32.xlu0 %v533, 127
      %v588 = vpop.permute.xlu0 %587
      %589 = vrot.lane.b32.xlu0 %v534, 127
      %v590 = vpop.permute.xlu0 %589
      %591 = vrot.lane.b32.xlu0 %v535, 127
      %v592 = vpop.permute.xlu0 %591
      %593 = vrot.lane.b32.xlu0 %v536, 127
      %v594 = vpop.permute.xlu0 %593
      %595 = vrot.lane.b32.xlu0 %v537, 127
      %v596 = vpop.permute.xlu0 %595
      %597 = vrot.lane.b32.xlu0 %v538, 127
      %v598 = vpop.permute.xlu0 %597
      %599 = vrot.lane.b32.xlu0 %v539, 127
      %v600 = vpop.permute.xlu0 %599
      %601 = vrot.lane.b32.xlu0 %v540, 127
      %v602 = vpop.permute.xlu0 %601
      %603 = vrot.lane.b32.xlu0 %v541, 127
      %v604 = vpop.permute.xlu0 %603
      %605 = vrot.lane.b32.xlu0 %v542, 127
      %v606 = vpop.permute.xlu0 %605
      %607 = vrot.lane.b32.xlu0 %v543, 127
      %v608 = vpop.permute.xlu0 %607
      %609 = vrot.lane.b32.xlu0 %v544, 127
      %v610 = vpop.permute.xlu0 %609
      %611 = vrot.lane.b32.xlu0 %v545, 127
      %v612 = vpop.permute.xlu0 %611
      %613 = vrot.lane.b32.xlu0 %v546, 127
      %v614 = vpop.permute.xlu0 %613
      %615 = vrot.lane.b32.xlu0 %v547, 127
      %v616 = vpop.permute.xlu0 %615
      %vm617 = vcmask 1039360
      %v618 = vsel %vm617, %v578, %v580
      %v619 = vsel %vm617, %v580, %v582
      %v620 = vsel %vm617, %v582, %v584
      %v621 = vsel %vm617, %v586, %v588
      %v622 = vsel %vm617, %v588, %v590
      %v623 = vsel %vm617, %v590, %v592
      %v624 = vsel %vm617, %v594, %v596
      %v625 = vsel %vm617, %v596, %v598
      %v626 = vsel %vm617, %v598, %v600
      %v627 = vsel %vm617, %v602, %v604
      %v628 = vsel %vm617, %v604, %v606
      %v629 = vsel %vm617, %v606, %v608
      %v630 = vsel %vm617, %v610, %v612
      %v631 = vsel %vm617, %v612, %v614
      %v632 = vsel %vm617, %v614, %v616
      %vm649 = vcmask 293888
      %v651 = vsel %vm649, %v549, 0
      %v654 = vsel %vm649, %v550, 0
      %v657 = vsel %vm649, %v551, 0
      %v660 = vsel %vm649, %v552, 0
      %v663 = vsel %vm649, %v553, 0
      %v666 = vsel %vm649, %v554, 0
      %v669 = vsel %vm649, %v555, 0
      %v672 = vsel %vm649, %v556, 0
      %vm674 = vcmask 1043456
      %v675 = vsel %vm674, %v630, 0
      %v677 = vsel %vm674, %v631, 0
      %v679 = vsel %vm674, %v632, 0
      %v681 = vsel %vm674, %v616, 0
      %683 = vmatpush.msra.mxu0 0.0
      %684 = vmatpush.msra.mxu0 0.0
      %685 = vmatpush.msra.mxu0 0.0
      %686 = vmatpush.msra.mxu0 0.0
      %687 = vmatpush.msra.mxu0 0.0
      %688 = vmatpush.msra.mxu0 0.0
      %689 = vmatpush.msra.mxu0 0.0
      %690 = vmatpush.msra.mxu0 0.0
      %691 = vmatpush.msra.mxu0 0.0
      %692 = vmatpush.msra.mxu0 0.0
      %693 = vmatpush.msra.mxu0 0.0
      %694 = vmatpush.msra.mxu0 %v675
      %695 = vmatpush.msra.mxu0 %v627
      %696 = vmatpush.msra.mxu0 %v624
      %697 = vmatpush.msra.mxu0 %v621
      %698 = vmatpush.msra.mxu0 %v618
      %699 = vmatmul.f32.gmra.mxu0 %v651
      %v700 = vpop.f32.mrf.mxu0
      %v701 = vadd.f32 0.0, %v700
      %702 = vmatmul.f32.gmra.mxu0 %v654
      %v703 = vpop.f32.mrf.mxu0
      %v704 = vadd.f32 0.0, %v703
      %705 = vmatmul.f32.gmra.mxu0 %v657
      %v706 = vpop.f32.mrf.mxu0
      %v707 = vadd.f32 0.0, %v706
      %708 = vmatmul.f32.gmra.mxu0 %v660
      %v709 = vpop.f32.mrf.mxu0
      %v710 = vadd.f32 0.0, %v709
      %711 = vmatmul.f32.gmra.mxu0 %v663
      %v712 = vpop.f32.mrf.mxu0
      %v713 = vadd.f32 0.0, %v712
      %714 = vmatmul.f32.gmra.mxu0 %v666
      %v715 = vpop.f32.mrf.mxu0
      %v716 = vadd.f32 0.0, %v715
      %717 = vmatmul.f32.gmra.mxu0 %v669
      %v718 = vpop.f32.mrf.mxu0
      %v719 = vadd.f32 0.0, %v718
      %720 = vmatmul.f32.gmra.mxu0 %v672
      %v721 = vpop.f32.mrf.mxu0
      %v722 = vadd.f32 0.0, %v721
      %723 = vdwg.mxu0
      %724 = vmatpush.msra.mxu0 0.0
      %725 = vmatpush.msra.mxu0 0.0
      %726 = vmatpush.msra.mxu0 0.0
      %727 = vmatpush.msra.mxu0 0.0
      %728 = vmatpush.msra.mxu0 0.0
      %729 = vmatpush.msra.mxu0 0.0
      %730 = vmatpush.msra.mxu0 0.0
      %731 = vmatpush.msra.mxu0 0.0
      %732 = vmatpush.msra.mxu0 0.0
      %733 = vmatpush.msra.mxu0 0.0
      %734 = vmatpush.msra.mxu0 0.0
      %735 = vmatpush.msra.mxu0 %v677
      %736 = vmatpush.msra.mxu0 %v628
      %737 = vmatpush.msra.mxu0 %v625
      %738 = vmatpush.msra.mxu0 %v622
      %739 = vmatpush.msra.mxu0 %v619
      %740 = vmatmul.f32.gmra.mxu0 %v651
      %v741 = vpop.f32.mrf.mxu0
      %v742 = vadd.f32 0.0, %v741
      %743 = vmatmul.f32.gmra.mxu0 %v654
      %v744 = vpop.f32.mrf.mxu0
      %v745 = vadd.f32 0.0, %v744
      %746 = vmatmul.f32.gmra.mxu0 %v657
      %v747 = vpop.f32.mrf.mxu0
      %v748 = vadd.f32 0.0, %v747
      %749 = vmatmul.f32.gmra.mxu0 %v660
      %v750 = vpop.f32.mrf.mxu0
      %v751 = vadd.f32 0.0, %v750
      %752 = vmatmul.f32.gmra.mxu0 %v663
      %v753 = vpop.f32.mrf.mxu0
      %v754 = vadd.f32 0.0, %v753
      %755 = vmatmul.f32.gmra.mxu0 %v666
      %v756 = vpop.f32.mrf.mxu0
      %v757 = vadd.f32 0.0, %v756
      %758 = vmatmul.f32.gmra.mxu0 %v669
      %v759 = vpop.f32.mrf.mxu0
      %v760 = vadd.f32 0.0, %v759
      %761 = vmatmul.f32.gmra.mxu0 %v672
      %v762 = vpop.f32.mrf.mxu0
      %v763 = vadd.f32 0.0, %v762
      %764 = vdwg.mxu0
      %765 = vmatpush.msra.mxu0 0.0
      %766 = vmatpush.msra.mxu0 0.0
      %767 = vmatpush.msra.mxu0 0.0
      %768 = vmatpush.msra.mxu0 0.0
      %769 = vmatpush.msra.mxu0 0.0
      %770 = vmatpush.msra.mxu0 0.0
      %771 = vmatpush.msra.mxu0 0.0
      %772 = vmatpush.msra.mxu0 0.0
      %773 = vmatpush.msra.mxu0 0.0
      %774 = vmatpush.msra.mxu0 0.0
      %775 = vmatpush.msra.mxu0 0.0
      %776 = vmatpush.msra.mxu0 %v679
      %777 = vmatpush.msra.mxu0 %v629
      %778 = vmatpush.msra.mxu0 %v626
      %779 = vmatpush.msra.mxu0 %v623
      %780 = vmatpush.msra.mxu0 %v620
      %781 = vmatmul.f32.gmra.mxu0 %v651
      %v782 = vpop.f32.mrf.mxu0
      %v783 = vadd.f32 0.0, %v782
      %784 = vmatmul.f32.gmra.mxu0 %v654
      %v785 = vpop.f32.mrf.mxu0
      %v786 = vadd.f32 0.0, %v785
      %787 = vmatmul.f32.gmra.mxu0 %v657
      %v788 = vpop.f32.mrf.mxu0
      %v789 = vadd.f32 0.0, %v788
      %790 = vmatmul.f32.gmra.mxu0 %v660
      %v791 = vpop.f32.mrf.mxu0
      %v792 = vadd.f32 0.0, %v791
      %793 = vmatmul.f32.gmra.mxu0 %v663
      %v794 = vpop.f32.mrf.mxu0
      %v795 = vadd.f32 0.0, %v794
      %796 = vmatmul.f32.gmra.mxu0 %v666
      %v797 = vpop.f32.mrf.mxu0
      %v798 = vadd.f32 0.0, %v797
      %799 = vmatmul.f32.gmra.mxu0 %v669
      %v800 = vpop.f32.mrf.mxu0
      %v801 = vadd.f32 0.0, %v800
      %802 = vmatmul.f32.gmra.mxu0 %v672
      %v803 = vpop.f32.mrf.mxu0
      %v804 = vadd.f32 0.0, %v803
      %805 = vdwg.mxu0
      %806 = vmatpush.msra.mxu0 0.0
      %807 = vmatpush.msra.mxu0 0.0
      %808 = vmatpush.msra.mxu0 0.0
      %809 = vmatpush.msra.mxu0 0.0
      %810 = vmatpush.msra.mxu0 0.0
      %811 = vmatpush.msra.mxu0 0.0
      %812 = vmatpush.msra.mxu0 0.0
      %813 = vmatpush.msra.mxu0 0.0
      %814 = vmatpush.msra.mxu0 0.0
      %815 = vmatpush.msra.mxu0 0.0
      %816 = vmatpush.msra.mxu0 0.0
      %817 = vmatpush.msra.mxu0 %v681
      %818 = vmatpush.msra.mxu0 %v608
      %819 = vmatpush.msra.mxu0 %v600
      %820 = vmatpush.msra.mxu0 %v592
      %821 = vmatpush.msra.mxu0 %v584
      %822 = vmatmul.f32.gmra.mxu0 %v651
      %v823 = vpop.f32.mrf.mxu0
      %v824 = vadd.f32 0.0, %v823
      %825 = vmatmul.f32.gmra.mxu0 %v654
      %v826 = vpop.f32.mrf.mxu0
      %v827 = vadd.f32 0.0, %v826
      %828 = vmatmul.f32.gmra.mxu0 %v657
      %v829 = vpop.f32.mrf.mxu0
      %v830 = vadd.f32 0.0, %v829
      %831 = vmatmul.f32.gmra.mxu0 %v660
      %v832 = vpop.f32.mrf.mxu0
      %v833 = vadd.f32 0.0, %v832
      %834 = vmatmul.f32.gmra.mxu0 %v663
      %v835 = vpop.f32.mrf.mxu0
      %v836 = vadd.f32 0.0, %v835
      %837 = vmatmul.f32.gmra.mxu0 %v666
      %v838 = vpop.f32.mrf.mxu0
      %v839 = vadd.f32 0.0, %v838
      %840 = vmatmul.f32.gmra.mxu0 %v669
      %v841 = vpop.f32.mrf.mxu0
      %v842 = vadd.f32 0.0, %v841
      %843 = vmatmul.f32.gmra.mxu0 %v672
      %v844 = vpop.f32.mrf.mxu0
      %v845 = vadd.f32 0.0, %v844
      %846 = vdwg.mxu0
      %v848 = vsel %vm649, %v520, 0
      %v851 = vsel %vm649, %v521, 0
      %v854 = vsel %vm649, %v522, 0
      %v857 = vsel %vm649, %v523, 0
      %v860 = vsel %vm649, %v524, 0
      %v863 = vsel %vm649, %v525, 0
      %v866 = vsel %vm649, %v526, 0
      %v869 = vsel %vm649, %v527, 0
      %v871 = vsel %vm674, %v544, 0
      %v873 = vsel %vm674, %v545, 0
      %v875 = vsel %vm674, %v546, 0
      %v877 = vsel %vm674, %v547, 0
      %879 = vmatpush.msra.mxu0 0.0
      %880 = vmatpush.msra.mxu0 0.0
      %881 = vmatpush.msra.mxu0 0.0
      %882 = vmatpush.msra.mxu0 0.0
      %883 = vmatpush.msra.mxu0 0.0
      %884 = vmatpush.msra.mxu0 0.0
      %885 = vmatpush.msra.mxu0 0.0
      %886 = vmatpush.msra.mxu0 0.0
      %887 = vmatpush.msra.mxu0 0.0
      %888 = vmatpush.msra.mxu0 0.0
      %889 = vmatpush.msra.mxu0 0.0
      %890 = vmatpush.msra.mxu0 %v871
      %891 = vmatpush.msra.mxu0 %v540
      %892 = vmatpush.msra.mxu0 %v536
      %893 = vmatpush.msra.mxu0 %v532
      %894 = vmatpush.msra.mxu0 %v528
      %895 = vmatmul.f32.gmra.mxu0 %v848
      %v896 = vpop.f32.mrf.mxu0
      %v897 = vadd.f32 %v701, %v896
      %898 = vmatmul.f32.gmra.mxu0 %v851
      %v899 = vpop.f32.mrf.mxu0
      %v900 = vadd.f32 %v704, %v899
      %901 = vmatmul.f32.gmra.mxu0 %v854
      %v902 = vpop.f32.mrf.mxu0
      %v903 = vadd.f32 %v707, %v902
      %904 = vmatmul.f32.gmra.mxu0 %v857
      %v905 = vpop.f32.mrf.mxu0
      %v906 = vadd.f32 %v710, %v905
      %907 = vmatmul.f32.gmra.mxu0 %v860
      %v908 = vpop.f32.mrf.mxu0
      %v909 = vadd.f32 %v713, %v908
      %910 = vmatmul.f32.gmra.mxu0 %v863
      %v911 = vpop.f32.mrf.mxu0
      %v912 = vadd.f32 %v716, %v911
      %913 = vmatmul.f32.gmra.mxu0 %v866
      %v914 = vpop.f32.mrf.mxu0
      %v915 = vadd.f32 %v719, %v914
      %916 = vmatmul.f32.gmra.mxu0 %v869
      %v917 = vpop.f32.mrf.mxu0
      %v918 = vadd.f32 %v722, %v917
      %919 = vdwg.mxu0
      %920 = vmatpush.msra.mxu0 0.0
      %921 = vmatpush.msra.mxu0 0.0
      %922 = vmatpush.msra.mxu0 0.0
      %923 = vmatpush.msra.mxu0 0.0
      %924 = vmatpush.msra.mxu0 0.0
      %925 = vmatpush.msra.mxu0 0.0
      %926 = vmatpush.msra.mxu0 0.0
      %927 = vmatpush.msra.mxu0 0.0
      %928 = vmatpush.msra.mxu0 0.0
      %929 = vmatpush.msra.mxu0 0.0
      %930 = vmatpush.msra.mxu0 0.0
      %931 = vmatpush.msra.mxu0 %v873
      %932 = vmatpush.msra.mxu0 %v541
      %933 = vmatpush.msra.mxu0 %v537
      %934 = vmatpush.msra.mxu0 %v533
      %935 = vmatpush.msra.mxu0 %v529
      %936 = vmatmul.f32.gmra.mxu0 %v848
      %v937 = vpop.f32.mrf.mxu0
      %v938 = vadd.f32 %v742, %v937
      %939 = vmatmul.f32.gmra.mxu0 %v851
      %v940 = vpop.f32.mrf.mxu0
      %v941 = vadd.f32 %v745, %v940
      %942 = vmatmul.f32.gmra.mxu0 %v854
      %v943 = vpop.f32.mrf.mxu0
      %v944 = vadd.f32 %v748, %v943
      %945 = vmatmul.f32.gmra.mxu0 %v857
      %v946 = vpop.f32.mrf.mxu0
      %v947 = vadd.f32 %v751, %v946
      %948 = vmatmul.f32.gmra.mxu0 %v860
      %v949 = vpop.f32.mrf.mxu0
      %v950 = vadd.f32 %v754, %v949
      %951 = vmatmul.f32.gmra.mxu0 %v863
      %v952 = vpop.f32.mrf.mxu0
      %v953 = vadd.f32 %v757, %v952
      %954 = vmatmul.f32.gmra.mxu0 %v866
      %v955 = vpop.f32.mrf.mxu0
      %v956 = vadd.f32 %v760, %v955
      %957 = vmatmul.f32.gmra.mxu0 %v869
      %v958 = vpop.f32.mrf.mxu0
      %v959 = vadd.f32 %v763, %v958
      %960 = vdwg.mxu0
      %961 = vmatpush.msra.mxu0 0.0
      %962 = vmatpush.msra.mxu0 0.0
      %963 = vmatpush.msra.mxu0 0.0
      %964 = vmatpush.msra.mxu0 0.0
      %965 = vmatpush.msra.mxu0 0.0
      %966 = vmatpush.msra.mxu0 0.0
      %967 = vmatpush.msra.mxu0 0.0
      %968 = vmatpush.msra.mxu0 0.0
      %969 = vmatpush.msra.mxu0 0.0
      %970 = vmatpush.msra.mxu0 0.0
      %971 = vmatpush.msra.mxu0 0.0
      %972 = vmatpush.msra.mxu0 %v875
      %973 = vmatpush.msra.mxu0 %v542
      %974 = vmatpush.msra.mxu0 %v538
      %975 = vmatpush.msra.mxu0 %v534
      %976 = vmatpush.msra.mxu0 %v530
      %977 = vmatmul.f32.gmra.mxu0 %v848
      %v978 = vpop.f32.mrf.mxu0
      %v979 = vadd.f32 %v783, %v978
      %980 = vmatmul.f32.gmra.mxu0 %v851
      %v981 = vpop.f32.mrf.mxu0
      %v982 = vadd.f32 %v786, %v981
      %983 = vmatmul.f32.gmra.mxu0 %v854
      %v984 = vpop.f32.mrf.mxu0
      %v985 = vadd.f32 %v789, %v984
      %986 = vmatmul.f32.gmra.mxu0 %v857
      %v987 = vpop.f32.mrf.mxu0
      %v988 = vadd.f32 %v792, %v987
      %989 = vmatmul.f32.gmra.mxu0 %v860
      %v990 = vpop.f32.mrf.mxu0
      %v991 = vadd.f32 %v795, %v990
      %992 = vmatmul.f32.gmra.mxu0 %v863
      %v993 = vpop.f32.mrf.mxu0
      %v994 = vadd.f32 %v798, %v993
      %995 = vmatmul.f32.gmra.mxu0 %v866
      %v996 = vpop.f32.mrf.mxu0
      %v997 = vadd.f32 %v801, %v996
      %998 = vmatmul.f32.gmra.mxu0 %v869
      %v999 = vpop.f32.mrf.mxu0
      %v1000 = vadd.f32 %v804, %v999
      %1001 = vdwg.mxu0
      %1002 = vmatpush.msra.mxu0 0.0
      %1003 = vmatpush.msra.mxu0 0.0
      %1004 = vmatpush.msra.mxu0 0.0
      %1005 = vmatpush.msra.mxu0 0.0
      %1006 = vmatpush.msra.mxu0 0.0
      %1007 = vmatpush.msra.mxu0 0.0
      %1008 = vmatpush.msra.mxu0 0.0
      %1009 = vmatpush.msra.mxu0 0.0
      %1010 = vmatpush.msra.mxu0 0.0
      %1011 = vmatpush.msra.mxu0 0.0
      %1012 = vmatpush.msra.mxu0 0.0
      %1013 = vmatpush.msra.mxu0 %v877
      %1014 = vmatpush.msra.mxu0 %v543
      %1015 = vmatpush.msra.mxu0 %v539
      %1016 = vmatpush.msra.mxu0 %v535
      %1017 = vmatpush.msra.mxu0 %v531
      %1018 = vmatmul.f32.gmra.mxu0 %v848
      %v1019 = vpop.f32.mrf.mxu0
      %v1020 = vadd.f32 %v824, %v1019
      %1021 = vmatmul.f32.gmra.mxu0 %v851
      %v1022 = vpop.f32.mrf.mxu0
      %v1023 = vadd.f32 %v827, %v1022
      %1024 = vmatmul.f32.gmra.mxu0 %v854
      %v1025 = vpop.f32.mrf.mxu0
      %v1026 = vadd.f32 %v830, %v1025
      %1027 = vmatmul.f32.gmra.mxu0 %v857
      %v1028 = vpop.f32.mrf.mxu0
      %v1029 = vadd.f32 %v833, %v1028
      %1030 = vmatmul.f32.gmra.mxu0 %v860
      %v1031 = vpop.f32.mrf.mxu0
      %v1032 = vadd.f32 %v836, %v1031
      %1033 = vmatmul.f32.gmra.mxu0 %v863
      %v1034 = vpop.f32.mrf.mxu0
      %v1035 = vadd.f32 %v839, %v1034
      %1036 = vmatmul.f32.gmra.mxu0 %v866
      %v1037 = vpop.f32.mrf.mxu0
      %v1038 = vadd.f32 %v842, %v1037
      %1039 = vmatmul.f32.gmra.mxu0 %v869
      %v1040 = vpop.f32.mrf.mxu0
      %v1041 = vadd.f32 %v845, %v1040
      %1042 = vdwg.mxu0
      %s1043 = scalar_lea.vmem %s1, 128
      %v1044 = vld [vmem:[%s1043] sm:$0xff]
      %v1045 = vld [vmem:[%s1043 + $0x8] sm:$0xff]
      %v1046 = vld [vmem:[%s1043 + $0x10] sm:$0xff]
      %v1047 = vld [vmem:[%s1043 + $0x18] sm:$0xff]
      %v1048 = vld [vmem:[%s1043 + $0x20] sm:$0xff]
      %v1049 = vld [vmem:[%s1043 + $0x28] sm:$0xff]
      %v1050 = vld [vmem:[%s1043 + $0x30] sm:$0xff]
      %v1051 = vld [vmem:[%s1043 + $0x38] sm:$0xff]
      %1052 = vrot.lane.b32.xlu0 %v528, 126
      %v1053 = vpop.permute.xlu0 %1052
      %1054 = vrot.lane.b32.xlu0 %v529, 126
      %v1055 = vpop.permute.xlu0 %1054
      %1056 = vrot.lane.b32.xlu0 %v530, 126
      %v1057 = vpop.permute.xlu0 %1056
      %1058 = vrot.lane.b32.xlu0 %v531, 126
      %v1059 = vpop.permute.xlu0 %1058
      %1060 = vrot.lane.b32.xlu0 %v532, 126
      %v1061 = vpop.permute.xlu0 %1060
      %1062 = vrot.lane.b32.xlu0 %v533, 126
      %v1063 = vpop.permute.xlu0 %1062
      %1064 = vrot.lane.b32.xlu0 %v534, 126
      %v1065 = vpop.permute.xlu0 %1064
      %1066 = vrot.lane.b32.xlu0 %v535, 126
      %v1067 = vpop.permute.xlu0 %1066
      %1068 = vrot.lane.b32.xlu0 %v536, 126
      %v1069 = vpop.permute.xlu0 %1068
      %1070 = vrot.lane.b32.xlu0 %v537, 126
      %v1071 = vpop.permute.xlu0 %1070
      %1072 = vrot.lane.b32.xlu0 %v538, 126
      %v1073 = vpop.permute.xlu0 %1072
      %1074 = vrot.lane.b32.xlu0 %v539, 126
      %v1075 = vpop.permute.xlu0 %1074
      %1076 = vrot.lane.b32.xlu0 %v540, 126
      %v1077 = vpop.permute.xlu0 %1076
      %1078 = vrot.lane.b32.xlu0 %v541, 126
      %v1079 = vpop.permute.xlu0 %1078
      %1080 = vrot.lane.b32.xlu0 %v542, 126
      %v1081 = vpop.permute.xlu0 %1080
      %1082 = vrot.lane.b32.xlu0 %v543, 126
      %v1083 = vpop.permute.xlu0 %1082
      %1084 = vrot.lane.b32.xlu0 %v544, 126
      %v1085 = vpop.permute.xlu0 %1084
      %1086 = vrot.lane.b32.xlu0 %v545, 126
      %v1087 = vpop.permute.xlu0 %1086
      %1088 = vrot.lane.b32.xlu0 %v546, 126
      %v1089 = vpop.permute.xlu0 %1088
      %1090 = vrot.lane.b32.xlu0 %v547, 126
      %v1091 = vpop.permute.xlu0 %1090
      %vm1092 = vcmask 1031168
      %v1093 = vsel %vm1092, %v1053, %v1055
      %v1094 = vsel %vm1092, %v1055, %v1057
      %v1095 = vsel %vm1092, %v1057, %v1059
      %v1096 = vsel %vm1092, %v1061, %v1063
      %v1097 = vsel %vm1092, %v1063, %v1065
      %v1098 = vsel %vm1092, %v1065, %v1067
      %v1099 = vsel %vm1092, %v1069, %v1071
      %v1100 = vsel %vm1092, %v1071, %v1073
      %v1101 = vsel %vm1092, %v1073, %v1075
      %v1102 = vsel %vm1092, %v1077, %v1079
      %v1103 = vsel %vm1092, %v1079, %v1081
      %v1104 = vsel %vm1092, %v1081, %v1083
      %v1105 = vsel %vm1092, %v1085, %v1087
      %v1106 = vsel %vm1092, %v1087, %v1089
      %v1107 = vsel %vm1092, %v1089, %v1091
      %v1125 = vsel %vm649, %v1044, 0
      %v1128 = vsel %vm649, %v1045, 0
      %v1131 = vsel %vm649, %v1046, 0
      %v1134 = vsel %vm649, %v1047, 0
      %v1137 = vsel %vm649, %v1048, 0
      %v1140 = vsel %vm649, %v1049, 0
      %v1143 = vsel %vm649, %v1050, 0
      %v1146 = vsel %vm649, %v1051, 0
      %v1148 = vsel %vm674, %v1105, 0
      %v1150 = vsel %vm674, %v1106, 0
      %v1152 = vsel %vm674, %v1107, 0
      %v1154 = vsel %vm674, %v1091, 0
      %1156 = vmatpush.msra.mxu0 0.0
      %1157 = vmatpush.msra.mxu0 0.0
      %1158 = vmatpush.msra.mxu0 0.0
      %1159 = vmatpush.msra.mxu0 0.0
      %1160 = vmatpush.msra.mxu0 0.0
      %1161 = vmatpush.msra.mxu0 0.0
      %1162 = vmatpush.msra.mxu0 0.0
      %1163 = vmatpush.msra.mxu0 0.0
      %1164 = vmatpush.msra.mxu0 0.0
      %1165 = vmatpush.msra.mxu0 0.0
      %1166 = vmatpush.msra.mxu0 0.0
      %1167 = vmatpush.msra.mxu0 %v1148
      %1168 = vmatpush.msra.mxu0 %v1102
      %1169 = vmatpush.msra.mxu0 %v1099
      %1170 = vmatpush.msra.mxu0 %v1096
      %1171 = vmatpush.msra.mxu0 %v1093
      %1172 = vmatmul.f32.gmra.mxu0 %v1125
      %v1173 = vpop.f32.mrf.mxu0
      %v1174 = vadd.f32 0.0, %v1173
      %1175 = vmatmul.f32.gmra.mxu0 %v1128
      %v1176 = vpop.f32.mrf.mxu0
      %v1177 = vadd.f32 0.0, %v1176
      %1178 = vmatmul.f32.gmra.mxu0 %v1131
      %v1179 = vpop.f32.mrf.mxu0
      %v1180 = vadd.f32 0.0, %v1179
      %1181 = vmatmul.f32.gmra.mxu0 %v1134
      %v1182 = vpop.f32.mrf.mxu0
      %v1183 = vadd.f32 0.0, %v1182
      %1184 = vmatmul.f32.gmra.mxu0 %v1137
      %v1185 = vpop.f32.mrf.mxu0
      %v1186 = vadd.f32 0.0, %v1185
      %1187 = vmatmul.f32.gmra.mxu0 %v1140
      %v1188 = vpop.f32.mrf.mxu0
      %v1189 = vadd.f32 0.0, %v1188
      %1190 = vmatmul.f32.gmra.mxu0 %v1143
      %v1191 = vpop.f32.mrf.mxu0
      %v1192 = vadd.f32 0.0, %v1191
      %1193 = vmatmul.f32.gmra.mxu0 %v1146
      %v1194 = vpop.f32.mrf.mxu0
      %v1195 = vadd.f32 0.0, %v1194
      %1196 = vdwg.mxu0
      %1197 = vmatpush.msra.mxu0 0.0
      %1198 = vmatpush.msra.mxu0 0.0
      %1199 = vmatpush.msra.mxu0 0.0
      %1200 = vmatpush.msra.mxu0 0.0
      %1201 = vmatpush.msra.mxu0 0.0
      %1202 = vmatpush.msra.mxu0 0.0
      %1203 = vmatpush.msra.mxu0 0.0
      %1204 = vmatpush.msra.mxu0 0.0
      %1205 = vmatpush.msra.mxu0 0.0
      %1206 = vmatpush.msra.mxu0 0.0
      %1207 = vmatpush.msra.mxu0 0.0
      %1208 = vmatpush.msra.mxu0 %v1150
      %1209 = vmatpush.msra.mxu0 %v1103
      %1210 = vmatpush.msra.mxu0 %v1100
      %1211 = vmatpush.msra.mxu0 %v1097
      %1212 = vmatpush.msra.mxu0 %v1094
      %1213 = vmatmul.f32.gmra.mxu0 %v1125
      %v1214 = vpop.f32.mrf.mxu0
      %v1215 = vadd.f32 0.0, %v1214
      %1216 = vmatmul.f32.gmra.mxu0 %v1128
      %v1217 = vpop.f32.mrf.mxu0
      %v1218 = vadd.f32 0.0, %v1217
      %1219 = vmatmul.f32.gmra.mxu0 %v1131
      %v1220 = vpop.f32.mrf.mxu0
      %v1221 = vadd.f32 0.0, %v1220
      %1222 = vmatmul.f32.gmra.mxu0 %v1134
      %v1223 = vpop.f32.mrf.mxu0
      %v1224 = vadd.f32 0.0, %v1223
      %1225 = vmatmul.f32.gmra.mxu0 %v1137
      %v1226 = vpop.f32.mrf.mxu0
      %v1227 = vadd.f32 0.0, %v1226
      %1228 = vmatmul.f32.gmra.mxu0 %v1140
      %v1229 = vpop.f32.mrf.mxu0
      %v1230 = vadd.f32 0.0, %v1229
      %1231 = vmatmul.f32.gmra.mxu0 %v1143
      %v1232 = vpop.f32.mrf.mxu0
      %v1233 = vadd.f32 0.0, %v1232
      %1234 = vmatmul.f32.gmra.mxu0 %v1146
      %v1235 = vpop.f32.mrf.mxu0
      %v1236 = vadd.f32 0.0, %v1235
      %1237 = vdwg.mxu0
      %1238 = vmatpush.msra.mxu0 0.0
      %1239 = vmatpush.msra.mxu0 0.0
      %1240 = vmatpush.msra.mxu0 0.0
      %1241 = vmatpush.msra.mxu0 0.0
      %1242 = vmatpush.msra.mxu0 0.0
      %1243 = vmatpush.msra.mxu0 0.0
      %1244 = vmatpush.msra.mxu0 0.0
      %1245 = vmatpush.msra.mxu0 0.0
      %1246 = vmatpush.msra.mxu0 0.0
      %1247 = vmatpush.msra.mxu0 0.0
      %1248 = vmatpush.msra.mxu0 0.0
      %1249 = vmatpush.msra.mxu0 %v1152
      %1250 = vmatpush.msra.mxu0 %v1104
      %1251 = vmatpush.msra.mxu0 %v1101
      %1252 = vmatpush.msra.mxu0 %v1098
      %1253 = vmatpush.msra.mxu0 %v1095
      %1254 = vmatmul.f32.gmra.mxu0 %v1125
      %v1255 = vpop.f32.mrf.mxu0
      %v1256 = vadd.f32 0.0, %v1255
      %1257 = vmatmul.f32.gmra.mxu0 %v1128
      %v1258 = vpop.f32.mrf.mxu0
      %v1259 = vadd.f32 0.0, %v1258
      %1260 = vmatmul.f32.gmra.mxu0 %v1131
      %v1261 = vpop.f32.mrf.mxu0
      %v1262 = vadd.f32 0.0, %v1261
      %1263 = vmatmul.f32.gmra.mxu0 %v1134
      %v1264 = vpop.f32.mrf.mxu0
      %v1265 = vadd.f32 0.0, %v1264
      %1266 = vmatmul.f32.gmra.mxu0 %v1137
      %v1267 = vpop.f32.mrf.mxu0
      %v1268 = vadd.f32 0.0, %v1267
      %1269 = vmatmul.f32.gmra.mxu0 %v1140
      %v1270 = vpop.f32.mrf.mxu0
      %v1271 = vadd.f32 0.0, %v1270
      %1272 = vmatmul.f32.gmra.mxu0 %v1143
      %v1273 = vpop.f32.mrf.mxu0
      %v1274 = vadd.f32 0.0, %v1273
      %1275 = vmatmul.f32.gmra.mxu0 %v1146
      %v1276 = vpop.f32.mrf.mxu0
      %v1277 = vadd.f32 0.0, %v1276
      %1278 = vdwg.mxu0
      %1279 = vmatpush.msra.mxu0 0.0
      %1280 = vmatpush.msra.mxu0 0.0
      %1281 = vmatpush.msra.mxu0 0.0
      %1282 = vmatpush.msra.mxu0 0.0
      %1283 = vmatpush.msra.mxu0 0.0
      %1284 = vmatpush.msra.mxu0 0.0
      %1285 = vmatpush.msra.mxu0 0.0
      %1286 = vmatpush.msra.mxu0 0.0
      %1287 = vmatpush.msra.mxu0 0.0
      %1288 = vmatpush.msra.mxu0 0.0
      %1289 = vmatpush.msra.mxu0 0.0
      %1290 = vmatpush.msra.mxu0 %v1154
      %1291 = vmatpush.msra.mxu0 %v1083
      %1292 = vmatpush.msra.mxu0 %v1075
      %1293 = vmatpush.msra.mxu0 %v1067
      %1294 = vmatpush.msra.mxu0 %v1059
      %1295 = vmatmul.f32.gmra.mxu0 %v1125
      %v1296 = vpop.f32.mrf.mxu0
      %v1297 = vadd.f32 0.0, %v1296
      %1298 = vmatmul.f32.gmra.mxu0 %v1128
      %v1299 = vpop.f32.mrf.mxu0
      %v1300 = vadd.f32 0.0, %v1299
      %1301 = vmatmul.f32.gmra.mxu0 %v1131
      %v1302 = vpop.f32.mrf.mxu0
      %v1303 = vadd.f32 0.0, %v1302
      %1304 = vmatmul.f32.gmra.mxu0 %v1134
      %v1305 = vpop.f32.mrf.mxu0
      %v1306 = vadd.f32 0.0, %v1305
      %1307 = vmatmul.f32.gmra.mxu0 %v1137
      %v1308 = vpop.f32.mrf.mxu0
      %v1309 = vadd.f32 0.0, %v1308
      %1310 = vmatmul.f32.gmra.mxu0 %v1140
      %v1311 = vpop.f32.mrf.mxu0
      %v1312 = vadd.f32 0.0, %v1311
      %1313 = vmatmul.f32.gmra.mxu0 %v1143
      %v1314 = vpop.f32.mrf.mxu0
      %v1315 = vadd.f32 0.0, %v1314
      %1316 = vmatmul.f32.gmra.mxu0 %v1146
      %v1317 = vpop.f32.mrf.mxu0
      %v1318 = vadd.f32 0.0, %v1317
      %1319 = vdwg.mxu0
      %v1320 = vadd.f32 %v897, %v1174
      %v1321 = vadd.f32 %v938, %v1215
      %v1322 = vadd.f32 %v979, %v1256
      %v1323 = vadd.f32 %v1020, %v1297
      %v1324 = vadd.f32 %v900, %v1177
      %v1325 = vadd.f32 %v941, %v1218
      %v1326 = vadd.f32 %v982, %v1259
      %v1327 = vadd.f32 %v1023, %v1300
      %v1328 = vadd.f32 %v903, %v1180
      %v1329 = vadd.f32 %v944, %v1221
      %v1330 = vadd.f32 %v985, %v1262
      %v1331 = vadd.f32 %v1026, %v1303
      %v1332 = vadd.f32 %v906, %v1183
      %v1333 = vadd.f32 %v947, %v1224
      %v1334 = vadd.f32 %v988, %v1265
      %v1335 = vadd.f32 %v1029, %v1306
      %v1336 = vadd.f32 %v909, %v1186
      %v1337 = vadd.f32 %v950, %v1227
      %v1338 = vadd.f32 %v991, %v1268
      %v1339 = vadd.f32 %v1032, %v1309
      %v1340 = vadd.f32 %v912, %v1189
      %v1341 = vadd.f32 %v953, %v1230
      %v1342 = vadd.f32 %v994, %v1271
      %v1343 = vadd.f32 %v1035, %v1312
      %v1344 = vadd.f32 %v915, %v1192
      %v1345 = vadd.f32 %v956, %v1233
      %v1346 = vadd.f32 %v997, %v1274
      %v1347 = vadd.f32 %v1038, %v1315
      %v1348 = vadd.f32 %v918, %v1195
      %v1349 = vadd.f32 %v959, %v1236
      %v1350 = vadd.f32 %v1000, %v1277
      %v1351 = vadd.f32 %v1041, %v1318
      %s1352 = scalar_lea.vmem %s1, 192
      %v1353 = vld [vmem:[%s1352] sm:$0xff]
      %v1354 = vld [vmem:[%s1352 + $0x8] sm:$0xff]
      %v1355 = vld [vmem:[%s1352 + $0x10] sm:$0xff]
      %v1356 = vld [vmem:[%s1352 + $0x18] sm:$0xff]
      %v1357 = vld [vmem:[%s1352 + $0x20] sm:$0xff]
      %v1358 = vld [vmem:[%s1352 + $0x28] sm:$0xff]
      %v1359 = vld [vmem:[%s1352 + $0x30] sm:$0xff]
      %v1360 = vld [vmem:[%s1352 + $0x38] sm:$0xff]
      %1361 = vrot.lane.b32.xlu0 %v528, 125
      %v1362 = vpop.permute.xlu0 %1361
      %1363 = vrot.lane.b32.xlu0 %v529, 125
      %v1364 = vpop.permute.xlu0 %1363
      %1365 = vrot.lane.b32.xlu0 %v530, 125
      %v1366 = vpop.permute.xlu0 %1365
      %1367 = vrot.lane.b32.xlu0 %v531, 125
      %v1368 = vpop.permute.xlu0 %1367
      %1369 = vrot.lane.b32.xlu0 %v532, 125
      %v1370 = vpop.permute.xlu0 %1369
      %1371 = vrot.lane.b32.xlu0 %v533, 125
      %v1372 = vpop.permute.xlu0 %1371
      %1373 = vrot.lane.b32.xlu0 %v534, 125
      %v1374 = vpop.permute.xlu0 %1373
      %1375 = vrot.lane.b32.xlu0 %v535, 125
      %v1376 = vpop.permute.xlu0 %1375
      %1377 = vrot.lane.b32.xlu0 %v536, 125
      %v1378 = vpop.permute.xlu0 %1377
      %1379 = vrot.lane.b32.xlu0 %v537, 125
      %v1380 = vpop.permute.xlu0 %1379
      %1381 = vrot.lane.b32.xlu0 %v538, 125
      %v1382 = vpop.permute.xlu0 %1381
      %1383 = vrot.lane.b32.xlu0 %v539, 125
      %v1384 = vpop.permute.xlu0 %1383
      %1385 = vrot.lane.b32.xlu0 %v540, 125
      %v1386 = vpop.permute.xlu0 %1385
      %1387 = vrot.lane.b32.xlu0 %v541, 125
      %v1388 = vpop.permute.xlu0 %1387
      %1389 = vrot.lane.b32.xlu0 %v542, 125
      %v1390 = vpop.permute.xlu0 %1389
      %1391 = vrot.lane.b32.xlu0 %v543, 125
      %v1392 = vpop.permute.xlu0 %1391
      %1393 = vrot.lane.b32.xlu0 %v544, 125
      %v1394 = vpop.permute.xlu0 %1393
      %1395 = vrot.lane.b32.xlu0 %v545, 125
      %v1396 = vpop.permute.xlu0 %1395
      %1397 = vrot.lane.b32.xlu0 %v546, 125
      %v1398 = vpop.permute.xlu0 %1397
      %1399 = vrot.lane.b32.xlu0 %v547, 125
      %v1400 = vpop.permute.xlu0 %1399
      %vm1401 = vcmask 1022976
      %v1402 = vsel %vm1401, %v1362, %v1364
      %v1403 = vsel %vm1401, %v1364, %v1366
      %v1404 = vsel %vm1401, %v1366, %v1368
      %v1405 = vsel %vm1401, %v1370, %v1372
      %v1406 = vsel %vm1401, %v1372, %v1374
      %v1407 = vsel %vm1401, %v1374, %v1376
      %v1408 = vsel %vm1401, %v1378, %v1380
      %v1409 = vsel %vm1401, %v1380, %v1382
      %v1410 = vsel %vm1401, %v1382, %v1384
      %v1411 = vsel %vm1401, %v1386, %v1388
      %v1412 = vsel %vm1401, %v1388, %v1390
      %v1413 = vsel %vm1401, %v1390, %v1392
      %v1414 = vsel %vm1401, %v1394, %v1396
      %v1415 = vsel %vm1401, %v1396, %v1398
      %v1416 = vsel %vm1401, %v1398, %v1400
      %v1434 = vsel %vm649, %v1353, 0
      %v1437 = vsel %vm649, %v1354, 0
      %v1440 = vsel %vm649, %v1355, 0
      %v1443 = vsel %vm649, %v1356, 0
      %v1446 = vsel %vm649, %v1357, 0
      %v1449 = vsel %vm649, %v1358, 0
      %v1452 = vsel %vm649, %v1359, 0
      %v1455 = vsel %vm649, %v1360, 0
      %v1457 = vsel %vm674, %v1414, 0
      %v1459 = vsel %vm674, %v1415, 0
      %v1461 = vsel %vm674, %v1416, 0
      %v1463 = vsel %vm674, %v1400, 0
      %1465 = vmatpush.msra.mxu0 0.0
      %1466 = vmatpush.msra.mxu0 0.0
      %1467 = vmatpush.msra.mxu0 0.0
      %1468 = vmatpush.msra.mxu0 0.0
      %1469 = vmatpush.msra.mxu0 0.0
      %1470 = vmatpush.msra.mxu0 0.0
      %1471 = vmatpush.msra.mxu0 0.0
      %1472 = vmatpush.msra.mxu0 0.0
      %1473 = vmatpush.msra.mxu0 0.0
      %1474 = vmatpush.msra.mxu0 0.0
      %1475 = vmatpush.msra.mxu0 0.0
      %1476 = vmatpush.msra.mxu0 %v1457
      %1477 = vmatpush.msra.mxu0 %v1411
      %1478 = vmatpush.msra.mxu0 %v1408
      %1479 = vmatpush.msra.mxu0 %v1405
      %1480 = vmatpush.msra.mxu0 %v1402
      %1481 = vmatmul.f32.gmra.mxu0 %v1434
      %v1482 = vpop.f32.mrf.mxu0
      %v1483 = vadd.f32 0.0, %v1482
      %1484 = vmatmul.f32.gmra.mxu0 %v1437
      %v1485 = vpop.f32.mrf.mxu0
      %v1486 = vadd.f32 0.0, %v1485
      %1487 = vmatmul.f32.gmra.mxu0 %v1440
      %v1488 = vpop.f32.mrf.mxu0
      %v1489 = vadd.f32 0.0, %v1488
      %1490 = vmatmul.f32.gmra.mxu0 %v1443
      %v1491 = vpop.f32.mrf.mxu0
      %v1492 = vadd.f32 0.0, %v1491
      %1493 = vmatmul.f32.gmra.mxu0 %v1446
      %v1494 = vpop.f32.mrf.mxu0
      %v1495 = vadd.f32 0.0, %v1494
      %1496 = vmatmul.f32.gmra.mxu0 %v1449
      %v1497 = vpop.f32.mrf.mxu0
      %v1498 = vadd.f32 0.0, %v1497
      %1499 = vmatmul.f32.gmra.mxu0 %v1452
      %v1500 = vpop.f32.mrf.mxu0
      %v1501 = vadd.f32 0.0, %v1500
      %1502 = vmatmul.f32.gmra.mxu0 %v1455
      %v1503 = vpop.f32.mrf.mxu0
      %v1504 = vadd.f32 0.0, %v1503
      %1505 = vdwg.mxu0
      %1506 = vmatpush.msra.mxu0 0.0
      %1507 = vmatpush.msra.mxu0 0.0
      %1508 = vmatpush.msra.mxu0 0.0
      %1509 = vmatpush.msra.mxu0 0.0
      %1510 = vmatpush.msra.mxu0 0.0
      %1511 = vmatpush.msra.mxu0 0.0
      %1512 = vmatpush.msra.mxu0 0.0
      %1513 = vmatpush.msra.mxu0 0.0
      %1514 = vmatpush.msra.mxu0 0.0
      %1515 = vmatpush.msra.mxu0 0.0
      %1516 = vmatpush.msra.mxu0 0.0
      %1517 = vmatpush.msra.mxu0 %v1459
      %1518 = vmatpush.msra.mxu0 %v1412
      %1519 = vmatpush.msra.mxu0 %v1409
      %1520 = vmatpush.msra.mxu0 %v1406
      %1521 = vmatpush.msra.mxu0 %v1403
      %1522 = vmatmul.f32.gmra.mxu0 %v1434
      %v1523 = vpop.f32.mrf.mxu0
      %v1524 = vadd.f32 0.0, %v1523
      %1525 = vmatmul.f32.gmra.mxu0 %v1437
      %v1526 = vpop.f32.mrf.mxu0
      %v1527 = vadd.f32 0.0, %v1526
      %1528 = vmatmul.f32.gmra.mxu0 %v1440
      %v1529 = vpop.f32.mrf.mxu0
      %v1530 = vadd.f32 0.0, %v1529
      %1531 = vmatmul.f32.gmra.mxu0 %v1443
      %v1532 = vpop.f32.mrf.mxu0
      %v1533 = vadd.f32 0.0, %v1532
      %1534 = vmatmul.f32.gmra.mxu0 %v1446
      %v1535 = vpop.f32.mrf.mxu0
      %v1536 = vadd.f32 0.0, %v1535
      %1537 = vmatmul.f32.gmra.mxu0 %v1449
      %v1538 = vpop.f32.mrf.mxu0
      %v1539 = vadd.f32 0.0, %v1538
      %1540 = vmatmul.f32.gmra.mxu0 %v1452
      %v1541 = vpop.f32.mrf.mxu0
      %v1542 = vadd.f32 0.0, %v1541
      %1543 = vmatmul.f32.gmra.mxu0 %v1455
      %v1544 = vpop.f32.mrf.mxu0
      %v1545 = vadd.f32 0.0, %v1544
      %1546 = vdwg.mxu0
      %1547 = vmatpush.msra.mxu0 0.0
      %1548 = vmatpush.msra.mxu0 0.0
      %1549 = vmatpush.msra.mxu0 0.0
      %1550 = vmatpush.msra.mxu0 0.0
      %1551 = vmatpush.msra.mxu0 0.0
      %1552 = vmatpush.msra.mxu0 0.0
      %1553 = vmatpush.msra.mxu0 0.0
      %1554 = vmatpush.msra.mxu0 0.0
      %1555 = vmatpush.msra.mxu0 0.0
      %1556 = vmatpush.msra.mxu0 0.0
      %1557 = vmatpush.msra.mxu0 0.0
      %1558 = vmatpush.msra.mxu0 %v1461
      %1559 = vmatpush.msra.mxu0 %v1413
      %1560 = vmatpush.msra.mxu0 %v1410
      %1561 = vmatpush.msra.mxu0 %v1407
      %1562 = vmatpush.msra.mxu0 %v1404
      %1563 = vmatmul.f32.gmra.mxu0 %v1434
      %v1564 = vpop.f32.mrf.mxu0
      %v1565 = vadd.f32 0.0, %v1564
      %1566 = vmatmul.f32.gmra.mxu0 %v1437
      %v1567 = vpop.f32.mrf.mxu0
      %v1568 = vadd.f32 0.0, %v1567
      %1569 = vmatmul.f32.gmra.mxu0 %v1440
      %v1570 = vpop.f32.mrf.mxu0
      %v1571 = vadd.f32 0.0, %v1570
      %1572 = vmatmul.f32.gmra.mxu0 %v1443
      %v1573 = vpop.f32.mrf.mxu0
      %v1574 = vadd.f32 0.0, %v1573
      %1575 = vmatmul.f32.gmra.mxu0 %v1446
      %v1576 = vpop.f32.mrf.mxu0
      %v1577 = vadd.f32 0.0, %v1576
      %1578 = vmatmul.f32.gmra.mxu0 %v1449
      %v1579 = vpop.f32.mrf.mxu0
      %v1580 = vadd.f32 0.0, %v1579
      %1581 = vmatmul.f32.gmra.mxu0 %v1452
      %v1582 = vpop.f32.mrf.mxu0
      %v1583 = vadd.f32 0.0, %v1582
      %1584 = vmatmul.f32.gmra.mxu0 %v1455
      %v1585 = vpop.f32.mrf.mxu0
      %v1586 = vadd.f32 0.0, %v1585
      %1587 = vdwg.mxu0
      %1588 = vmatpush.msra.mxu0 0.0
      %1589 = vmatpush.msra.mxu0 0.0
      %1590 = vmatpush.msra.mxu0 0.0
      %1591 = vmatpush.msra.mxu0 0.0
      %1592 = vmatpush.msra.mxu0 0.0
      %1593 = vmatpush.msra.mxu0 0.0
      %1594 = vmatpush.msra.mxu0 0.0
      %1595 = vmatpush.msra.mxu0 0.0
      %1596 = vmatpush.msra.mxu0 0.0
      %1597 = vmatpush.msra.mxu0 0.0
      %1598 = vmatpush.msra.mxu0 0.0
      %1599 = vmatpush.msra.mxu0 %v1463
      %1600 = vmatpush.msra.mxu0 %v1392
      %1601 = vmatpush.msra.mxu0 %v1384
      %1602 = vmatpush.msra.mxu0 %v1376
      %1603 = vmatpush.msra.mxu0 %v1368
      %1604 = vmatmul.f32.gmra.mxu0 %v1434
      %v1605 = vpop.f32.mrf.mxu0
      %v1606 = vadd.f32 0.0, %v1605
      %1607 = vmatmul.f32.gmra.mxu0 %v1437
      %v1608 = vpop.f32.mrf.mxu0
      %v1609 = vadd.f32 0.0, %v1608
      %1610 = vmatmul.f32.gmra.mxu0 %v1440
      %v1611 = vpop.f32.mrf.mxu0
      %v1612 = vadd.f32 0.0, %v1611
      %1613 = vmatmul.f32.gmra.mxu0 %v1443
      %v1614 = vpop.f32.mrf.mxu0
      %v1615 = vadd.f32 0.0, %v1614
      %1616 = vmatmul.f32.gmra.mxu0 %v1446
      %v1617 = vpop.f32.mrf.mxu0
      %v1618 = vadd.f32 0.0, %v1617
      %1619 = vmatmul.f32.gmra.mxu0 %v1449
      %v1620 = vpop.f32.mrf.mxu0
      %v1621 = vadd.f32 0.0, %v1620
      %1622 = vmatmul.f32.gmra.mxu0 %v1452
      %v1623 = vpop.f32.mrf.mxu0
      %v1624 = vadd.f32 0.0, %v1623
      %1625 = vmatmul.f32.gmra.mxu0 %v1455
      %v1626 = vpop.f32.mrf.mxu0
      %v1627 = vadd.f32 0.0, %v1626
      %1628 = vdwg.mxu0
      %v1629 = vadd.f32 %v1320, %v1483
      %v1630 = vadd.f32 %v1321, %v1524
      %v1631 = vadd.f32 %v1322, %v1565
      %v1632 = vadd.f32 %v1323, %v1606
      %v1633 = vadd.f32 %v1324, %v1486
      %v1634 = vadd.f32 %v1325, %v1527
      %v1635 = vadd.f32 %v1326, %v1568
      %v1636 = vadd.f32 %v1327, %v1609
      %v1637 = vadd.f32 %v1328, %v1489
      %v1638 = vadd.f32 %v1329, %v1530
      %v1639 = vadd.f32 %v1330, %v1571
      %v1640 = vadd.f32 %v1331, %v1612
      %v1641 = vadd.f32 %v1332, %v1492
      %v1642 = vadd.f32 %v1333, %v1533
      %v1643 = vadd.f32 %v1334, %v1574
      %v1644 = vadd.f32 %v1335, %v1615
      %v1645 = vadd.f32 %v1336, %v1495
      %v1646 = vadd.f32 %v1337, %v1536
      %v1647 = vadd.f32 %v1338, %v1577
      %v1648 = vadd.f32 %v1339, %v1618
      %v1649 = vadd.f32 %v1340, %v1498
      %v1650 = vadd.f32 %v1341, %v1539
      %v1651 = vadd.f32 %v1342, %v1580
      %v1652 = vadd.f32 %v1343, %v1621
      %v1653 = vadd.f32 %v1344, %v1501
      %v1654 = vadd.f32 %v1345, %v1542
      %v1655 = vadd.f32 %v1346, %v1583
      %v1656 = vadd.f32 %v1347, %v1624
      %v1657 = vadd.f32 %v1348, %v1504
      %v1658 = vadd.f32 %v1349, %v1545
      %v1659 = vadd.f32 %v1350, %v1586
      %v1660 = vadd.f32 %v1351, %v1627
      %v1661 = vld [vmem:[%s2] sm:$0xff]
      %v1662 = vld [vmem:[%s2 + $0x8] sm:$0xff]
      %v1663 = vld [vmem:[%s2 + $0x10] sm:$0xff]
      %v1664 = vld [vmem:[%s2 + $0x18] sm:$0xff]
      %v1665 = vld [vmem:[%s2 + $0x20] sm:$0xff]
      %v1666 = vld [vmem:[%s2 + $0x28] sm:$0xff]
      %v1667 = vld [vmem:[%s2 + $0x30] sm:$0xff]
      %v1668 = vld [vmem:[%s2 + $0x38] sm:$0xff]
      %1670 = vset.pattern.permute.xlu0 0
      %1671 = vperm.xlu0 %1670, %v1661
      %v1672 = vpop.permute.xlu0 %1671
      %1675 = vset.pattern.permute.xlu0 0
      %1676 = vperm.xlu0 %1675, %v1662
      %v1677 = vpop.permute.xlu0 %1676
      %1680 = vset.pattern.permute.xlu0 0
      %1681 = vperm.xlu0 %1680, %v1663
      %v1682 = vpop.permute.xlu0 %1681
      %1685 = vset.pattern.permute.xlu0 0
      %1686 = vperm.xlu0 %1685, %v1664
      %v1687 = vpop.permute.xlu0 %1686
      %1690 = vset.pattern.permute.xlu0 0
      %1691 = vperm.xlu0 %1690, %v1665
      %v1692 = vpop.permute.xlu0 %1691
      %1695 = vset.pattern.permute.xlu0 0
      %1696 = vperm.xlu0 %1695, %v1666
      %v1697 = vpop.permute.xlu0 %1696
      %1700 = vset.pattern.permute.xlu0 0
      %1701 = vperm.xlu0 %1700, %v1667
      %v1702 = vpop.permute.xlu0 %1701
      %1705 = vset.pattern.permute.xlu0 0
      %1706 = vperm.xlu0 %1705, %v1668
      %v1707 = vpop.permute.xlu0 %1706
      %v1709 = vadd.f32 %v1629, %v1672
      %v1710 = vadd.f32 %v1630, %v1672
      %v1711 = vadd.f32 %v1631, %v1672
      %v1712 = vadd.f32 %v1632, %v1672
      %v1713 = vadd.f32 %v1633, %v1677
      %v1714 = vadd.f32 %v1634, %v1677
      %v1715 = vadd.f32 %v1635, %v1677
      %v1716 = vadd.f32 %v1636, %v1677
      %v1717 = vadd.f32 %v1637, %v1682
      %v1718 = vadd.f32 %v1638, %v1682
      %v1719 = vadd.f32 %v1639, %v1682
      %v1720 = vadd.f32 %v1640, %v1682
      %v1721 = vadd.f32 %v1641, %v1687
      %v1722 = vadd.f32 %v1642, %v1687
      %v1723 = vadd.f32 %v1643, %v1687
      %v1724 = vadd.f32 %v1644, %v1687
      %v1725 = vadd.f32 %v1645, %v1692
      %v1726 = vadd.f32 %v1646, %v1692
      %v1727 = vadd.f32 %v1647, %v1692
      %v1728 = vadd.f32 %v1648, %v1692
      %v1729 = vadd.f32 %v1649, %v1697
      %v1730 = vadd.f32 %v1650, %v1697
      %v1731 = vadd.f32 %v1651, %v1697
      %v1732 = vadd.f32 %v1652, %v1697
      %v1733 = vadd.f32 %v1653, %v1702
      %v1734 = vadd.f32 %v1654, %v1702
      %v1735 = vadd.f32 %v1655, %v1702
      %v1736 = vadd.f32 %v1656, %v1702
      %v1737 = vadd.f32 %v1657, %v1707
      %v1738 = vadd.f32 %v1658, %v1707
      %v1739 = vadd.f32 %v1659, %v1707
      %v1740 = vadd.f32 %v1660, %v1707
      %v1741 = vmax.f32 %v1709, 0.0
      %v1742 = vmax.f32 %v1710, 0.0
      %v1743 = vmax.f32 %v1711, 0.0
      %v1744 = vmax.f32 %v1712, 0.0
      %v1745 = vmax.f32 %v1713, 0.0
      %v1746 = vmax.f32 %v1714, 0.0
      %v1747 = vmax.f32 %v1715, 0.0
      %v1748 = vmax.f32 %v1716, 0.0
      %v1749 = vmax.f32 %v1717, 0.0
      %v1750 = vmax.f32 %v1718, 0.0
      %v1751 = vmax.f32 %v1719, 0.0
      %v1752 = vmax.f32 %v1720, 0.0
      %v1753 = vmax.f32 %v1721, 0.0
      %v1754 = vmax.f32 %v1722, 0.0
      %v1755 = vmax.f32 %v1723, 0.0
      %v1756 = vmax.f32 %v1724, 0.0
      %v1757 = vmax.f32 %v1725, 0.0
      %v1758 = vmax.f32 %v1726, 0.0
      %v1759 = vmax.f32 %v1727, 0.0
      %v1760 = vmax.f32 %v1728, 0.0
      %v1761 = vmax.f32 %v1729, 0.0
      %v1762 = vmax.f32 %v1730, 0.0
      %v1763 = vmax.f32 %v1731, 0.0
      %v1764 = vmax.f32 %v1732, 0.0
      %v1765 = vmax.f32 %v1733, 0.0
      %v1766 = vmax.f32 %v1734, 0.0
      %v1767 = vmax.f32 %v1735, 0.0
      %v1768 = vmax.f32 %v1736, 0.0
      %v1769 = vmax.f32 %v1737, 0.0
      %v1770 = vmax.f32 %v1738, 0.0
      %v1771 = vmax.f32 %v1739, 0.0
      %v1772 = vmax.f32 %v1740, 0.0
      %1773 = vst [vmem:[#allocation2] sm:$0xff] %v1741
      %1774 = vst [vmem:[#allocation2 + $0x8] sm:$0xff] %v1742
      %1775 = vst [vmem:[#allocation2 + $0x10] sm:$0xff] %v1743
      %vm1776 = vcmask 105472
      %1777 = vst.msk [vmem:[#allocation2 + $0x18] sm:$0xff] %vm1776, %v1744
      %1778 = vst [vmem:[#allocation2 + $0x20] sm:$0xff] %v1745
      %1779 = vst [vmem:[#allocation2 + $0x28] sm:$0xff] %v1746
      %1780 = vst [vmem:[#allocation2 + $0x30] sm:$0xff] %v1747
      %1781 = vst.msk [vmem:[#allocation2 + $0x38] sm:$0xff] %vm1776, %v1748
      %1782 = vst [vmem:[#allocation2 + $0x40] sm:$0xff] %v1749
      %1783 = vst [vmem:[#allocation2 + $0x48] sm:$0xff] %v1750
      %1784 = vst [vmem:[#allocation2 + $0x50] sm:$0xff] %v1751
      %1785 = vst.msk [vmem:[#allocation2 + $0x58] sm:$0xff] %vm1776, %v1752
      %1786 = vst [vmem:[#allocation2 + $0x60] sm:$0xff] %v1753
      %1787 = vst [vmem:[#allocation2 + $0x68] sm:$0xff] %v1754
      %1788 = vst [vmem:[#allocation2 + $0x70] sm:$0xff] %v1755
      %1789 = vst.msk [vmem:[#allocation2 + $0x78] sm:$0xff] %vm1776, %v1756
      %1790 = vst [vmem:[#allocation2 + $0x80] sm:$0xff] %v1757
      %1791 = vst [vmem:[#allocation2 + $0x88] sm:$0xff] %v1758
      %1792 = vst [vmem:[#allocation2 + $0x90] sm:$0xff] %v1759
      %1793 = vst.msk [vmem:[#allocation2 + $0x98] sm:$0xff] %vm1776, %v1760
      %1794 = vst [vmem:[#allocation2 + $0xa0] sm:$0xff] %v1761
      %1795 = vst [vmem:[#allocation2 + $0xa8] sm:$0xff] %v1762
      %1796 = vst [vmem:[#allocation2 + $0xb0] sm:$0xff] %v1763
      %1797 = vst.msk [vmem:[#allocation2 + $0xb8] sm:$0xff] %vm1776, %v1764
      %1798 = vst [vmem:[#allocation2 + $0xc0] sm:$0xff] %v1765
      %1799 = vst [vmem:[#allocation2 + $0xc8] sm:$0xff] %v1766
      %1800 = vst [vmem:[#allocation2 + $0xd0] sm:$0xff] %v1767
      %1801 = vst.msk [vmem:[#allocation2 + $0xd8] sm:$0xff] %vm1776, %v1768
      %1802 = vst [vmem:[#allocation2 + $0xe0] sm:$0xff] %v1769
      %1803 = vst [vmem:[#allocation2 + $0xe8] sm:$0xff] %v1770
      %1804 = vst [vmem:[#allocation2 + $0xf0] sm:$0xff] %v1771
      %1805 = vst.msk [vmem:[#allocation2 + $0xf8] sm:$0xff] %vm1776, %v1772
      %v1806 = vld [vmem:[%s3] sm:$0xff]
      %v1807 = vld [vmem:[%s3 + $0x8] sm:$0xff]
      %v1808 = vld [vmem:[%s3 + $0x10] sm:$0xff]
      %v1809 = vld [vmem:[%s3 + $0x18] sm:$0xff]
      %v1810 = vld [vmem:[%s3 + $0x20] sm:$0xff]
      %v1811 = vld [vmem:[%s3 + $0x28] sm:$0xff]
      %v1812 = vld [vmem:[%s3 + $0x30] sm:$0xff]
      %v1813 = vld [vmem:[%s3 + $0x38] sm:$0xff]
      %v1814 = vld [vmem:[#allocation2] sm:$0xff]
      %v1815 = vld [vmem:[#allocation2 + $0x8] sm:$0xff]
      %v1816 = vld [vmem:[#allocation2 + $0x10] sm:$0xff]
      %v1817 = vld [vmem:[#allocation2 + $0x18] sm:$0xff]
      %v1818 = vld [vmem:[#allocation2 + $0x20] sm:$0xff]
      %v1819 = vld [vmem:[#allocation2 + $0x28] sm:$0xff]
      %v1820 = vld [vmem:[#allocation2 + $0x30] sm:$0xff]
      %v1821 = vld [vmem:[#allocation2 + $0x38] sm:$0xff]
      %v1822 = vld [vmem:[#allocation2 + $0x40] sm:$0xff]
      %v1823 = vld [vmem:[#allocation2 + $0x48] sm:$0xff]
      %v1824 = vld [vmem:[#allocation2 + $0x50] sm:$0xff]
      %v1825 = vld [vmem:[#allocation2 + $0x58] sm:$0xff]
      %v1826 = vld [vmem:[#allocation2 + $0x60] sm:$0xff]
      %v1827 = vld [vmem:[#allocation2 + $0x68] sm:$0xff]
      %v1828 = vld [vmem:[#allocation2 + $0x70] sm:$0xff]
      %v1829 = vld [vmem:[#allocation2 + $0x78] sm:$0xff]
      %v1830 = vld [vmem:[#allocation2 + $0x80] sm:$0xff]
      %v1831 = vld [vmem:[#allocation2 + $0x88] sm:$0xff]
      %v1832 = vld [vmem:[#allocation2 + $0x90] sm:$0xff]
      %v1833 = vld [vmem:[#allocation2 + $0x98] sm:$0xff]
      %v1834 = vld [vmem:[#allocation2 + $0xa0] sm:$0xff]
      %v1835 = vld [vmem:[#allocation2 + $0xa8] sm:$0xff]
      %v1836 = vld [vmem:[#allocation2 + $0xb0] sm:$0xff]
      %v1837 = vld [vmem:[#allocation2 + $0xb8] sm:$0xff]
      %v1838 = vld [vmem:[#allocation2 + $0xc0] sm:$0xff]
      %v1839 = vld [vmem:[#allocation2 + $0xc8] sm:$0xff]
      %v1840 = vld [vmem:[#allocation2 + $0xd0] sm:$0xff]
      %v1841 = vld [vmem:[#allocation2 + $0xd8] sm:$0xff]
      %v1842 = vld [vmem:[#allocation2 + $0xe0] sm:$0xff]
      %v1843 = vld [vmem:[#allocation2 + $0xe8] sm:$0xff]
      %v1844 = vld [vmem:[#allocation2 + $0xf0] sm:$0xff]
      %v1845 = vld [vmem:[#allocation2 + $0xf8] sm:$0xff]
      %s1846 = scalar_lea.vmem %s3, 64
      %v1847 = vld [vmem:[%s1846] sm:$0xff]
      %v1848 = vld [vmem:[%s1846 + $0x8] sm:$0xff]
      %v1849 = vld [vmem:[%s1846 + $0x10] sm:$0xff]
      %v1850 = vld [vmem:[%s1846 + $0x18] sm:$0xff]
      %v1851 = vld [vmem:[%s1846 + $0x20] sm:$0xff]
      %v1852 = vld [vmem:[%s1846 + $0x28] sm:$0xff]
      %v1853 = vld [vmem:[%s1846 + $0x30] sm:$0xff]
      %v1854 = vld [vmem:[%s1846 + $0x38] sm:$0xff]
      %1887 = vrot.lane.b32.xlu0 %v1814, 127
      %v1888 = vpop.permute.xlu0 %1887
      %1889 = vrot.lane.b32.xlu0 %v1815, 127
      %v1890 = vpop.permute.xlu0 %1889
      %1891 = vrot.lane.b32.xlu0 %v1816, 127
      %v1892 = vpop.permute.xlu0 %1891
      %1893 = vrot.lane.b32.xlu0 %v1817, 127
      %v1894 = vpop.permute.xlu0 %1893
      %1895 = vrot.lane.b32.xlu0 %v1818, 127
      %v1896 = vpop.permute.xlu0 %1895
      %1897 = vrot.lane.b32.xlu0 %v1819, 127
      %v1898 = vpop.permute.xlu0 %1897
      %1899 = vrot.lane.b32.xlu0 %v1820, 127
      %v1900 = vpop.permute.xlu0 %1899
      %1901 = vrot.lane.b32.xlu0 %v1821, 127
      %v1902 = vpop.permute.xlu0 %1901
      %1903 = vrot.lane.b32.xlu0 %v1822, 127
      %v1904 = vpop.permute.xlu0 %1903
      %1905 = vrot.lane.b32.xlu0 %v1823, 127
      %v1906 = vpop.permute.xlu0 %1905
      %1907 = vrot.lane.b32.xlu0 %v1824, 127
      %v1908 = vpop.permute.xlu0 %1907
      %1909 = vrot.lane.b32.xlu0 %v1825, 127
      %v1910 = vpop.permute.xlu0 %1909
      %1911 = vrot.lane.b32.xlu0 %v1826, 127
      %v1912 = vpop.permute.xlu0 %1911
      %1913 = vrot.lane.b32.xlu0 %v1827, 127
      %v1914 = vpop.permute.xlu0 %1913
      %1915 = vrot.lane.b32.xlu0 %v1828, 127
      %v1916 = vpop.permute.xlu0 %1915
      %1917 = vrot.lane.b32.xlu0 %v1829, 127
      %v1918 = vpop.permute.xlu0 %1917
      %1919 = vrot.lane.b32.xlu0 %v1830, 127
      %v1920 = vpop.permute.xlu0 %1919
      %1921 = vrot.lane.b32.xlu0 %v1831, 127
      %v1922 = vpop.permute.xlu0 %1921
      %1923 = vrot.lane.b32.xlu0 %v1832, 127
      %v1924 = vpop.permute.xlu0 %1923
      %1925 = vrot.lane.b32.xlu0 %v1833, 127
      %v1926 = vpop.permute.xlu0 %1925
      %1927 = vrot.lane.b32.xlu0 %v1834, 127
      %v1928 = vpop.permute.xlu0 %1927
      %1929 = vrot.lane.b32.xlu0 %v1835, 127
      %v1930 = vpop.permute.xlu0 %1929
      %1931 = vrot.lane.b32.xlu0 %v1836, 127
      %v1932 = vpop.permute.xlu0 %1931
      %1933 = vrot.lane.b32.xlu0 %v1837, 127
      %v1934 = vpop.permute.xlu0 %1933
      %1935 = vrot.lane.b32.xlu0 %v1838, 127
      %v1936 = vpop.permute.xlu0 %1935
      %1937 = vrot.lane.b32.xlu0 %v1839, 127
      %v1938 = vpop.permute.xlu0 %1937
      %1939 = vrot.lane.b32.xlu0 %v1840, 127
      %v1940 = vpop.permute.xlu0 %1939
      %1941 = vrot.lane.b32.xlu0 %v1841, 127
      %v1942 = vpop.permute.xlu0 %1941
      %1943 = vrot.lane.b32.xlu0 %v1842, 127
      %v1944 = vpop.permute.xlu0 %1943
      %1945 = vrot.lane.b32.xlu0 %v1843, 127
      %v1946 = vpop.permute.xlu0 %1945
      %1947 = vrot.lane.b32.xlu0 %v1844, 127
      %v1948 = vpop.permute.xlu0 %1947
      %1949 = vrot.lane.b32.xlu0 %v1845, 127
      %v1950 = vpop.permute.xlu0 %1949
      %v1951 = vsel %vm617, %v1888, %v1890
      %v1952 = vsel %vm617, %v1890, %v1892
      %v1953 = vsel %vm617, %v1892, %v1894
      %v1954 = vsel %vm617, %v1896, %v1898
      %v1955 = vsel %vm617, %v1898, %v1900
      %v1956 = vsel %vm617, %v1900, %v1902
      %v1957 = vsel %vm617, %v1904, %v1906
      %v1958 = vsel %vm617, %v1906, %v1908
      %v1959 = vsel %vm617, %v1908, %v1910
      %v1960 = vsel %vm617, %v1912, %v1914
      %v1961 = vsel %vm617, %v1914, %v1916
      %v1962 = vsel %vm617, %v1916, %v1918
      %v1963 = vsel %vm617, %v1920, %v1922
      %v1964 = vsel %vm617, %v1922, %v1924
      %v1965 = vsel %vm617, %v1924, %v1926
      %v1966 = vsel %vm617, %v1928, %v1930
      %v1967 = vsel %vm617, %v1930, %v1932
      %v1968 = vsel %vm617, %v1932, %v1934
      %v1969 = vsel %vm617, %v1936, %v1938
      %v1970 = vsel %vm617, %v1938, %v1940
      %v1971 = vsel %vm617, %v1940, %v1942
      %v1972 = vsel %vm617, %v1944, %v1946
      %v1973 = vsel %vm617, %v1946, %v1948
      %v1974 = vsel %vm617, %v1948, %v1950
      %vm2007 = vcmask 523264
      %v2009 = vsel %vm2007, %v1847, 0
      %v2012 = vsel %vm2007, %v1848, 0
      %v2015 = vsel %vm2007, %v1849, 0
      %v2018 = vsel %vm2007, %v1850, 0
      %v2021 = vsel %vm2007, %v1851, 0
      %v2024 = vsel %vm2007, %v1852, 0
      %v2027 = vsel %vm2007, %v1853, 0
      %v2030 = vsel %vm2007, %v1854, 0
      %2032 = vmatpush.msra.mxu0 0.0
      %2033 = vmatpush.msra.mxu0 0.0
      %2034 = vmatpush.msra.mxu0 0.0
      %2035 = vmatpush.msra.mxu0 0.0
      %2036 = vmatpush.msra.mxu0 0.0
      %2037 = vmatpush.msra.mxu0 0.0
      %2038 = vmatpush.msra.mxu0 0.0
      %2039 = vmatpush.msra.mxu0 0.0
      %2040 = vmatpush.msra.mxu0 %v1972
      %2041 = vmatpush.msra.mxu0 %v1969
      %2042 = vmatpush.msra.mxu0 %v1966
      %2043 = vmatpush.msra.mxu0 %v1963
      %2044 = vmatpush.msra.mxu0 %v1960
      %2045 = vmatpush.msra.mxu0 %v1957
      %2046 = vmatpush.msra.mxu0 %v1954
      %2047 = vmatpush.msra.mxu0 %v1951
      %2048 = vmatmul.f32.gmra.mxu0 %v2009
      %v2049 = vpop.f32.mrf.mxu0
      %v2050 = vadd.f32 0.0, %v2049
      %2051 = vmatmul.f32.gmra.mxu0 %v2012
      %v2052 = vpop.f32.mrf.mxu0
      %v2053 = vadd.f32 0.0, %v2052
      %2054 = vmatmul.f32.gmra.mxu0 %v2015
      %v2055 = vpop.f32.mrf.mxu0
      %v2056 = vadd.f32 0.0, %v2055
      %2057 = vmatmul.f32.gmra.mxu0 %v2018
      %v2058 = vpop.f32.mrf.mxu0
      %v2059 = vadd.f32 0.0, %v2058
      %2060 = vmatmul.f32.gmra.mxu0 %v2021
      %v2061 = vpop.f32.mrf.mxu0
      %v2062 = vadd.f32 0.0, %v2061
      %2063 = vmatmul.f32.gmra.mxu0 %v2024
      %v2064 = vpop.f32.mrf.mxu0
      %v2065 = vadd.f32 0.0, %v2064
      %2066 = vmatmul.f32.gmra.mxu0 %v2027
      %v2067 = vpop.f32.mrf.mxu0
      %v2068 = vadd.f32 0.0, %v2067
      %2069 = vmatmul.f32.gmra.mxu0 %v2030
      %v2070 = vpop.f32.mrf.mxu0
      %v2071 = vadd.f32 0.0, %v2070
      %2072 = vdwg.mxu0
      %2073 = vmatpush.msra.mxu0 0.0
      %2074 = vmatpush.msra.mxu0 0.0
      %2075 = vmatpush.msra.mxu0 0.0
      %2076 = vmatpush.msra.mxu0 0.0
      %2077 = vmatpush.msra.mxu0 0.0
      %2078 = vmatpush.msra.mxu0 0.0
      %2079 = vmatpush.msra.mxu0 0.0
      %2080 = vmatpush.msra.mxu0 0.0
      %2081 = vmatpush.msra.mxu0 %v1973
      %2082 = vmatpush.msra.mxu0 %v1970
      %2083 = vmatpush.msra.mxu0 %v1967
      %2084 = vmatpush.msra.mxu0 %v1964
      %2085 = vmatpush.msra.mxu0 %v1961
      %2086 = vmatpush.msra.mxu0 %v1958
      %2087 = vmatpush.msra.mxu0 %v1955
      %2088 = vmatpush.msra.mxu0 %v1952
      %2089 = vmatmul.f32.gmra.mxu0 %v2009
      %v2090 = vpop.f32.mrf.mxu0
      %v2091 = vadd.f32 0.0, %v2090
      %2092 = vmatmul.f32.gmra.mxu0 %v2012
      %v2093 = vpop.f32.mrf.mxu0
      %v2094 = vadd.f32 0.0, %v2093
      %2095 = vmatmul.f32.gmra.mxu0 %v2015
      %v2096 = vpop.f32.mrf.mxu0
      %v2097 = vadd.f32 0.0, %v2096
      %2098 = vmatmul.f32.gmra.mxu0 %v2018
      %v2099 = vpop.f32.mrf.mxu0
      %v2100 = vadd.f32 0.0, %v2099
      %2101 = vmatmul.f32.gmra.mxu0 %v2021
      %v2102 = vpop.f32.mrf.mxu0
      %v2103 = vadd.f32 0.0, %v2102
      %2104 = vmatmul.f32.gmra.mxu0 %v2024
      %v2105 = vpop.f32.mrf.mxu0
      %v2106 = vadd.f32 0.0, %v2105
      %2107 = vmatmul.f32.gmra.mxu0 %v2027
      %v2108 = vpop.f32.mrf.mxu0
      %v2109 = vadd.f32 0.0, %v2108
      %2110 = vmatmul.f32.gmra.mxu0 %v2030
      %v2111 = vpop.f32.mrf.mxu0
      %v2112 = vadd.f32 0.0, %v2111
      %2113 = vdwg.mxu0
      %2114 = vmatpush.msra.mxu0 0.0
      %2115 = vmatpush.msra.mxu0 0.0
      %2116 = vmatpush.msra.mxu0 0.0
      %2117 = vmatpush.msra.mxu0 0.0
      %2118 = vmatpush.msra.mxu0 0.0
      %2119 = vmatpush.msra.mxu0 0.0
      %2120 = vmatpush.msra.mxu0 0.0
      %2121 = vmatpush.msra.mxu0 0.0
      %2122 = vmatpush.msra.mxu0 %v1974
      %2123 = vmatpush.msra.mxu0 %v1971
      %2124 = vmatpush.msra.mxu0 %v1968
      %2125 = vmatpush.msra.mxu0 %v1965
      %2126 = vmatpush.msra.mxu0 %v1962
      %2127 = vmatpush.msra.mxu0 %v1959
      %2128 = vmatpush.msra.mxu0 %v1956
      %2129 = vmatpush.msra.mxu0 %v1953
      %2130 = vmatmul.f32.gmra.mxu0 %v2009
      %v2131 = vpop.f32.mrf.mxu0
      %v2132 = vadd.f32 0.0, %v2131
      %2133 = vmatmul.f32.gmra.mxu0 %v2012
      %v2134 = vpop.f32.mrf.mxu0
      %v2135 = vadd.f32 0.0, %v2134
      %2136 = vmatmul.f32.gmra.mxu0 %v2015
      %v2137 = vpop.f32.mrf.mxu0
      %v2138 = vadd.f32 0.0, %v2137
      %2139 = vmatmul.f32.gmra.mxu0 %v2018
      %v2140 = vpop.f32.mrf.mxu0
      %v2141 = vadd.f32 0.0, %v2140
      %2142 = vmatmul.f32.gmra.mxu0 %v2021
      %v2143 = vpop.f32.mrf.mxu0
      %v2144 = vadd.f32 0.0, %v2143
      %2145 = vmatmul.f32.gmra.mxu0 %v2024
      %v2146 = vpop.f32.mrf.mxu0
      %v2147 = vadd.f32 0.0, %v2146
      %2148 = vmatmul.f32.gmra.mxu0 %v2027
      %v2149 = vpop.f32.mrf.mxu0
      %v2150 = vadd.f32 0.0, %v2149
      %2151 = vmatmul.f32.gmra.mxu0 %v2030
      %v2152 = vpop.f32.mrf.mxu0
      %v2153 = vadd.f32 0.0, %v2152
      %2154 = vdwg.mxu0
      %2155 = vmatpush.msra.mxu0 0.0
      %2156 = vmatpush.msra.mxu0 0.0
      %2157 = vmatpush.msra.mxu0 0.0
      %2158 = vmatpush.msra.mxu0 0.0
      %2159 = vmatpush.msra.mxu0 0.0
      %2160 = vmatpush.msra.mxu0 0.0
      %2161 = vmatpush.msra.mxu0 0.0
      %2162 = vmatpush.msra.mxu0 0.0
      %2163 = vmatpush.msra.mxu0 %v1950
      %2164 = vmatpush.msra.mxu0 %v1942
      %2165 = vmatpush.msra.mxu0 %v1934
      %2166 = vmatpush.msra.mxu0 %v1926
      %2167 = vmatpush.msra.mxu0 %v1918
      %2168 = vmatpush.msra.mxu0 %v1910
      %2169 = vmatpush.msra.mxu0 %v1902
      %2170 = vmatpush.msra.mxu0 %v1894
      %2171 = vmatmul.f32.gmra.mxu0 %v2009
      %v2172 = vpop.f32.mrf.mxu0
      %v2173 = vadd.f32 0.0, %v2172
      %2174 = vmatmul.f32.gmra.mxu0 %v2012
      %v2175 = vpop.f32.mrf.mxu0
      %v2176 = vadd.f32 0.0, %v2175
      %2177 = vmatmul.f32.gmra.mxu0 %v2015
      %v2178 = vpop.f32.mrf.mxu0
      %v2179 = vadd.f32 0.0, %v2178
      %2180 = vmatmul.f32.gmra.mxu0 %v2018
      %v2181 = vpop.f32.mrf.mxu0
      %v2182 = vadd.f32 0.0, %v2181
      %2183 = vmatmul.f32.gmra.mxu0 %v2021
      %v2184 = vpop.f32.mrf.mxu0
      %v2185 = vadd.f32 0.0, %v2184
      %2186 = vmatmul.f32.gmra.mxu0 %v2024
      %v2187 = vpop.f32.mrf.mxu0
      %v2188 = vadd.f32 0.0, %v2187
      %2189 = vmatmul.f32.gmra.mxu0 %v2027
      %v2190 = vpop.f32.mrf.mxu0
      %v2191 = vadd.f32 0.0, %v2190
      %2192 = vmatmul.f32.gmra.mxu0 %v2030
      %v2193 = vpop.f32.mrf.mxu0
      %v2194 = vadd.f32 0.0, %v2193
      %2195 = vdwg.mxu0
      %v2197 = vsel %vm2007, %v1806, 0
      %v2200 = vsel %vm2007, %v1807, 0
      %v2203 = vsel %vm2007, %v1808, 0
      %v2206 = vsel %vm2007, %v1809, 0
      %v2209 = vsel %vm2007, %v1810, 0
      %v2212 = vsel %vm2007, %v1811, 0
      %v2215 = vsel %vm2007, %v1812, 0
      %v2218 = vsel %vm2007, %v1813, 0
      %2220 = vmatpush.msra.mxu0 0.0
      %2221 = vmatpush.msra.mxu0 0.0
      %2222 = vmatpush.msra.mxu0 0.0
      %2223 = vmatpush.msra.mxu0 0.0
      %2224 = vmatpush.msra.mxu0 0.0
      %2225 = vmatpush.msra.mxu0 0.0
      %2226 = vmatpush.msra.mxu0 0.0
      %2227 = vmatpush.msra.mxu0 0.0
      %2228 = vmatpush.msra.mxu0 %v1842
      %2229 = vmatpush.msra.mxu0 %v1838
      %2230 = vmatpush.msra.mxu0 %v1834
      %2231 = vmatpush.msra.mxu0 %v1830
      %2232 = vmatpush.msra.mxu0 %v1826
      %2233 = vmatpush.msra.mxu0 %v1822
      %2234 = vmatpush.msra.mxu0 %v1818
      %2235 = vmatpush.msra.mxu0 %v1814
      %2236 = vmatmul.f32.gmra.mxu0 %v2197
      %v2237 = vpop.f32.mrf.mxu0
      %v2238 = vadd.f32 %v2050, %v2237
      %2239 = vmatmul.f32.gmra.mxu0 %v2200
      %v2240 = vpop.f32.mrf.mxu0
      %v2241 = vadd.f32 %v2053, %v2240
      %2242 = vmatmul.f32.gmra.mxu0 %v2203
      %v2243 = vpop.f32.mrf.mxu0
      %v2244 = vadd.f32 %v2056, %v2243
      %2245 = vmatmul.f32.gmra.mxu0 %v2206
      %v2246 = vpop.f32.mrf.mxu0
      %v2247 = vadd.f32 %v2059, %v2246
      %2248 = vmatmul.f32.gmra.mxu0 %v2209
      %v2249 = vpop.f32.mrf.mxu0
      %v2250 = vadd.f32 %v2062, %v2249
      %2251 = vmatmul.f32.gmra.mxu0 %v2212
      %v2252 = vpop.f32.mrf.mxu0
      %v2253 = vadd.f32 %v2065, %v2252
      %2254 = vmatmul.f32.gmra.mxu0 %v2215
      %v2255 = vpop.f32.mrf.mxu0
      %v2256 = vadd.f32 %v2068, %v2255
      %2257 = vmatmul.f32.gmra.mxu0 %v2218
      %v2258 = vpop.f32.mrf.mxu0
      %v2259 = vadd.f32 %v2071, %v2258
      %2260 = vdwg.mxu0
      %2261 = vmatpush.msra.mxu0 0.0
      %2262 = vmatpush.msra.mxu0 0.0
      %2263 = vmatpush.msra.mxu0 0.0
      %2264 = vmatpush.msra.mxu0 0.0
      %2265 = vmatpush.msra.mxu0 0.0
      %2266 = vmatpush.msra.mxu0 0.0
      %2267 = vmatpush.msra.mxu0 0.0
      %2268 = vmatpush.msra.mxu0 0.0
      %2269 = vmatpush.msra.mxu0 %v1843
      %2270 = vmatpush.msra.mxu0 %v1839
      %2271 = vmatpush.msra.mxu0 %v1835
      %2272 = vmatpush.msra.mxu0 %v1831
      %2273 = vmatpush.msra.mxu0 %v1827
      %2274 = vmatpush.msra.mxu0 %v1823
      %2275 = vmatpush.msra.mxu0 %v1819
      %2276 = vmatpush.msra.mxu0 %v1815
      %2277 = vmatmul.f32.gmra.mxu0 %v2197
      %v2278 = vpop.f32.mrf.mxu0
      %v2279 = vadd.f32 %v2091, %v2278
      %2280 = vmatmul.f32.gmra.mxu0 %v2200
      %v2281 = vpop.f32.mrf.mxu0
      %v2282 = vadd.f32 %v2094, %v2281
      %2283 = vmatmul.f32.gmra.mxu0 %v2203
      %v2284 = vpop.f32.mrf.mxu0
      %v2285 = vadd.f32 %v2097, %v2284
      %2286 = vmatmul.f32.gmra.mxu0 %v2206
      %v2287 = vpop.f32.mrf.mxu0
      %v2288 = vadd.f32 %v2100, %v2287
      %2289 = vmatmul.f32.gmra.mxu0 %v2209
      %v2290 = vpop.f32.mrf.mxu0
      %v2291 = vadd.f32 %v2103, %v2290
      %2292 = vmatmul.f32.gmra.mxu0 %v2212
      %v2293 = vpop.f32.mrf.mxu0
      %v2294 = vadd.f32 %v2106, %v2293
      %2295 = vmatmul.f32.gmra.mxu0 %v2215
      %v2296 = vpop.f32.mrf.mxu0
      %v2297 = vadd.f32 %v2109, %v2296
      %2298 = vmatmul.f32.gmra.mxu0 %v2218
      %v2299 = vpop.f32.mrf.mxu0
      %v2300 = vadd.f32 %v2112, %v2299
      %2301 = vdwg.mxu0
      %2302 = vmatpush.msra.mxu0 0.0
      %2303 = vmatpush.msra.mxu0 0.0
      %2304 = vmatpush.msra.mxu0 0.0
      %2305 = vmatpush.msra.mxu0 0.0
      %2306 = vmatpush.msra.mxu0 0.0
      %2307 = vmatpush.msra.mxu0 0.0
      %2308 = vmatpush.msra.mxu0 0.0
      %2309 = vmatpush.msra.mxu0 0.0
      %2310 = vmatpush.msra.mxu0 %v1844
      %2311 = vmatpush.msra.mxu0 %v1840
      %2312 = vmatpush.msra.mxu0 %v1836
      %2313 = vmatpush.msra.mxu0 %v1832
      %2314 = vmatpush.msra.mxu0 %v1828
      %2315 = vmatpush.msra.mxu0 %v1824
      %2316 = vmatpush.msra.mxu0 %v1820
      %2317 = vmatpush.msra.mxu0 %v1816
      %2318 = vmatmul.f32.gmra.mxu0 %v2197
      %v2319 = vpop.f32.mrf.mxu0
      %v2320 = vadd.f32 %v2132, %v2319
      %2321 = vmatmul.f32.gmra.mxu0 %v2200
      %v2322 = vpop.f32.mrf.mxu0
      %v2323 = vadd.f32 %v2135, %v2322
      %2324 = vmatmul.f32.gmra.mxu0 %v2203
      %v2325 = vpop.f32.mrf.mxu0
      %v2326 = vadd.f32 %v2138, %v2325
      %2327 = vmatmul.f32.gmra.mxu0 %v2206
      %v2328 = vpop.f32.mrf.mxu0
      %v2329 = vadd.f32 %v2141, %v2328
      %2330 = vmatmul.f32.gmra.mxu0 %v2209
      %v2331 = vpop.f32.mrf.mxu0
      %v2332 = vadd.f32 %v2144, %v2331
      %2333 = vmatmul.f32.gmra.mxu0 %v2212
      %v2334 = vpop.f32.mrf.mxu0
      %v2335 = vadd.f32 %v2147, %v2334
      %2336 = vmatmul.f32.gmra.mxu0 %v2215
      %v2337 = vpop.f32.mrf.mxu0
      %v2338 = vadd.f32 %v2150, %v2337
      %2339 = vmatmul.f32.gmra.mxu0 %v2218
      %v2340 = vpop.f32.mrf.mxu0
      %v2341 = vadd.f32 %v2153, %v2340
      %2342 = vdwg.mxu0
      %2343 = vmatpush.msra.mxu0 0.0
      %2344 = vmatpush.msra.mxu0 0.0
      %2345 = vmatpush.msra.mxu0 0.0
      %2346 = vmatpush.msra.mxu0 0.0
      %2347 = vmatpush.msra.mxu0 0.0
      %2348 = vmatpush.msra.mxu0 0.0
      %2349 = vmatpush.msra.mxu0 0.0
      %2350 = vmatpush.msra.mxu0 0.0
      %2351 = vmatpush.msra.mxu0 %v1845
      %2352 = vmatpush.msra.mxu0 %v1841
      %2353 = vmatpush.msra.mxu0 %v1837
      %2354 = vmatpush.msra.mxu0 %v1833
      %2355 = vmatpush.msra.mxu0 %v1829
      %2356 = vmatpush.msra.mxu0 %v1825
      %2357 = vmatpush.msra.mxu0 %v1821
      %2358 = vmatpush.msra.mxu0 %v1817
      %2359 = vmatmul.f32.gmra.mxu0 %v2197
      %v2360 = vpop.f32.mrf.mxu0
      %v2361 = vadd.f32 %v2173, %v2360
      %2362 = vmatmul.f32.gmra.mxu0 %v2200
      %v2363 = vpop.f32.mrf.mxu0
      %v2364 = vadd.f32 %v2176, %v2363
      %2365 = vmatmul.f32.gmra.mxu0 %v2203
      %v2366 = vpop.f32.mrf.mxu0
      %v2367 = vadd.f32 %v2179, %v2366
      %2368 = vmatmul.f32.gmra.mxu0 %v2206
      %v2369 = vpop.f32.mrf.mxu0
      %v2370 = vadd.f32 %v2182, %v2369
      %2371 = vmatmul.f32.gmra.mxu0 %v2209
      %v2372 = vpop.f32.mrf.mxu0
      %v2373 = vadd.f32 %v2185, %v2372
      %2374 = vmatmul.f32.gmra.mxu0 %v2212
      %v2375 = vpop.f32.mrf.mxu0
      %v2376 = vadd.f32 %v2188, %v2375
      %2377 = vmatmul.f32.gmra.mxu0 %v2215
      %v2378 = vpop.f32.mrf.mxu0
      %v2379 = vadd.f32 %v2191, %v2378
      %2380 = vmatmul.f32.gmra.mxu0 %v2218
      %v2381 = vpop.f32.mrf.mxu0
      %v2382 = vadd.f32 %v2194, %v2381
      %2383 = vdwg.mxu0
      %s2384 = scalar_lea.vmem %s3, 128
      %v2385 = vld [vmem:[%s2384] sm:$0xff]
      %v2386 = vld [vmem:[%s2384 + $0x8] sm:$0xff]
      %v2387 = vld [vmem:[%s2384 + $0x10] sm:$0xff]
      %v2388 = vld [vmem:[%s2384 + $0x18] sm:$0xff]
      %v2389 = vld [vmem:[%s2384 + $0x20] sm:$0xff]
      %v2390 = vld [vmem:[%s2384 + $0x28] sm:$0xff]
      %v2391 = vld [vmem:[%s2384 + $0x30] sm:$0xff]
      %v2392 = vld [vmem:[%s2384 + $0x38] sm:$0xff]
      %2393 = vrot.lane.b32.xlu0 %v1814, 126
      %v2394 = vpop.permute.xlu0 %2393
      %2395 = vrot.lane.b32.xlu0 %v1815, 126
      %v2396 = vpop.permute.xlu0 %2395
      %2397 = vrot.lane.b32.xlu0 %v1816, 126
      %v2398 = vpop.permute.xlu0 %2397
      %2399 = vrot.lane.b32.xlu0 %v1817, 126
      %v2400 = vpop.permute.xlu0 %2399
      %2401 = vrot.lane.b32.xlu0 %v1818, 126
      %v2402 = vpop.permute.xlu0 %2401
      %2403 = vrot.lane.b32.xlu0 %v1819, 126
      %v2404 = vpop.permute.xlu0 %2403
      %2405 = vrot.lane.b32.xlu0 %v1820, 126
      %v2406 = vpop.permute.xlu0 %2405
      %2407 = vrot.lane.b32.xlu0 %v1821, 126
      %v2408 = vpop.permute.xlu0 %2407
      %2409 = vrot.lane.b32.xlu0 %v1822, 126
      %v2410 = vpop.permute.xlu0 %2409
      %2411 = vrot.lane.b32.xlu0 %v1823, 126
      %v2412 = vpop.permute.xlu0 %2411
      %2413 = vrot.lane.b32.xlu0 %v1824, 126
      %v2414 = vpop.permute.xlu0 %2413
      %2415 = vrot.lane.b32.xlu0 %v1825, 126
      %v2416 = vpop.permute.xlu0 %2415
      %2417 = vrot.lane.b32.xlu0 %v1826, 126
      %v2418 = vpop.permute.xlu0 %2417
      %2419 = vrot.lane.b32.xlu0 %v1827, 126
      %v2420 = vpop.permute.xlu0 %2419
      %2421 = vrot.lane.b32.xlu0 %v1828, 126
      %v2422 = vpop.permute.xlu0 %2421
      %2423 = vrot.lane.b32.xlu0 %v1829, 126
      %v2424 = vpop.permute.xlu0 %2423
      %2425 = vrot.lane.b32.xlu0 %v1830, 126
      %v2426 = vpop.permute.xlu0 %2425
      %2427 = vrot.lane.b32.xlu0 %v1831, 126
      %v2428 = vpop.permute.xlu0 %2427
      %2429 = vrot.lane.b32.xlu0 %v1832, 126
      %v2430 = vpop.permute.xlu0 %2429
      %2431 = vrot.lane.b32.xlu0 %v1833, 126
      %v2432 = vpop.permute.xlu0 %2431
      %2433 = vrot.lane.b32.xlu0 %v1834, 126
      %v2434 = vpop.permute.xlu0 %2433
      %2435 = vrot.lane.b32.xlu0 %v1835, 126
      %v2436 = vpop.permute.xlu0 %2435
      %2437 = vrot.lane.b32.xlu0 %v1836, 126
      %v2438 = vpop.permute.xlu0 %2437
      %2439 = vrot.lane.b32.xlu0 %v1837, 126
      %v2440 = vpop.permute.xlu0 %2439
      %2441 = vrot.lane.b32.xlu0 %v1838, 126
      %v2442 = vpop.permute.xlu0 %2441
      %2443 = vrot.lane.b32.xlu0 %v1839, 126
      %v2444 = vpop.permute.xlu0 %2443
      %2445 = vrot.lane.b32.xlu0 %v1840, 126
      %v2446 = vpop.permute.xlu0 %2445
      %2447 = vrot.lane.b32.xlu0 %v1841, 126
      %v2448 = vpop.permute.xlu0 %2447
      %2449 = vrot.lane.b32.xlu0 %v1842, 126
      %v2450 = vpop.permute.xlu0 %2449
      %2451 = vrot.lane.b32.xlu0 %v1843, 126
      %v2452 = vpop.permute.xlu0 %2451
      %2453 = vrot.lane.b32.xlu0 %v1844, 126
      %v2454 = vpop.permute.xlu0 %2453
      %2455 = vrot.lane.b32.xlu0 %v1845, 126
      %v2456 = vpop.permute.xlu0 %2455
      %v2457 = vsel %vm1092, %v2394, %v2396
      %v2458 = vsel %vm1092, %v2396, %v2398
      %v2459 = vsel %vm1092, %v2398, %v2400
      %v2460 = vsel %vm1092, %v2402, %v2404
      %v2461 = vsel %vm1092, %v2404, %v2406
      %v2462 = vsel %vm1092, %v2406, %v2408
      %v2463 = vsel %vm1092, %v2410, %v2412
      %v2464 = vsel %vm1092, %v2412, %v2414
      %v2465 = vsel %vm1092, %v2414, %v2416
      %v2466 = vsel %vm1092, %v2418, %v2420
      %v2467 = vsel %vm1092, %v2420, %v2422
      %v2468 = vsel %vm1092, %v2422, %v2424
      %v2469 = vsel %vm1092, %v2426, %v2428
      %v2470 = vsel %vm1092, %v2428, %v2430
      %v2471 = vsel %vm1092, %v2430, %v2432
      %v2472 = vsel %vm1092, %v2434, %v2436
      %v2473 = vsel %vm1092, %v2436, %v2438
      %v2474 = vsel %vm1092, %v2438, %v2440
      %v2475 = vsel %vm1092, %v2442, %v2444
      %v2476 = vsel %vm1092, %v2444, %v2446
      %v2477 = vsel %vm1092, %v2446, %v2448
      %v2478 = vsel %vm1092, %v2450, %v2452
      %v2479 = vsel %vm1092, %v2452, %v2454
      %v2480 = vsel %vm1092, %v2454, %v2456
      %v2514 = vsel %vm2007, %v2385, 0
      %v2517 = vsel %vm2007, %v2386, 0
      %v2520 = vsel %vm2007, %v2387, 0
      %v2523 = vsel %vm2007, %v2388, 0
      %v2526 = vsel %vm2007, %v2389, 0
      %v2529 = vsel %vm2007, %v2390, 0
      %v2532 = vsel %vm2007, %v2391, 0
      %v2535 = vsel %vm2007, %v2392, 0
      %2537 = vmatpush.msra.mxu0 0.0
      %2538 = vmatpush.msra.mxu0 0.0
      %2539 = vmatpush.msra.mxu0 0.0
      %2540 = vmatpush.msra.mxu0 0.0
      %2541 = vmatpush.msra.mxu0 0.0
      %2542 = vmatpush.msra.mxu0 0.0
      %2543 = vmatpush.msra.mxu0 0.0
      %2544 = vmatpush.msra.mxu0 0.0
      %2545 = vmatpush.msra.mxu0 %v2478
      %2546 = vmatpush.msra.mxu0 %v2475
      %2547 = vmatpush.msra.mxu0 %v2472
      %2548 = vmatpush.msra.mxu0 %v2469
      %2549 = vmatpush.msra.mxu0 %v2466
      %2550 = vmatpush.msra.mxu0 %v2463
      %2551 = vmatpush.msra.mxu0 %v2460
      %2552 = vmatpush.msra.mxu0 %v2457
      %2553 = vmatmul.f32.gmra.mxu0 %v2514
      %v2554 = vpop.f32.mrf.mxu0
      %v2555 = vadd.f32 0.0, %v2554
      %2556 = vmatmul.f32.gmra.mxu0 %v2517
      %v2557 = vpop.f32.mrf.mxu0
      %v2558 = vadd.f32 0.0, %v2557
      %2559 = vmatmul.f32.gmra.mxu0 %v2520
      %v2560 = vpop.f32.mrf.mxu0
      %v2561 = vadd.f32 0.0, %v2560
      %2562 = vmatmul.f32.gmra.mxu0 %v2523
      %v2563 = vpop.f32.mrf.mxu0
      %v2564 = vadd.f32 0.0, %v2563
      %2565 = vmatmul.f32.gmra.mxu0 %v2526
      %v2566 = vpop.f32.mrf.mxu0
      %v2567 = vadd.f32 0.0, %v2566
      %2568 = vmatmul.f32.gmra.mxu0 %v2529
      %v2569 = vpop.f32.mrf.mxu0
      %v2570 = vadd.f32 0.0, %v2569
      %2571 = vmatmul.f32.gmra.mxu0 %v2532
      %v2572 = vpop.f32.mrf.mxu0
      %v2573 = vadd.f32 0.0, %v2572
      %2574 = vmatmul.f32.gmra.mxu0 %v2535
      %v2575 = vpop.f32.mrf.mxu0
      %v2576 = vadd.f32 0.0, %v2575
      %2577 = vdwg.mxu0
      %2578 = vmatpush.msra.mxu0 0.0
      %2579 = vmatpush.msra.mxu0 0.0
      %2580 = vmatpush.msra.mxu0 0.0
      %2581 = vmatpush.msra.mxu0 0.0
      %2582 = vmatpush.msra.mxu0 0.0
      %2583 = vmatpush.msra.mxu0 0.0
      %2584 = vmatpush.msra.mxu0 0.0
      %2585 = vmatpush.msra.mxu0 0.0
      %2586 = vmatpush.msra.mxu0 %v2479
      %2587 = vmatpush.msra.mxu0 %v2476
      %2588 = vmatpush.msra.mxu0 %v2473
      %2589 = vmatpush.msra.mxu0 %v2470
      %2590 = vmatpush.msra.mxu0 %v2467
      %2591 = vmatpush.msra.mxu0 %v2464
      %2592 = vmatpush.msra.mxu0 %v2461
      %2593 = vmatpush.msra.mxu0 %v2458
      %2594 = vmatmul.f32.gmra.mxu0 %v2514
      %v2595 = vpop.f32.mrf.mxu0
      %v2596 = vadd.f32 0.0, %v2595
      %2597 = vmatmul.f32.gmra.mxu0 %v2517
      %v2598 = vpop.f32.mrf.mxu0
      %v2599 = vadd.f32 0.0, %v2598
      %2600 = vmatmul.f32.gmra.mxu0 %v2520
      %v2601 = vpop.f32.mrf.mxu0
      %v2602 = vadd.f32 0.0, %v2601
      %2603 = vmatmul.f32.gmra.mxu0 %v2523
      %v2604 = vpop.f32.mrf.mxu0
      %v2605 = vadd.f32 0.0, %v2604
      %2606 = vmatmul.f32.gmra.mxu0 %v2526
      %v2607 = vpop.f32.mrf.mxu0
      %v2608 = vadd.f32 0.0, %v2607
      %2609 = vmatmul.f32.gmra.mxu0 %v2529
      %v2610 = vpop.f32.mrf.mxu0
      %v2611 = vadd.f32 0.0, %v2610
      %2612 = vmatmul.f32.gmra.mxu0 %v2532
      %v2613 = vpop.f32.mrf.mxu0
      %v2614 = vadd.f32 0.0, %v2613
      %2615 = vmatmul.f32.gmra.mxu0 %v2535
      %v2616 = vpop.f32.mrf.mxu0
      %v2617 = vadd.f32 0.0, %v2616
      %2618 = vdwg.mxu0
      %2619 = vmatpush.msra.mxu0 0.0
      %2620 = vmatpush.msra.mxu0 0.0
      %2621 = vmatpush.msra.mxu0 0.0
      %2622 = vmatpush.msra.mxu0 0.0
      %2623 = vmatpush.msra.mxu0 0.0
      %2624 = vmatpush.msra.mxu0 0.0
      %2625 = vmatpush.msra.mxu0 0.0
      %2626 = vmatpush.msra.mxu0 0.0
      %2627 = vmatpush.msra.mxu0 %v2480
      %2628 = vmatpush.msra.mxu0 %v2477
      %2629 = vmatpush.msra.mxu0 %v2474
      %2630 = vmatpush.msra.mxu0 %v2471
      %2631 = vmatpush.msra.mxu0 %v2468
      %2632 = vmatpush.msra.mxu0 %v2465
      %2633 = vmatpush.msra.mxu0 %v2462
      %2634 = vmatpush.msra.mxu0 %v2459
      %2635 = vmatmul.f32.gmra.mxu0 %v2514
      %v2636 = vpop.f32.mrf.mxu0
      %v2637 = vadd.f32 0.0, %v2636
      %2638 = vmatmul.f32.gmra.mxu0 %v2517
      %v2639 = vpop.f32.mrf.mxu0
      %v2640 = vadd.f32 0.0, %v2639
      %2641 = vmatmul.f32.gmra.mxu0 %v2520
      %v2642 = vpop.f32.mrf.mxu0
      %v2643 = vadd.f32 0.0, %v2642
      %2644 = vmatmul.f32.gmra.mxu0 %v2523
      %v2645 = vpop.f32.mrf.mxu0
      %v2646 = vadd.f32 0.0, %v2645
      %2647 = vmatmul.f32.gmra.mxu0 %v2526
      %v2648 = vpop.f32.mrf.mxu0
      %v2649 = vadd.f32 0.0, %v2648
      %2650 = vmatmul.f32.gmra.mxu0 %v2529
      %v2651 = vpop.f32.mrf.mxu0
      %v2652 = vadd.f32 0.0, %v2651
      %2653 = vmatmul.f32.gmra.mxu0 %v2532
      %v2654 = vpop.f32.mrf.mxu0
      %v2655 = vadd.f32 0.0, %v2654
      %2656 = vmatmul.f32.gmra.mxu0 %v2535
      %v2657 = vpop.f32.mrf.mxu0
      %v2658 = vadd.f32 0.0, %v2657
      %2659 = vdwg.mxu0
      %2660 = vmatpush.msra.mxu0 0.0
      %2661 = vmatpush.msra.mxu0 0.0
      %2662 = vmatpush.msra.mxu0 0.0
      %2663 = vmatpush.msra.mxu0 0.0
      %2664 = vmatpush.msra.mxu0 0.0
      %2665 = vmatpush.msra.mxu0 0.0
      %2666 = vmatpush.msra.mxu0 0.0
      %2667 = vmatpush.msra.mxu0 0.0
      %2668 = vmatpush.msra.mxu0 %v2456
      %2669 = vmatpush.msra.mxu0 %v2448
      %2670 = vmatpush.msra.mxu0 %v2440
      %2671 = vmatpush.msra.mxu0 %v2432
      %2672 = vmatpush.msra.mxu0 %v2424
      %2673 = vmatpush.msra.mxu0 %v2416
      %2674 = vmatpush.msra.mxu0 %v2408
      %2675 = vmatpush.msra.mxu0 %v2400
      %2676 = vmatmul.f32.gmra.mxu0 %v2514
      %v2677 = vpop.f32.mrf.mxu0
      %v2678 = vadd.f32 0.0, %v2677
      %2679 = vmatmul.f32.gmra.mxu0 %v2517
      %v2680 = vpop.f32.mrf.mxu0
      %v2681 = vadd.f32 0.0, %v2680
      %2682 = vmatmul.f32.gmra.mxu0 %v2520
      %v2683 = vpop.f32.mrf.mxu0
      %v2684 = vadd.f32 0.0, %v2683
      %2685 = vmatmul.f32.gmra.mxu0 %v2523
      %v2686 = vpop.f32.mrf.mxu0
      %v2687 = vadd.f32 0.0, %v2686
      %2688 = vmatmul.f32.gmra.mxu0 %v2526
      %v2689 = vpop.f32.mrf.mxu0
      %v2690 = vadd.f32 0.0, %v2689
      %2691 = vmatmul.f32.gmra.mxu0 %v2529
      %v2692 = vpop.f32.mrf.mxu0
      %v2693 = vadd.f32 0.0, %v2692
      %2694 = vmatmul.f32.gmra.mxu0 %v2532
      %v2695 = vpop.f32.mrf.mxu0
      %v2696 = vadd.f32 0.0, %v2695
      %2697 = vmatmul.f32.gmra.mxu0 %v2535
      %v2698 = vpop.f32.mrf.mxu0
      %v2699 = vadd.f32 0.0, %v2698
      %2700 = vdwg.mxu0
      %v2701 = vadd.f32 %v2238, %v2555
      %v2702 = vadd.f32 %v2279, %v2596
      %v2703 = vadd.f32 %v2320, %v2637
      %v2704 = vadd.f32 %v2361, %v2678
      %v2705 = vadd.f32 %v2241, %v2558
      %v2706 = vadd.f32 %v2282, %v2599
      %v2707 = vadd.f32 %v2323, %v2640
      %v2708 = vadd.f32 %v2364, %v2681
      %v2709 = vadd.f32 %v2244, %v2561
      %v2710 = vadd.f32 %v2285, %v2602
      %v2711 = vadd.f32 %v2326, %v2643
      %v2712 = vadd.f32 %v2367, %v2684
      %v2713 = vadd.f32 %v2247, %v2564
      %v2714 = vadd.f32 %v2288, %v2605
      %v2715 = vadd.f32 %v2329, %v2646
      %v2716 = vadd.f32 %v2370, %v2687
      %v2717 = vadd.f32 %v2250, %v2567
      %v2718 = vadd.f32 %v2291, %v2608
      %v2719 = vadd.f32 %v2332, %v2649
      %v2720 = vadd.f32 %v2373, %v2690
      %v2721 = vadd.f32 %v2253, %v2570
      %v2722 = vadd.f32 %v2294, %v2611
      %v2723 = vadd.f32 %v2335, %v2652
      %v2724 = vadd.f32 %v2376, %v2693
      %v2725 = vadd.f32 %v2256, %v2573
      %v2726 = vadd.f32 %v2297, %v2614
      %v2727 = vadd.f32 %v2338, %v2655
      %v2728 = vadd.f32 %v2379, %v2696
      %v2729 = vadd.f32 %v2259, %v2576
      %v2730 = vadd.f32 %v2300, %v2617
      %v2731 = vadd.f32 %v2341, %v2658
      %v2732 = vadd.f32 %v2382, %v2699
      %s2733 = scalar_lea.vmem %s3, 192
      %v2734 = vld [vmem:[%s2733] sm:$0xff]
      %v2735 = vld [vmem:[%s2733 + $0x8] sm:$0xff]
      %v2736 = vld [vmem:[%s2733 + $0x10] sm:$0xff]
      %v2737 = vld [vmem:[%s2733 + $0x18] sm:$0xff]
      %v2738 = vld [vmem:[%s2733 + $0x20] sm:$0xff]
      %v2739 = vld [vmem:[%s2733 + $0x28] sm:$0xff]
      %v2740 = vld [vmem:[%s2733 + $0x30] sm:$0xff]
      %v2741 = vld [vmem:[%s2733 + $0x38] sm:$0xff]
      %2742 = vrot.lane.b32.xlu0 %v1814, 125
      %v2743 = vpop.permute.xlu0 %2742
      %2744 = vrot.lane.b32.xlu0 %v1815, 125
      %v2745 = vpop.permute.xlu0 %2744
      %2746 = vrot.lane.b32.xlu0 %v1816, 125
      %v2747 = vpop.permute.xlu0 %2746
      %2748 = vrot.lane.b32.xlu0 %v1817, 125
      %v2749 = vpop.permute.xlu0 %2748
      %2750 = vrot.lane.b32.xlu0 %v1818, 125
      %v2751 = vpop.permute.xlu0 %2750
      %2752 = vrot.lane.b32.xlu0 %v1819, 125
      %v2753 = vpop.permute.xlu0 %2752
      %2754 = vrot.lane.b32.xlu0 %v1820, 125
      %v2755 = vpop.permute.xlu0 %2754
      %2756 = vrot.lane.b32.xlu0 %v1821, 125
      %v2757 = vpop.permute.xlu0 %2756
      %2758 = vrot.lane.b32.xlu0 %v1822, 125
      %v2759 = vpop.permute.xlu0 %2758
      %2760 = vrot.lane.b32.xlu0 %v1823, 125
      %v2761 = vpop.permute.xlu0 %2760
      %2762 = vrot.lane.b32.xlu0 %v1824, 125
      %v2763 = vpop.permute.xlu0 %2762
      %2764 = vrot.lane.b32.xlu0 %v1825, 125
      %v2765 = vpop.permute.xlu0 %2764
      %2766 = vrot.lane.b32.xlu0 %v1826, 125
      %v2767 = vpop.permute.xlu0 %2766
      %2768 = vrot.lane.b32.xlu0 %v1827, 125
      %v2769 = vpop.permute.xlu0 %2768
      %2770 = vrot.lane.b32.xlu0 %v1828, 125
      %v2771 = vpop.permute.xlu0 %2770
      %2772 = vrot.lane.b32.xlu0 %v1829, 125
      %v2773 = vpop.permute.xlu0 %2772
      %2774 = vrot.lane.b32.xlu0 %v1830, 125
      %v2775 = vpop.permute.xlu0 %2774
      %2776 = vrot.lane.b32.xlu0 %v1831, 125
      %v2777 = vpop.permute.xlu0 %2776
      %2778 = vrot.lane.b32.xlu0 %v1832, 125
      %v2779 = vpop.permute.xlu0 %2778
      %2780 = vrot.lane.b32.xlu0 %v1833, 125
      %v2781 = vpop.permute.xlu0 %2780
      %2782 = vrot.lane.b32.xlu0 %v1834, 125
      %v2783 = vpop.permute.xlu0 %2782
      %2784 = vrot.lane.b32.xlu0 %v1835, 125
      %v2785 = vpop.permute.xlu0 %2784
      %2786 = vrot.lane.b32.xlu0 %v1836, 125
      %v2787 = vpop.permute.xlu0 %2786
      %2788 = vrot.lane.b32.xlu0 %v1837, 125
      %v2789 = vpop.permute.xlu0 %2788
      %2790 = vrot.lane.b32.xlu0 %v1838, 125
      %v2791 = vpop.permute.xlu0 %2790
      %2792 = vrot.lane.b32.xlu0 %v1839, 125
      %v2793 = vpop.permute.xlu0 %2792
      %2794 = vrot.lane.b32.xlu0 %v1840, 125
      %v2795 = vpop.permute.xlu0 %2794
      %2796 = vrot.lane.b32.xlu0 %v1841, 125
      %v2797 = vpop.permute.xlu0 %2796
      %2798 = vrot.lane.b32.xlu0 %v1842, 125
      %v2799 = vpop.permute.xlu0 %2798
      %2800 = vrot.lane.b32.xlu0 %v1843, 125
      %v2801 = vpop.permute.xlu0 %2800
      %2802 = vrot.lane.b32.xlu0 %v1844, 125
      %v2803 = vpop.permute.xlu0 %2802
      %2804 = vrot.lane.b32.xlu0 %v1845, 125
      %v2805 = vpop.permute.xlu0 %2804
      %v2806 = vsel %vm1401, %v2743, %v2745
      %v2807 = vsel %vm1401, %v2745, %v2747
      %v2808 = vsel %vm1401, %v2747, %v2749
      %v2809 = vsel %vm1401, %v2751, %v2753
      %v2810 = vsel %vm1401, %v2753, %v2755
      %v2811 = vsel %vm1401, %v2755, %v2757
      %v2812 = vsel %vm1401, %v2759, %v2761
      %v2813 = vsel %vm1401, %v2761, %v2763
      %v2814 = vsel %vm1401, %v2763, %v2765
      %v2815 = vsel %vm1401, %v2767, %v2769
      %v2816 = vsel %vm1401, %v2769, %v2771
      %v2817 = vsel %vm1401, %v2771, %v2773
      %v2818 = vsel %vm1401, %v2775, %v2777
      %v2819 = vsel %vm1401, %v2777, %v2779
      %v2820 = vsel %vm1401, %v2779, %v2781
      %v2821 = vsel %vm1401, %v2783, %v2785
      %v2822 = vsel %vm1401, %v2785, %v2787
      %v2823 = vsel %vm1401, %v2787, %v2789
      %v2824 = vsel %vm1401, %v2791, %v2793
      %v2825 = vsel %vm1401, %v2793, %v2795
      %v2826 = vsel %vm1401, %v2795, %v2797
      %v2827 = vsel %vm1401, %v2799, %v2801
      %v2828 = vsel %vm1401, %v2801, %v2803
      %v2829 = vsel %vm1401, %v2803, %v2805
      %v2863 = vsel %vm2007, %v2734, 0
      %v2866 = vsel %vm2007, %v2735, 0
      %v2869 = vsel %vm2007, %v2736, 0
      %v2872 = vsel %vm2007, %v2737, 0
      %v2875 = vsel %vm2007, %v2738, 0
      %v2878 = vsel %vm2007, %v2739, 0
      %v2881 = vsel %vm2007, %v2740, 0
      %v2884 = vsel %vm2007, %v2741, 0
      %2886 = vmatpush.msra.mxu0 0.0
      %2887 = vmatpush.msra.mxu0 0.0
      %2888 = vmatpush.msra.mxu0 0.0
      %2889 = vmatpush.msra.mxu0 0.0
      %2890 = vmatpush.msra.mxu0 0.0
      %2891 = vmatpush.msra.mxu0 0.0
      %2892 = vmatpush.msra.mxu0 0.0
      %2893 = vmatpush.msra.mxu0 0.0
      %2894 = vmatpush.msra.mxu0 %v2827
      %2895 = vmatpush.msra.mxu0 %v2824
      %2896 = vmatpush.msra.mxu0 %v2821
      %2897 = vmatpush.msra.mxu0 %v2818
      %2898 = vmatpush.msra.mxu0 %v2815
      %2899 = vmatpush.msra.mxu0 %v2812
      %2900 = vmatpush.msra.mxu0 %v2809
      %2901 = vmatpush.msra.mxu0 %v2806
      %2902 = vmatmul.f32.gmra.mxu0 %v2863
      %v2903 = vpop.f32.mrf.mxu0
      %v2904 = vadd.f32 0.0, %v2903
      %2905 = vmatmul.f32.gmra.mxu0 %v2866
      %v2906 = vpop.f32.mrf.mxu0
      %v2907 = vadd.f32 0.0, %v2906
      %2908 = vmatmul.f32.gmra.mxu0 %v2869
      %v2909 = vpop.f32.mrf.mxu0
      %v2910 = vadd.f32 0.0, %v2909
      %2911 = vmatmul.f32.gmra.mxu0 %v2872
      %v2912 = vpop.f32.mrf.mxu0
      %v2913 = vadd.f32 0.0, %v2912
      %2914 = vmatmul.f32.gmra.mxu0 %v2875
      %v2915 = vpop.f32.mrf.mxu0
      %v2916 = vadd.f32 0.0, %v2915
      %2917 = vmatmul.f32.gmra.mxu0 %v2878
      %v2918 = vpop.f32.mrf.mxu0
      %v2919 = vadd.f32 0.0, %v2918
      %2920 = vmatmul.f32.gmra.mxu0 %v2881
      %v2921 = vpop.f32.mrf.mxu0
      %v2922 = vadd.f32 0.0, %v2921
      %2923 = vmatmul.f32.gmra.mxu0 %v2884
      %v2924 = vpop.f32.mrf.mxu0
      %v2925 = vadd.f32 0.0, %v2924
      %2926 = vdwg.mxu0
      %2927 = vmatpush.msra.mxu0 0.0
      %2928 = vmatpush.msra.mxu0 0.0
      %2929 = vmatpush.msra.mxu0 0.0
      %2930 = vmatpush.msra.mxu0 0.0
      %2931 = vmatpush.msra.mxu0 0.0
      %2932 = vmatpush.msra.mxu0 0.0
      %2933 = vmatpush.msra.mxu0 0.0
      %2934 = vmatpush.msra.mxu0 0.0
      %2935 = vmatpush.msra.mxu0 %v2828
      %2936 = vmatpush.msra.mxu0 %v2825
      %2937 = vmatpush.msra.mxu0 %v2822
      %2938 = vmatpush.msra.mxu0 %v2819
      %2939 = vmatpush.msra.mxu0 %v2816
      %2940 = vmatpush.msra.mxu0 %v2813
      %2941 = vmatpush.msra.mxu0 %v2810
      %2942 = vmatpush.msra.mxu0 %v2807
      %2943 = vmatmul.f32.gmra.mxu0 %v2863
      %v2944 = vpop.f32.mrf.mxu0
      %v2945 = vadd.f32 0.0, %v2944
      %2946 = vmatmul.f32.gmra.mxu0 %v2866
      %v2947 = vpop.f32.mrf.mxu0
      %v2948 = vadd.f32 0.0, %v2947
      %2949 = vmatmul.f32.gmra.mxu0 %v2869
      %v2950 = vpop.f32.mrf.mxu0
      %v2951 = vadd.f32 0.0, %v2950
      %2952 = vmatmul.f32.gmra.mxu0 %v2872
      %v2953 = vpop.f32.mrf.mxu0
      %v2954 = vadd.f32 0.0, %v2953
      %2955 = vmatmul.f32.gmra.mxu0 %v2875
      %v2956 = vpop.f32.mrf.mxu0
      %v2957 = vadd.f32 0.0, %v2956
      %2958 = vmatmul.f32.gmra.mxu0 %v2878
      %v2959 = vpop.f32.mrf.mxu0
      %v2960 = vadd.f32 0.0, %v2959
      %2961 = vmatmul.f32.gmra.mxu0 %v2881
      %v2962 = vpop.f32.mrf.mxu0
      %v2963 = vadd.f32 0.0, %v2962
      %2964 = vmatmul.f32.gmra.mxu0 %v2884
      %v2965 = vpop.f32.mrf.mxu0
      %v2966 = vadd.f32 0.0, %v2965
      %2967 = vdwg.mxu0
      %2968 = vmatpush.msra.mxu0 0.0
      %2969 = vmatpush.msra.mxu0 0.0
      %2970 = vmatpush.msra.mxu0 0.0
      %2971 = vmatpush.msra.mxu0 0.0
      %2972 = vmatpush.msra.mxu0 0.0
      %2973 = vmatpush.msra.mxu0 0.0
      %2974 = vmatpush.msra.mxu0 0.0
      %2975 = vmatpush.msra.mxu0 0.0
      %2976 = vmatpush.msra.mxu0 %v2829
      %2977 = vmatpush.msra.mxu0 %v2826
      %2978 = vmatpush.msra.mxu0 %v2823
      %2979 = vmatpush.msra.mxu0 %v2820
      %2980 = vmatpush.msra.mxu0 %v2817
      %2981 = vmatpush.msra.mxu0 %v2814
      %2982 = vmatpush.msra.mxu0 %v2811
      %2983 = vmatpush.msra.mxu0 %v2808
      %2984 = vmatmul.f32.gmra.mxu0 %v2863
      %v2985 = vpop.f32.mrf.mxu0
      %v2986 = vadd.f32 0.0, %v2985
      %2987 = vmatmul.f32.gmra.mxu0 %v2866
      %v2988 = vpop.f32.mrf.mxu0
      %v2989 = vadd.f32 0.0, %v2988
      %2990 = vmatmul.f32.gmra.mxu0 %v2869
      %v2991 = vpop.f32.mrf.mxu0
      %v2992 = vadd.f32 0.0, %v2991
      %2993 = vmatmul.f32.gmra.mxu0 %v2872
      %v2994 = vpop.f32.mrf.mxu0
      %v2995 = vadd.f32 0.0, %v2994
      %2996 = vmatmul.f32.gmra.mxu0 %v2875
      %v2997 = vpop.f32.mrf.mxu0
      %v2998 = vadd.f32 0.0, %v2997
      %2999 = vmatmul.f32.gmra.mxu0 %v2878
      %v3000 = vpop.f32.mrf.mxu0
      %v3001 = vadd.f32 0.0, %v3000
      %3002 = vmatmul.f32.gmra.mxu0 %v2881
      %v3003 = vpop.f32.mrf.mxu0
      %v3004 = vadd.f32 0.0, %v3003
      %3005 = vmatmul.f32.gmra.mxu0 %v2884
      %v3006 = vpop.f32.mrf.mxu0
      %v3007 = vadd.f32 0.0, %v3006
      %3008 = vdwg.mxu0
      %3009 = vmatpush.msra.mxu0 0.0
      %3010 = vmatpush.msra.mxu0 0.0
      %3011 = vmatpush.msra.mxu0 0.0
      %3012 = vmatpush.msra.mxu0 0.0
      %3013 = vmatpush.msra.mxu0 0.0
      %3014 = vmatpush.msra.mxu0 0.0
      %3015 = vmatpush.msra.mxu0 0.0
      %3016 = vmatpush.msra.mxu0 0.0
      %3017 = vmatpush.msra.mxu0 %v2805
      %3018 = vmatpush.msra.mxu0 %v2797
      %3019 = vmatpush.msra.mxu0 %v2789
      %3020 = vmatpush.msra.mxu0 %v2781
      %3021 = vmatpush.msra.mxu0 %v2773
      %3022 = vmatpush.msra.mxu0 %v2765
      %3023 = vmatpush.msra.mxu0 %v2757
      %3024 = vmatpush.msra.mxu0 %v2749
      %3025 = vmatmul.f32.gmra.mxu0 %v2863
      %v3026 = vpop.f32.mrf.mxu0
      %v3027 = vadd.f32 0.0, %v3026
      %3028 = vmatmul.f32.gmra.mxu0 %v2866
      %v3029 = vpop.f32.mrf.mxu0
      %v3030 = vadd.f32 0.0, %v3029
      %3031 = vmatmul.f32.gmra.mxu0 %v2869
      %v3032 = vpop.f32.mrf.mxu0
      %v3033 = vadd.f32 0.0, %v3032
      %3034 = vmatmul.f32.gmra.mxu0 %v2872
      %v3035 = vpop.f32.mrf.mxu0
      %v3036 = vadd.f32 0.0, %v3035
      %3037 = vmatmul.f32.gmra.mxu0 %v2875
      %v3038 = vpop.f32.mrf.mxu0
      %v3039 = vadd.f32 0.0, %v3038
      %3040 = vmatmul.f32.gmra.mxu0 %v2878
      %v3041 = vpop.f32.mrf.mxu0
      %v3042 = vadd.f32 0.0, %v3041
      %3043 = vmatmul.f32.gmra.mxu0 %v2881
      %v3044 = vpop.f32.mrf.mxu0
      %v3045 = vadd.f32 0.0, %v3044
      %3046 = vmatmul.f32.gmra.mxu0 %v2884
      %v3047 = vpop.f32.mrf.mxu0
      %v3048 = vadd.f32 0.0, %v3047
      %3049 = vdwg.mxu0
      %v3050 = vadd.f32 %v2701, %v2904
      %v3051 = vadd.f32 %v2702, %v2945
      %v3052 = vadd.f32 %v2703, %v2986
      %v3053 = vadd.f32 %v2704, %v3027
      %v3054 = vadd.f32 %v2705, %v2907
      %v3055 = vadd.f32 %v2706, %v2948
      %v3056 = vadd.f32 %v2707, %v2989
      %v3057 = vadd.f32 %v2708, %v3030
      %v3058 = vadd.f32 %v2709, %v2910
      %v3059 = vadd.f32 %v2710, %v2951
      %v3060 = vadd.f32 %v2711, %v2992
      %v3061 = vadd.f32 %v2712, %v3033
      %v3062 = vadd.f32 %v2713, %v2913
      %v3063 = vadd.f32 %v2714, %v2954
      %v3064 = vadd.f32 %v2715, %v2995
      %v3065 = vadd.f32 %v2716, %v3036
      %v3066 = vadd.f32 %v2717, %v2916
      %v3067 = vadd.f32 %v2718, %v2957
      %v3068 = vadd.f32 %v2719, %v2998
      %v3069 = vadd.f32 %v2720, %v3039
      %v3070 = vadd.f32 %v2721, %v2919
      %v3071 = vadd.f32 %v2722, %v2960
      %v3072 = vadd.f32 %v2723, %v3001
      %v3073 = vadd.f32 %v2724, %v3042
      %v3074 = vadd.f32 %v2725, %v2922
      %v3075 = vadd.f32 %v2726, %v2963
      %v3076 = vadd.f32 %v2727, %v3004
      %v3077 = vadd.f32 %v2728, %v3045
      %v3078 = vadd.f32 %v2729, %v2925
      %v3079 = vadd.f32 %v2730, %v2966
      %v3080 = vadd.f32 %v2731, %v3007
      %v3081 = vadd.f32 %v2732, %v3048
      %v3082 = vld [vmem:[%s4] sm:$0xff]
      %v3083 = vld [vmem:[%s4 + $0x8] sm:$0xff]
      %v3084 = vld [vmem:[%s4 + $0x10] sm:$0xff]
      %v3085 = vld [vmem:[%s4 + $0x18] sm:$0xff]
      %v3086 = vld [vmem:[%s4 + $0x20] sm:$0xff]
      %v3087 = vld [vmem:[%s4 + $0x28] sm:$0xff]
      %v3088 = vld [vmem:[%s4 + $0x30] sm:$0xff]
      %v3089 = vld [vmem:[%s4 + $0x38] sm:$0xff]
      %3091 = vset.pattern.permute.xlu0 0
      %3092 = vperm.xlu0 %3091, %v3082
      %v3093 = vpop.permute.xlu0 %3092
      %3096 = vset.pattern.permute.xlu0 0
      %3097 = vperm.xlu0 %3096, %v3083
      %v3098 = vpop.permute.xlu0 %3097
      %3101 = vset.pattern.permute.xlu0 0
      %3102 = vperm.xlu0 %3101, %v3084
      %v3103 = vpop.permute.xlu0 %3102
      %3106 = vset.pattern.permute.xlu0 0
      %3107 = vperm.xlu0 %3106, %v3085
      %v3108 = vpop.permute.xlu0 %3107
      %3111 = vset.pattern.permute.xlu0 0
      %3112 = vperm.xlu0 %3111, %v3086
      %v3113 = vpop.permute.xlu0 %3112
      %3116 = vset.pattern.permute.xlu0 0
      %3117 = vperm.xlu0 %3116, %v3087
      %v3118 = vpop.permute.xlu0 %3117
      %3121 = vset.pattern.permute.xlu0 0
      %3122 = vperm.xlu0 %3121, %v3088
      %v3123 = vpop.permute.xlu0 %3122
      %3126 = vset.pattern.permute.xlu0 0
      %3127 = vperm.xlu0 %3126, %v3089
      %v3128 = vpop.permute.xlu0 %3127
      %v3130 = vadd.f32 %v3050, %v3093
      %v3131 = vadd.f32 %v3051, %v3093
      %v3132 = vadd.f32 %v3052, %v3093
      %v3133 = vadd.f32 %v3053, %v3093
      %v3134 = vadd.f32 %v3054, %v3098
      %v3135 = vadd.f32 %v3055, %v3098
      %v3136 = vadd.f32 %v3056, %v3098
      %v3137 = vadd.f32 %v3057, %v3098
      %v3138 = vadd.f32 %v3058, %v3103
      %v3139 = vadd.f32 %v3059, %v3103
      %v3140 = vadd.f32 %v3060, %v3103
      %v3141 = vadd.f32 %v3061, %v3103
      %v3142 = vadd.f32 %v3062, %v3108
      %v3143 = vadd.f32 %v3063, %v3108
      %v3144 = vadd.f32 %v3064, %v3108
      %v3145 = vadd.f32 %v3065, %v3108
      %v3146 = vadd.f32 %v3066, %v3113
      %v3147 = vadd.f32 %v3067, %v3113
      %v3148 = vadd.f32 %v3068, %v3113
      %v3149 = vadd.f32 %v3069, %v3113
      %v3150 = vadd.f32 %v3070, %v3118
      %v3151 = vadd.f32 %v3071, %v3118
      %v3152 = vadd.f32 %v3072, %v3118
      %v3153 = vadd.f32 %v3073, %v3118
      %v3154 = vadd.f32 %v3074, %v3123
      %v3155 = vadd.f32 %v3075, %v3123
      %v3156 = vadd.f32 %v3076, %v3123
      %v3157 = vadd.f32 %v3077, %v3123
      %v3158 = vadd.f32 %v3078, %v3128
      %v3159 = vadd.f32 %v3079, %v3128
      %v3160 = vadd.f32 %v3080, %v3128
      %v3161 = vadd.f32 %v3081, %v3128
      %v3162 = vmax.f32 %v3130, 0.0
      %v3163 = vmax.f32 %v3131, 0.0
      %v3164 = vmax.f32 %v3132, 0.0
      %v3165 = vmax.f32 %v3133, 0.0
      %v3166 = vmax.f32 %v3134, 0.0
      %v3167 = vmax.f32 %v3135, 0.0
      %v3168 = vmax.f32 %v3136, 0.0
      %v3169 = vmax.f32 %v3137, 0.0
      %v3170 = vmax.f32 %v3138, 0.0
      %v3171 = vmax.f32 %v3139, 0.0
      %v3172 = vmax.f32 %v3140, 0.0
      %v3173 = vmax.f32 %v3141, 0.0
      %v3174 = vmax.f32 %v3142, 0.0
      %v3175 = vmax.f32 %v3143, 0.0
      %v3176 = vmax.f32 %v3144, 0.0
      %v3177 = vmax.f32 %v3145, 0.0
      %v3178 = vmax.f32 %v3146, 0.0
      %v3179 = vmax.f32 %v3147, 0.0
      %v3180 = vmax.f32 %v3148, 0.0
      %v3181 = vmax.f32 %v3149, 0.0
      %v3182 = vmax.f32 %v3150, 0.0
      %v3183 = vmax.f32 %v3151, 0.0
      %v3184 = vmax.f32 %v3152, 0.0
      %v3185 = vmax.f32 %v3153, 0.0
      %v3186 = vmax.f32 %v3154, 0.0
      %v3187 = vmax.f32 %v3155, 0.0
      %v3188 = vmax.f32 %v3156, 0.0
      %v3189 = vmax.f32 %v3157, 0.0
      %v3190 = vmax.f32 %v3158, 0.0
      %v3191 = vmax.f32 %v3159, 0.0
      %v3192 = vmax.f32 %v3160, 0.0
      %v3193 = vmax.f32 %v3161, 0.0
      %3194 = vst [vmem:[#allocation3] sm:$0xff] %v3162
      %3195 = vst [vmem:[#allocation3 + $0x8] sm:$0xff] %v3163
      %3196 = vst [vmem:[#allocation3 + $0x10] sm:$0xff] %v3164
      %vm3197 = vcmask 80896
      %3198 = vst.msk [vmem:[#allocation3 + $0x18] sm:$0xff] %vm3197, %v3165
      %3199 = vst [vmem:[#allocation3 + $0x20] sm:$0xff] %v3166
      %3200 = vst [vmem:[#allocation3 + $0x28] sm:$0xff] %v3167
      %3201 = vst [vmem:[#allocation3 + $0x30] sm:$0xff] %v3168
      %3202 = vst.msk [vmem:[#allocation3 + $0x38] sm:$0xff] %vm3197, %v3169
      %3203 = vst [vmem:[#allocation3 + $0x40] sm:$0xff] %v3170
      %3204 = vst [vmem:[#allocation3 + $0x48] sm:$0xff] %v3171
      %3205 = vst [vmem:[#allocation3 + $0x50] sm:$0xff] %v3172
      %3206 = vst.msk [vmem:[#allocation3 + $0x58] sm:$0xff] %vm3197, %v3173
      %3207 = vst [vmem:[#allocation3 + $0x60] sm:$0xff] %v3174
      %3208 = vst [vmem:[#allocation3 + $0x68] sm:$0xff] %v3175
      %3209 = vst [vmem:[#allocation3 + $0x70] sm:$0xff] %v3176
      %3210 = vst.msk [vmem:[#allocation3 + $0x78] sm:$0xff] %vm3197, %v3177
      %3211 = vst [vmem:[#allocation3 + $0x80] sm:$0xff] %v3178
      %3212 = vst [vmem:[#allocation3 + $0x88] sm:$0xff] %v3179
      %3213 = vst [vmem:[#allocation3 + $0x90] sm:$0xff] %v3180
      %3214 = vst.msk [vmem:[#allocation3 + $0x98] sm:$0xff] %vm3197, %v3181
      %3215 = vst [vmem:[#allocation3 + $0xa0] sm:$0xff] %v3182
      %3216 = vst [vmem:[#allocation3 + $0xa8] sm:$0xff] %v3183
      %3217 = vst [vmem:[#allocation3 + $0xb0] sm:$0xff] %v3184
      %3218 = vst.msk [vmem:[#allocation3 + $0xb8] sm:$0xff] %vm3197, %v3185
      %3219 = vst [vmem:[#allocation3 + $0xc0] sm:$0xff] %v3186
      %3220 = vst [vmem:[#allocation3 + $0xc8] sm:$0xff] %v3187
      %3221 = vst [vmem:[#allocation3 + $0xd0] sm:$0xff] %v3188
      %3222 = vst.msk [vmem:[#allocation3 + $0xd8] sm:$0xff] %vm3197, %v3189
      %3223 = vst [vmem:[#allocation3 + $0xe0] sm:$0xff] %v3190
      %3224 = vst [vmem:[#allocation3 + $0xe8] sm:$0xff] %v3191
      %3225 = vst [vmem:[#allocation3 + $0xf0] sm:$0xff] %v3192
      %3226 = vst.msk [vmem:[#allocation3 + $0xf8] sm:$0xff] %vm3197, %v3193
      %vm3227 = vcmask 89168
      %3228 = vst.msk [vmem:[#allocation3 + $0x18] sm:$0xff] %vm3227, 0.0
      %3229 = vst.msk [vmem:[#allocation3 + $0x38] sm:$0xff] %vm3227, 0.0
      %3230 = vst.msk [vmem:[#allocation3 + $0x58] sm:$0xff] %vm3227, 0.0
      %3231 = vst.msk [vmem:[#allocation3 + $0x78] sm:$0xff] %vm3227, 0.0
      %3232 = vst.msk [vmem:[#allocation3 + $0x98] sm:$0xff] %vm3227, 0.0
      %3233 = vst.msk [vmem:[#allocation3 + $0xb8] sm:$0xff] %vm3227, 0.0
      %3234 = vst.msk [vmem:[#allocation3 + $0xd8] sm:$0xff] %vm3227, 0.0
      %3235 = vst.msk [vmem:[#allocation3 + $0xf8] sm:$0xff] %vm3227, 0.0
      %v3236 = vld [vmem:[#allocation3] sm:$0xff]
      %v3237 = vld [vmem:[#allocation3 + $0x8] sm:$0xff]
      %v3238 = vld [vmem:[#allocation3 + $0x10] sm:$0xff]
      %v3239 = vld [vmem:[#allocation3 + $0x18] sm:$0xff]
      %v3240 = vld [vmem:[#allocation3 + $0x20] sm:$0xff]
      %v3241 = vld [vmem:[#allocation3 + $0x28] sm:$0xff]
      %v3242 = vld [vmem:[#allocation3 + $0x30] sm:$0xff]
      %v3243 = vld [vmem:[#allocation3 + $0x38] sm:$0xff]
      %v3244 = vld [vmem:[#allocation3 + $0x40] sm:$0xff]
      %v3245 = vld [vmem:[#allocation3 + $0x48] sm:$0xff]
      %v3246 = vld [vmem:[#allocation3 + $0x50] sm:$0xff]
      %v3247 = vld [vmem:[#allocation3 + $0x58] sm:$0xff]
      %v3248 = vld [vmem:[#allocation3 + $0x60] sm:$0xff]
      %v3249 = vld [vmem:[#allocation3 + $0x68] sm:$0xff]
      %v3250 = vld [vmem:[#allocation3 + $0x70] sm:$0xff]
      %v3251 = vld [vmem:[#allocation3 + $0x78] sm:$0xff]
      %v3252 = vld [vmem:[#allocation3 + $0x80] sm:$0xff]
      %v3253 = vld [vmem:[#allocation3 + $0x88] sm:$0xff]
      %v3254 = vld [vmem:[#allocation3 + $0x90] sm:$0xff]
      %v3255 = vld [vmem:[#allocation3 + $0x98] sm:$0xff]
      %v3256 = vld [vmem:[#allocation3 + $0xa0] sm:$0xff]
      %v3257 = vld [vmem:[#allocation3 + $0xa8] sm:$0xff]
      %v3258 = vld [vmem:[#allocation3 + $0xb0] sm:$0xff]
      %v3259 = vld [vmem:[#allocation3 + $0xb8] sm:$0xff]
      %v3260 = vld [vmem:[#allocation3 + $0xc0] sm:$0xff]
      %v3261 = vld [vmem:[#allocation3 + $0xc8] sm:$0xff]
      %v3262 = vld [vmem:[#allocation3 + $0xd0] sm:$0xff]
      %v3263 = vld [vmem:[#allocation3 + $0xd8] sm:$0xff]
      %v3264 = vld [vmem:[#allocation3 + $0xe0] sm:$0xff]
      %v3265 = vld [vmem:[#allocation3 + $0xe8] sm:$0xff]
      %v3266 = vld [vmem:[#allocation3 + $0xf0] sm:$0xff]
      %v3267 = vld [vmem:[#allocation3 + $0xf8] sm:$0xff]
      %3300 = vrot.lane.b32.xlu0 %v3236, 127
      %v3301 = vpop.permute.xlu0 %3300
      %3302 = vrot.lane.b32.xlu0 %v3237, 127
      %v3303 = vpop.permute.xlu0 %3302
      %3304 = vrot.lane.b32.xlu0 %v3238, 127
      %v3305 = vpop.permute.xlu0 %3304
      %3306 = vrot.lane.b32.xlu0 %v3239, 127
      %v3307 = vpop.permute.xlu0 %3306
      %3308 = vrot.lane.b32.xlu0 %v3240, 127
      %v3309 = vpop.permute.xlu0 %3308
      %3310 = vrot.lane.b32.xlu0 %v3241, 127
      %v3311 = vpop.permute.xlu0 %3310
      %3312 = vrot.lane.b32.xlu0 %v3242, 127
      %v3313 = vpop.permute.xlu0 %3312
      %3314 = vrot.lane.b32.xlu0 %v3243, 127
      %v3315 = vpop.permute.xlu0 %3314
      %3316 = vrot.lane.b32.xlu0 %v3244, 127
      %v3317 = vpop.permute.xlu0 %3316
      %3318 = vrot.lane.b32.xlu0 %v3245, 127
      %v3319 = vpop.permute.xlu0 %3318
      %3320 = vrot.lane.b32.xlu0 %v3246, 127
      %v3321 = vpop.permute.xlu0 %3320
      %3322 = vrot.lane.b32.xlu0 %v3247, 127
      %v3323 = vpop.permute.xlu0 %3322
      %3324 = vrot.lane.b32.xlu0 %v3248, 127
      %v3325 = vpop.permute.xlu0 %3324
      %3326 = vrot.lane.b32.xlu0 %v3249, 127
      %v3327 = vpop.permute.xlu0 %3326
      %3328 = vrot.lane.b32.xlu0 %v3250, 127
      %v3329 = vpop.permute.xlu0 %3328
      %3330 = vrot.lane.b32.xlu0 %v3251, 127
      %v3331 = vpop.permute.xlu0 %3330
      %3332 = vrot.lane.b32.xlu0 %v3252, 127
      %v3333 = vpop.permute.xlu0 %3332
      %3334 = vrot.lane.b32.xlu0 %v3253, 127
      %v3335 = vpop.permute.xlu0 %3334
      %3336 = vrot.lane.b32.xlu0 %v3254, 127
      %v3337 = vpop.permute.xlu0 %3336
      %3338 = vrot.lane.b32.xlu0 %v3255, 127
      %v3339 = vpop.permute.xlu0 %3338
      %3340 = vrot.lane.b32.xlu0 %v3256, 127
      %v3341 = vpop.permute.xlu0 %3340
      %3342 = vrot.lane.b32.xlu0 %v3257, 127
      %v3343 = vpop.permute.xlu0 %3342
      %3344 = vrot.lane.b32.xlu0 %v3258, 127
      %v3345 = vpop.permute.xlu0 %3344
      %3346 = vrot.lane.b32.xlu0 %v3259, 127
      %v3347 = vpop.permute.xlu0 %3346
      %3348 = vrot.lane.b32.xlu0 %v3260, 127
      %v3349 = vpop.permute.xlu0 %3348
      %3350 = vrot.lane.b32.xlu0 %v3261, 127
      %v3351 = vpop.permute.xlu0 %3350
      %3352 = vrot.lane.b32.xlu0 %v3262, 127
      %v3353 = vpop.permute.xlu0 %3352
      %3354 = vrot.lane.b32.xlu0 %v3263, 127
      %v3355 = vpop.permute.xlu0 %3354
      %3356 = vrot.lane.b32.xlu0 %v3264, 127
      %v3357 = vpop.permute.xlu0 %3356
      %3358 = vrot.lane.b32.xlu0 %v3265, 127
      %v3359 = vpop.permute.xlu0 %3358
      %3360 = vrot.lane.b32.xlu0 %v3266, 127
      %v3361 = vpop.permute.xlu0 %3360
      %3362 = vrot.lane.b32.xlu0 %v3267, 127
      %v3363 = vpop.permute.xlu0 %3362
      %v3364 = vsel %vm617, %v3301, %v3303
      %v3365 = vsel %vm617, %v3303, %v3305
      %v3366 = vsel %vm617, %v3305, %v3307
      %v3367 = vsel %vm617, %v3309, %v3311
      %v3368 = vsel %vm617, %v3311, %v3313
      %v3369 = vsel %vm617, %v3313, %v3315
      %v3370 = vsel %vm617, %v3317, %v3319
      %v3371 = vsel %vm617, %v3319, %v3321
      %v3372 = vsel %vm617, %v3321, %v3323
      %v3373 = vsel %vm617, %v3325, %v3327
      %v3374 = vsel %vm617, %v3327, %v3329
      %v3375 = vsel %vm617, %v3329, %v3331
      %v3376 = vsel %vm617, %v3333, %v3335
      %v3377 = vsel %vm617, %v3335, %v3337
      %v3378 = vsel %vm617, %v3337, %v3339
      %v3379 = vsel %vm617, %v3341, %v3343
      %v3380 = vsel %vm617, %v3343, %v3345
      %v3381 = vsel %vm617, %v3345, %v3347
      %v3382 = vsel %vm617, %v3349, %v3351
      %v3383 = vsel %vm617, %v3351, %v3353
      %v3384 = vsel %vm617, %v3353, %v3355
      %v3385 = vsel %vm617, %v3357, %v3359
      %v3386 = vsel %vm617, %v3359, %v3361
      %v3387 = vsel %vm617, %v3361, %v3363
      %v3420 = vmax.f32 %v3162, %v3364
      %v3421 = vmax.f32 %v3163, %v3365
      %v3422 = vmax.f32 %v3164, %v3366
      %v3423 = vmax.f32 %v3165, %v3307
      %v3424 = vmax.f32 %v3166, %v3367
      %v3425 = vmax.f32 %v3167, %v3368
      %v3426 = vmax.f32 %v3168, %v3369
      %v3427 = vmax.f32 %v3169, %v3315
      %v3428 = vmax.f32 %v3170, %v3370
      %v3429 = vmax.f32 %v3171, %v3371
      %v3430 = vmax.f32 %v3172, %v3372
      %v3431 = vmax.f32 %v3173, %v3323
      %v3432 = vmax.f32 %v3174, %v3373
      %v3433 = vmax.f32 %v3175, %v3374
      %v3434 = vmax.f32 %v3176, %v3375
      %v3435 = vmax.f32 %v3177, %v3331
      %v3436 = vmax.f32 %v3178, %v3376
      %v3437 = vmax.f32 %v3179, %v3377
      %v3438 = vmax.f32 %v3180, %v3378
      %v3439 = vmax.f32 %v3181, %v3339
      %v3440 = vmax.f32 %v3182, %v3379
      %v3441 = vmax.f32 %v3183, %v3380
      %v3442 = vmax.f32 %v3184, %v3381
      %v3443 = vmax.f32 %v3185, %v3347
      %v3444 = vmax.f32 %v3186, %v3382
      %v3445 = vmax.f32 %v3187, %v3383
      %v3446 = vmax.f32 %v3188, %v3384
      %v3447 = vmax.f32 %v3189, %v3355
      %v3448 = vmax.f32 %v3190, %v3385
      %v3449 = vmax.f32 %v3191, %v3386
      %v3450 = vmax.f32 %v3192, %v3387
      %v3451 = vmax.f32 %v3193, %v3363
      %v3452 = vld [vmem:[%s5] sm:$0xff]
      %v3453 = vld [vmem:[%s5 + $0x8] sm:$0xff]
      %v3454 = vld [vmem:[%s5 + $0x10] sm:$0xff]
      %v3455 = vld [vmem:[%s5 + $0x18] sm:$0xff]
      %v3456 = vld [vmem:[%s5 + $0x20] sm:$0xff]
      %v3457 = vld [vmem:[%s5 + $0x28] sm:$0xff]
      %v3458 = vld [vmem:[%s5 + $0x30] sm:$0xff]
      %v3459 = vld [vmem:[%s5 + $0x38] sm:$0xff]
      %v3460 = vld [vmem:[%s5 + $0x40] sm:$0xff]
      %v3461 = vld [vmem:[%s5 + $0x48] sm:$0xff]
      %v3462 = vld [vmem:[%s5 + $0x50] sm:$0xff]
      %v3463 = vld [vmem:[%s5 + $0x58] sm:$0xff]
      %v3464 = vld [vmem:[%s5 + $0x60] sm:$0xff]
      %v3465 = vld [vmem:[%s5 + $0x68] sm:$0xff]
      %v3466 = vld [vmem:[%s5 + $0x70] sm:$0xff]
      %v3467 = vld [vmem:[%s5 + $0x78] sm:$0xff]
      %v3468 = vld [vmem:[%s5 + $0x80] sm:$0xff]
      %v3469 = vld [vmem:[%s5 + $0x88] sm:$0xff]
      %v3470 = vld [vmem:[%s5 + $0x90] sm:$0xff]
      %v3471 = vld [vmem:[%s5 + $0x98] sm:$0xff]
      %v3472 = vld [vmem:[%s5 + $0xa0] sm:$0xff]
      %v3473 = vld [vmem:[%s5 + $0xa8] sm:$0xff]
      %v3474 = vld [vmem:[%s5 + $0xb0] sm:$0xff]
      %v3475 = vld [vmem:[%s5 + $0xb8] sm:$0xff]
      %v3476 = vld [vmem:[%s5 + $0xc0] sm:$0xff]
      %v3477 = vld [vmem:[%s5 + $0xc8] sm:$0xff]
      %v3478 = vld [vmem:[%s5 + $0xd0] sm:$0xff]
      %v3479 = vld [vmem:[%s5 + $0xd8] sm:$0xff]
      %v3480 = vld [vmem:[%s5 + $0xe0] sm:$0xff]
      %v3481 = vld [vmem:[%s5 + $0xe8] sm:$0xff]
      %v3482 = vld [vmem:[%s5 + $0xf0] sm:$0xff]
      %v3483 = vld [vmem:[%s5 + $0xf8] sm:$0xff]
      %v3484 = vld [vmem:[%s5 + $0x100] sm:$0xff]
      %v3485 = vld [vmem:[%s5 + $0x108] sm:$0xff]
      %v3486 = vld [vmem:[%s5 + $0x110] sm:$0xff]
      %v3487 = vld [vmem:[%s5 + $0x118] sm:$0xff]
      %v3488 = vld [vmem:[%s5 + $0x120] sm:$0xff]
      %v3489 = vld [vmem:[%s5 + $0x128] sm:$0xff]
      %v3490 = vld [vmem:[%s5 + $0x130] sm:$0xff]
      %v3491 = vld [vmem:[%s5 + $0x138] sm:$0xff]
      %v3492 = vld [vmem:[%s5 + $0x140] sm:$0xff]
      %v3493 = vld [vmem:[%s5 + $0x148] sm:$0xff]
      %v3494 = vld [vmem:[%s5 + $0x150] sm:$0xff]
      %v3495 = vld [vmem:[%s5 + $0x158] sm:$0xff]
      %v3496 = vld [vmem:[%s5 + $0x160] sm:$0xff]
      %v3497 = vld [vmem:[%s5 + $0x168] sm:$0xff]
      %v3498 = vld [vmem:[%s5 + $0x170] sm:$0xff]
      %v3499 = vld [vmem:[%s5 + $0x178] sm:$0xff]
      %v3500 = vld [vmem:[%s5 + $0x180] sm:$0xff]
      %v3501 = vld [vmem:[%s5 + $0x188] sm:$0xff]
      %v3502 = vld [vmem:[%s5 + $0x190] sm:$0xff]
      %v3503 = vld [vmem:[%s5 + $0x198] sm:$0xff]
      %v3504 = vld [vmem:[%s5 + $0x1a0] sm:$0xff]
      %v3505 = vld [vmem:[%s5 + $0x1a8] sm:$0xff]
      %v3506 = vld [vmem:[%s5 + $0x1b0] sm:$0xff]
      %v3507 = vld [vmem:[%s5 + $0x1b8] sm:$0xff]
      %v3508 = vld [vmem:[%s5 + $0x1c0] sm:$0xff]
      %v3509 = vld [vmem:[%s5 + $0x1c8] sm:$0xff]
      %v3510 = vld [vmem:[%s5 + $0x1d0] sm:$0xff]
      %v3511 = vld [vmem:[%s5 + $0x1d8] sm:$0xff]
      %v3512 = vld [vmem:[%s5 + $0x1e0] sm:$0xff]
      %v3513 = vld [vmem:[%s5 + $0x1e8] sm:$0xff]
      %v3514 = vld [vmem:[%s5 + $0x1f0] sm:$0xff]
      %v3515 = vld [vmem:[%s5 + $0x1f8] sm:$0xff]
      %v3516 = vld [vmem:[%s5 + $0x200] sm:$0xff]
      %v3517 = vld [vmem:[%s5 + $0x208] sm:$0xff]
      %v3518 = vld [vmem:[%s5 + $0x210] sm:$0xff]
      %v3519 = vld [vmem:[%s5 + $0x218] sm:$0xff]
      %v3520 = vld [vmem:[%s5 + $0x220] sm:$0xff]
      %v3521 = vld [vmem:[%s5 + $0x228] sm:$0xff]
      %v3522 = vld [vmem:[%s5 + $0x230] sm:$0xff]
      %v3523 = vld [vmem:[%s5 + $0x238] sm:$0xff]
      %v3524 = vld [vmem:[%s5 + $0x240] sm:$0xff]
      %v3525 = vld [vmem:[%s5 + $0x248] sm:$0xff]
      %v3526 = vld [vmem:[%s5 + $0x250] sm:$0xff]
      %v3527 = vld [vmem:[%s5 + $0x258] sm:$0xff]
      %v3528 = vld [vmem:[%s5 + $0x260] sm:$0xff]
      %v3529 = vld [vmem:[%s5 + $0x268] sm:$0xff]
      %v3530 = vld [vmem:[%s5 + $0x270] sm:$0xff]
      %v3531 = vld [vmem:[%s5 + $0x278] sm:$0xff]
      %v3532 = vld [vmem:[%s5 + $0x280] sm:$0xff]
      %v3533 = vld [vmem:[%s5 + $0x288] sm:$0xff]
      %v3534 = vld [vmem:[%s5 + $0x290] sm:$0xff]
      %v3535 = vld [vmem:[%s5 + $0x298] sm:$0xff]
      %v3536 = vld [vmem:[%s5 + $0x2a0] sm:$0xff]
      %v3537 = vld [vmem:[%s5 + $0x2a8] sm:$0xff]
      %v3538 = vld [vmem:[%s5 + $0x2b0] sm:$0xff]
      %v3539 = vld [vmem:[%s5 + $0x2b8] sm:$0xff]
      %v3540 = vld [vmem:[%s5 + $0x2c0] sm:$0xff]
      %v3541 = vld [vmem:[%s5 + $0x2c8] sm:$0xff]
      %v3542 = vld [vmem:[%s5 + $0x2d0] sm:$0xff]
      %v3543 = vld [vmem:[%s5 + $0x2d8] sm:$0xff]
      %v3544 = vld [vmem:[%s5 + $0x2e0] sm:$0xff]
      %v3545 = vld [vmem:[%s5 + $0x2e8] sm:$0xff]
      %v3546 = vld [vmem:[%s5 + $0x2f0] sm:$0xff]
      %v3547 = vld [vmem:[%s5 + $0x2f8] sm:$0xff]
      %v3548 = vld [vmem:[%s5 + $0x300] sm:$0xff]
      %v3549 = vld [vmem:[%s5 + $0x308] sm:$0xff]
      %v3550 = vld [vmem:[%s5 + $0x310] sm:$0x3]
      %v3551 = vld [vmem:[%s5 + $0x318] sm:$0x3]
      %v3553 = vsel %vm3197, %v3423, 0
      %v3556 = vsel %vm3197, %v3427, 0
      %v3559 = vsel %vm3197, %v3431, 0
      %v3562 = vsel %vm3197, %v3435, 0
      %v3565 = vsel %vm3197, %v3439, 0
      %v3568 = vsel %vm3197, %v3443, 0
      %v3571 = vsel %vm3197, %v3447, 0
      %v3574 = vsel %vm3197, %v3451, 0
      %vm3576 = vcmask 1041408
      %v3578 = vsel %vm3576, %v3550, 0
      %v3581 = vsel %vm3576, %v3551, 0
      %3583 = vmatpush.msra.mxu0 %v3482
      %3584 = vmatpush.msra.mxu0 %v3480
      %3585 = vmatpush.msra.mxu0 %v3478
      %3586 = vmatpush.msra.mxu0 %v3476
      %3587 = vmatpush.msra.mxu0 %v3474
      %3588 = vmatpush.msra.mxu0 %v3472
      %3589 = vmatpush.msra.mxu0 %v3470
      %3590 = vmatpush.msra.mxu0 %v3468
      %3591 = vmatpush.msra.mxu0 %v3466
      %3592 = vmatpush.msra.mxu0 %v3464
      %3593 = vmatpush.msra.mxu0 %v3462
      %3594 = vmatpush.msra.mxu0 %v3460
      %3595 = vmatpush.msra.mxu0 %v3458
      %3596 = vmatpush.msra.mxu0 %v3456
      %3597 = vmatpush.msra.mxu0 %v3454
      %3598 = vmatpush.msra.mxu0 %v3452
      %3599 = vmatmul.f32.gmra.mxu0 %v3420
      %v3600 = vpop.f32.mrf.mxu0
      %v3601 = vadd.f32 0.0, %v3600
      %3602 = vmatmul.f32.gmra.mxu0 %v3424
      %v3603 = vpop.f32.mrf.mxu0
      %v3604 = vadd.f32 0.0, %v3603
      %3605 = vmatmul.f32.gmra.mxu0 %v3428
      %v3606 = vpop.f32.mrf.mxu0
      %v3607 = vadd.f32 0.0, %v3606
      %3608 = vmatmul.f32.gmra.mxu0 %v3432
      %v3609 = vpop.f32.mrf.mxu0
      %v3610 = vadd.f32 0.0, %v3609
      %3611 = vmatmul.f32.gmra.mxu0 %v3436
      %v3612 = vpop.f32.mrf.mxu0
      %v3613 = vadd.f32 0.0, %v3612
      %3614 = vmatmul.f32.gmra.mxu0 %v3440
      %v3615 = vpop.f32.mrf.mxu0
      %v3616 = vadd.f32 0.0, %v3615
      %3617 = vmatmul.f32.gmra.mxu0 %v3444
      %v3618 = vpop.f32.mrf.mxu0
      %v3619 = vadd.f32 0.0, %v3618
      %3620 = vmatmul.f32.gmra.mxu0 %v3448
      %v3621 = vpop.f32.mrf.mxu0
      %v3622 = vadd.f32 0.0, %v3621
      %3623 = vdwg.mxu0
      %3624 = vmatpush.msra.mxu0 %v3514
      %3625 = vmatpush.msra.mxu0 %v3512
      %3626 = vmatpush.msra.mxu0 %v3510
      %3627 = vmatpush.msra.mxu0 %v3508
      %3628 = vmatpush.msra.mxu0 %v3506
      %3629 = vmatpush.msra.mxu0 %v3504
      %3630 = vmatpush.msra.mxu0 %v3502
      %3631 = vmatpush.msra.mxu0 %v3500
      %3632 = vmatpush.msra.mxu0 %v3498
      %3633 = vmatpush.msra.mxu0 %v3496
      %3634 = vmatpush.msra.mxu0 %v3494
      %3635 = vmatpush.msra.mxu0 %v3492
      %3636 = vmatpush.msra.mxu0 %v3490
      %3637 = vmatpush.msra.mxu0 %v3488
      %3638 = vmatpush.msra.mxu0 %v3486
      %3639 = vmatpush.msra.mxu0 %v3484
      %3640 = vmatmul.f32.gmra.mxu0 %v3421
      %v3641 = vpop.f32.mrf.mxu0
      %v3642 = vadd.f32 %v3601, %v3641
      %3643 = vmatmul.f32.gmra.mxu0 %v3425
      %v3644 = vpop.f32.mrf.mxu0
      %v3645 = vadd.f32 %v3604, %v3644
      %3646 = vmatmul.f32.gmra.mxu0 %v3429
      %v3647 = vpop.f32.mrf.mxu0
      %v3648 = vadd.f32 %v3607, %v3647
      %3649 = vmatmul.f32.gmra.mxu0 %v3433
      %v3650 = vpop.f32.mrf.mxu0
      %v3651 = vadd.f32 %v3610, %v3650
      %3652 = vmatmul.f32.gmra.mxu0 %v3437
      %v3653 = vpop.f32.mrf.mxu0
      %v3654 = vadd.f32 %v3613, %v3653
      %3655 = vmatmul.f32.gmra.mxu0 %v3441
      %v3656 = vpop.f32.mrf.mxu0
      %v3657 = vadd.f32 %v3616, %v3656
      %3658 = vmatmul.f32.gmra.mxu0 %v3445
      %v3659 = vpop.f32.mrf.mxu0
      %v3660 = vadd.f32 %v3619, %v3659
      %3661 = vmatmul.f32.gmra.mxu0 %v3449
      %v3662 = vpop.f32.mrf.mxu0
      %v3663 = vadd.f32 %v3622, %v3662
      %3664 = vdwg.mxu0
      %3665 = vmatpush.msra.mxu0 %v3546
      %3666 = vmatpush.msra.mxu0 %v3544
      %3667 = vmatpush.msra.mxu0 %v3542
      %3668 = vmatpush.msra.mxu0 %v3540
      %3669 = vmatpush.msra.mxu0 %v3538
      %3670 = vmatpush.msra.mxu0 %v3536
      %3671 = vmatpush.msra.mxu0 %v3534
      %3672 = vmatpush.msra.mxu0 %v3532
      %3673 = vmatpush.msra.mxu0 %v3530
      %3674 = vmatpush.msra.mxu0 %v3528
      %3675 = vmatpush.msra.mxu0 %v3526
      %3676 = vmatpush.msra.mxu0 %v3524
      %3677 = vmatpush.msra.mxu0 %v3522
      %3678 = vmatpush.msra.mxu0 %v3520
      %3679 = vmatpush.msra.mxu0 %v3518
      %3680 = vmatpush.msra.mxu0 %v3516
      %3681 = vmatmul.f32.gmra.mxu0 %v3422
      %v3682 = vpop.f32.mrf.mxu0
      %v3683 = vadd.f32 %v3642, %v3682
      %3684 = vmatmul.f32.gmra.mxu0 %v3426
      %v3685 = vpop.f32.mrf.mxu0
      %v3686 = vadd.f32 %v3645, %v3685
      %3687 = vmatmul.f32.gmra.mxu0 %v3430
      %v3688 = vpop.f32.mrf.mxu0
      %v3689 = vadd.f32 %v3648, %v3688
      %3690 = vmatmul.f32.gmra.mxu0 %v3434
      %v3691 = vpop.f32.mrf.mxu0
      %v3692 = vadd.f32 %v3651, %v3691
      %3693 = vmatmul.f32.gmra.mxu0 %v3438
      %v3694 = vpop.f32.mrf.mxu0
      %v3695 = vadd.f32 %v3654, %v3694
      %3696 = vmatmul.f32.gmra.mxu0 %v3442
      %v3697 = vpop.f32.mrf.mxu0
      %v3698 = vadd.f32 %v3657, %v3697
      %3699 = vmatmul.f32.gmra.mxu0 %v3446
      %v3700 = vpop.f32.mrf.mxu0
      %v3701 = vadd.f32 %v3660, %v3700
      %3702 = vmatmul.f32.gmra.mxu0 %v3450
      %v3703 = vpop.f32.mrf.mxu0
      %v3704 = vadd.f32 %v3663, %v3703
      %3705 = vdwg.mxu0
      %3706 = vmatpush.msra.mxu0 0.0
      %3707 = vmatpush.msra.mxu0 0.0
      %3708 = vmatpush.msra.mxu0 0.0
      %3709 = vmatpush.msra.mxu0 0.0
      %3710 = vmatpush.msra.mxu0 0.0
      %3711 = vmatpush.msra.mxu0 0.0
      %3712 = vmatpush.msra.mxu0 0.0
      %3713 = vmatpush.msra.mxu0 0.0
      %3714 = vmatpush.msra.mxu0 0.0
      %3715 = vmatpush.msra.mxu0 0.0
      %3716 = vmatpush.msra.mxu0 0.0
      %3717 = vmatpush.msra.mxu0 0.0
      %3718 = vmatpush.msra.mxu0 0.0
      %3719 = vmatpush.msra.mxu0 0.0
      %3720 = vmatpush.msra.mxu0 %v3578
      %3721 = vmatpush.msra.mxu0 %v3548
      %3722 = vmatmul.f32.gmra.mxu0 %v3553
      %v3723 = vpop.f32.mrf.mxu0
      %v3724 = vadd.f32 %v3683, %v3723
      %3725 = vmatmul.f32.gmra.mxu0 %v3556
      %v3726 = vpop.f32.mrf.mxu0
      %v3727 = vadd.f32 %v3686, %v3726
      %3728 = vmatmul.f32.gmra.mxu0 %v3559
      %v3729 = vpop.f32.mrf.mxu0
      %v3730 = vadd.f32 %v3689, %v3729
      %3731 = vmatmul.f32.gmra.mxu0 %v3562
      %v3732 = vpop.f32.mrf.mxu0
      %v3733 = vadd.f32 %v3692, %v3732
      %3734 = vmatmul.f32.gmra.mxu0 %v3565
      %v3735 = vpop.f32.mrf.mxu0
      %v3736 = vadd.f32 %v3695, %v3735
      %3737 = vmatmul.f32.gmra.mxu0 %v3568
      %v3738 = vpop.f32.mrf.mxu0
      %v3739 = vadd.f32 %v3698, %v3738
      %3740 = vmatmul.f32.gmra.mxu0 %v3571
      %v3741 = vpop.f32.mrf.mxu0
      %v3742 = vadd.f32 %v3701, %v3741
      %3743 = vmatmul.f32.gmra.mxu0 %v3574
      %v3744 = vpop.f32.mrf.mxu0
      %v3745 = vadd.f32 %v3704, %v3744
      %3746 = vdwg.mxu0
      %3747 = vmatpush.msra.mxu0 %v3483
      %3748 = vmatpush.msra.mxu0 %v3481
      %3749 = vmatpush.msra.mxu0 %v3479
      %3750 = vmatpush.msra.mxu0 %v3477
      %3751 = vmatpush.msra.mxu0 %v3475
      %3752 = vmatpush.msra.mxu0 %v3473
      %3753 = vmatpush.msra.mxu0 %v3471
      %3754 = vmatpush.msra.mxu0 %v3469
      %3755 = vmatpush.msra.mxu0 %v3467
      %3756 = vmatpush.msra.mxu0 %v3465
      %3757 = vmatpush.msra.mxu0 %v3463
      %3758 = vmatpush.msra.mxu0 %v3461
      %3759 = vmatpush.msra.mxu0 %v3459
      %3760 = vmatpush.msra.mxu0 %v3457
      %3761 = vmatpush.msra.mxu0 %v3455
      %3762 = vmatpush.msra.mxu0 %v3453
      %3763 = vmatmul.f32.gmra.mxu0 %v3420
      %v3764 = vpop.f32.mrf.mxu0
      %v3765 = vadd.f32 0.0, %v3764
      %3766 = vmatmul.f32.gmra.mxu0 %v3424
      %v3767 = vpop.f32.mrf.mxu0
      %v3768 = vadd.f32 0.0, %v3767
      %3769 = vmatmul.f32.gmra.mxu0 %v3428
      %v3770 = vpop.f32.mrf.mxu0
      %v3771 = vadd.f32 0.0, %v3770
      %3772 = vmatmul.f32.gmra.mxu0 %v3432
      %v3773 = vpop.f32.mrf.mxu0
      %v3774 = vadd.f32 0.0, %v3773
      %3775 = vmatmul.f32.gmra.mxu0 %v3436
      %v3776 = vpop.f32.mrf.mxu0
      %v3777 = vadd.f32 0.0, %v3776
      %3778 = vmatmul.f32.gmra.mxu0 %v3440
      %v3779 = vpop.f32.mrf.mxu0
      %v3780 = vadd.f32 0.0, %v3779
      %3781 = vmatmul.f32.gmra.mxu0 %v3444
      %v3782 = vpop.f32.mrf.mxu0
      %v3783 = vadd.f32 0.0, %v3782
      %3784 = vmatmul.f32.gmra.mxu0 %v3448
      %v3785 = vpop.f32.mrf.mxu0
      %v3786 = vadd.f32 0.0, %v3785
      %3787 = vdwg.mxu0
      %3788 = vmatpush.msra.mxu0 %v3515
      %3789 = vmatpush.msra.mxu0 %v3513
      %3790 = vmatpush.msra.mxu0 %v3511
      %3791 = vmatpush.msra.mxu0 %v3509
      %3792 = vmatpush.msra.mxu0 %v3507
      %3793 = vmatpush.msra.mxu0 %v3505
      %3794 = vmatpush.msra.mxu0 %v3503
      %3795 = vmatpush.msra.mxu0 %v3501
      %3796 = vmatpush.msra.mxu0 %v3499
      %3797 = vmatpush.msra.mxu0 %v3497
      %3798 = vmatpush.msra.mxu0 %v3495
      %3799 = vmatpush.msra.mxu0 %v3493
      %3800 = vmatpush.msra.mxu0 %v3491
      %3801 = vmatpush.msra.mxu0 %v3489
      %3802 = vmatpush.msra.mxu0 %v3487
      %3803 = vmatpush.msra.mxu0 %v3485
      %3804 = vmatmul.f32.gmra.mxu0 %v3421
      %v3805 = vpop.f32.mrf.mxu0
      %v3806 = vadd.f32 %v3765, %v3805
      %3807 = vmatmul.f32.gmra.mxu0 %v3425
      %v3808 = vpop.f32.mrf.mxu0
      %v3809 = vadd.f32 %v3768, %v3808
      %3810 = vmatmul.f32.gmra.mxu0 %v3429
      %v3811 = vpop.f32.mrf.mxu0
      %v3812 = vadd.f32 %v3771, %v3811
      %3813 = vmatmul.f32.gmra.mxu0 %v3433
      %v3814 = vpop.f32.mrf.mxu0
      %v3815 = vadd.f32 %v3774, %v3814
      %3816 = vmatmul.f32.gmra.mxu0 %v3437
      %v3817 = vpop.f32.mrf.mxu0
      %v3818 = vadd.f32 %v3777, %v3817
      %3819 = vmatmul.f32.gmra.mxu0 %v3441
      %v3820 = vpop.f32.mrf.mxu0
      %v3821 = vadd.f32 %v3780, %v3820
      %3822 = vmatmul.f32.gmra.mxu0 %v3445
      %v3823 = vpop.f32.mrf.mxu0
      %v3824 = vadd.f32 %v3783, %v3823
      %3825 = vmatmul.f32.gmra.mxu0 %v3449
      %v3826 = vpop.f32.mrf.mxu0
      %v3827 = vadd.f32 %v3786, %v3826
      %3828 = vdwg.mxu0
      %3829 = vmatpush.msra.mxu0 %v3547
      %3830 = vmatpush.msra.mxu0 %v3545
      %3831 = vmatpush.msra.mxu0 %v3543
      %3832 = vmatpush.msra.mxu0 %v3541
      %3833 = vmatpush.msra.mxu0 %v3539
      %3834 = vmatpush.msra.mxu0 %v3537
      %3835 = vmatpush.msra.mxu0 %v3535
      %3836 = vmatpush.msra.mxu0 %v3533
      %3837 = vmatpush.msra.mxu0 %v3531
      %3838 = vmatpush.msra.mxu0 %v3529
      %3839 = vmatpush.msra.mxu0 %v3527
      %3840 = vmatpush.msra.mxu0 %v3525
      %3841 = vmatpush.msra.mxu0 %v3523
      %3842 = vmatpush.msra.mxu0 %v3521
      %3843 = vmatpush.msra.mxu0 %v3519
      %3844 = vmatpush.msra.mxu0 %v3517
      %3845 = vmatmul.f32.gmra.mxu0 %v3422
      %v3846 = vpop.f32.mrf.mxu0
      %v3847 = vadd.f32 %v3806, %v3846
      %3848 = vmatmul.f32.gmra.mxu0 %v3426
      %v3849 = vpop.f32.mrf.mxu0
      %v3850 = vadd.f32 %v3809, %v3849
      %3851 = vmatmul.f32.gmra.mxu0 %v3430
      %v3852 = vpop.f32.mrf.mxu0
      %v3853 = vadd.f32 %v3812, %v3852
      %3854 = vmatmul.f32.gmra.mxu0 %v3434
      %v3855 = vpop.f32.mrf.mxu0
      %v3856 = vadd.f32 %v3815, %v3855
      %3857 = vmatmul.f32.gmra.mxu0 %v3438
      %v3858 = vpop.f32.mrf.mxu0
      %v3859 = vadd.f32 %v3818, %v3858
      %3860 = vmatmul.f32.gmra.mxu0 %v3442
      %v3861 = vpop.f32.mrf.mxu0
      %v3862 = vadd.f32 %v3821, %v3861
      %3863 = vmatmul.f32.gmra.mxu0 %v3446
      %v3864 = vpop.f32.mrf.mxu0
      %v3865 = vadd.f32 %v3824, %v3864
      %3866 = vmatmul.f32.gmra.mxu0 %v3450
      %v3867 = vpop.f32.mrf.mxu0
      %v3868 = vadd.f32 %v3827, %v3867
      %3869 = vdwg.mxu0
      %3870 = vmatpush.msra.mxu0 0.0
      %3871 = vmatpush.msra.mxu0 0.0
      %3872 = vmatpush.msra.mxu0 0.0
      %3873 = vmatpush.msra.mxu0 0.0
      %3874 = vmatpush.msra.mxu0 0.0
      %3875 = vmatpush.msra.mxu0 0.0
      %3876 = vmatpush.msra.mxu0 0.0
      %3877 = vmatpush.msra.mxu0 0.0
      %3878 = vmatpush.msra.mxu0 0.0
      %3879 = vmatpush.msra.mxu0 0.0
      %3880 = vmatpush.msra.mxu0 0.0
      %3881 = vmatpush.msra.mxu0 0.0
      %3882 = vmatpush.msra.mxu0 0.0
      %3883 = vmatpush.msra.mxu0 0.0
      %3884 = vmatpush.msra.mxu0 %v3581
      %3885 = vmatpush.msra.mxu0 %v3549
      %3886 = vmatmul.f32.gmra.mxu0 %v3553
      %v3887 = vpop.f32.mrf.mxu0
      %v3888 = vadd.f32 %v3847, %v3887
      %3889 = vmatmul.f32.gmra.mxu0 %v3556
      %v3890 = vpop.f32.mrf.mxu0
      %v3891 = vadd.f32 %v3850, %v3890
      %3892 = vmatmul.f32.gmra.mxu0 %v3559
      %v3893 = vpop.f32.mrf.mxu0
      %v3894 = vadd.f32 %v3853, %v3893
      %3895 = vmatmul.f32.gmra.mxu0 %v3562
      %v3896 = vpop.f32.mrf.mxu0
      %v3897 = vadd.f32 %v3856, %v3896
      %3898 = vmatmul.f32.gmra.mxu0 %v3565
      %v3899 = vpop.f32.mrf.mxu0
      %v3900 = vadd.f32 %v3859, %v3899
      %3901 = vmatmul.f32.gmra.mxu0 %v3568
      %v3902 = vpop.f32.mrf.mxu0
      %v3903 = vadd.f32 %v3862, %v3902
      %3904 = vmatmul.f32.gmra.mxu0 %v3571
      %v3905 = vpop.f32.mrf.mxu0
      %v3906 = vadd.f32 %v3865, %v3905
      %3907 = vmatmul.f32.gmra.mxu0 %v3574
      %v3908 = vpop.f32.mrf.mxu0
      %v3909 = vadd.f32 %v3868, %v3908
      %3910 = vdwg.mxu0
      %3911 = vst [vmem:[#allocation2] sm:$0xff] %v3724
      %vm3912 = vcmask 572416
      %3913 = vst.msk [vmem:[#allocation2 + $0x8] sm:$0xff] %vm3912, %v3888
      %3914 = vst [vmem:[#allocation2 + $0x20] sm:$0xff] %v3727
      %3915 = vst.msk [vmem:[#allocation2 + $0x28] sm:$0xff] %vm3912, %v3891
      %3916 = vst [vmem:[#allocation2 + $0x40] sm:$0xff] %v3730
      %3917 = vst.msk [vmem:[#allocation2 + $0x48] sm:$0xff] %vm3912, %v3894
      %3918 = vst [vmem:[#allocation2 + $0x60] sm:$0xff] %v3733
      %3919 = vst.msk [vmem:[#allocation2 + $0x68] sm:$0xff] %vm3912, %v3897
      %3920 = vst [vmem:[#allocation2 + $0x80] sm:$0xff] %v3736
      %3921 = vst.msk [vmem:[#allocation2 + $0x88] sm:$0xff] %vm3912, %v3900
      %3922 = vst [vmem:[#allocation2 + $0xa0] sm:$0xff] %v3739
      %3923 = vst.msk [vmem:[#allocation2 + $0xa8] sm:$0xff] %vm3912, %v3903
      %3924 = vst [vmem:[#allocation2 + $0xc0] sm:$0xff] %v3742
      %3925 = vst.msk [vmem:[#allocation2 + $0xc8] sm:$0xff] %vm3912, %v3906
      %3926 = vst [vmem:[#allocation2 + $0xe0] sm:$0xff] %v3745
      %3927 = vst.msk [vmem:[#allocation2 + $0xe8] sm:$0xff] %vm3912, %v3909
      %vm3928 = vcmask 7168
      %3929 = vst.msk [vmem:[#allocation2] sm:$0xff] %vm3928, %v3162
      %3930 = vst.msk [vmem:[#allocation2 + $0x20] sm:$0xff] %vm3928, %v3166
      %3931 = vst.msk [vmem:[#allocation2 + $0x40] sm:$0xff] %vm3928, %v3170
      %3932 = vst.msk [vmem:[#allocation2 + $0x60] sm:$0xff] %vm3928, %v3174
      %3933 = vst.msk [vmem:[#allocation2 + $0x80] sm:$0xff] %vm3928, %v3178
      %3934 = vst.msk [vmem:[#allocation2 + $0xa0] sm:$0xff] %vm3928, %v3182
      %3935 = vst.msk [vmem:[#allocation2 + $0xc0] sm:$0xff] %vm3928, %v3186
      %3936 = vst.msk [vmem:[#allocation2 + $0xe0] sm:$0xff] %vm3928, %v3190
      %v3937 = vld [vmem:[%s6] sm:$0xff]
      %v3938 = vld [vmem:[%s6 + $0x8] sm:$0xff]
      %v3939 = vld [vmem:[%s6 + $0x10] sm:$0xf]
      %v3940 = vld [vmem:[#allocation2] sm:$0xff]
      %v3941 = vld [vmem:[#allocation2 + $0x8] sm:$0xff]
      %v3942 = vld [vmem:[#allocation2 + $0x20] sm:$0xff]
      %v3943 = vld [vmem:[#allocation2 + $0x28] sm:$0xff]
      %v3944 = vld [vmem:[#allocation2 + $0x40] sm:$0xff]
      %v3945 = vld [vmem:[#allocation2 + $0x48] sm:$0xff]
      %v3946 = vld [vmem:[#allocation2 + $0x60] sm:$0xff]
      %v3947 = vld [vmem:[#allocation2 + $0x68] sm:$0xff]
      %v3948 = vld [vmem:[#allocation2 + $0x80] sm:$0xff]
      %v3949 = vld [vmem:[#allocation2 + $0x88] sm:$0xff]
      %v3950 = vld [vmem:[#allocation2 + $0xa0] sm:$0xff]
      %v3951 = vld [vmem:[#allocation2 + $0xa8] sm:$0xff]
      %v3952 = vld [vmem:[#allocation2 + $0xc0] sm:$0xff]
      %v3953 = vld [vmem:[#allocation2 + $0xc8] sm:$0xff]
      %v3954 = vld [vmem:[#allocation2 + $0xe0] sm:$0xff]
      %v3955 = vld [vmem:[#allocation2 + $0xe8] sm:$0xff]
      %s3956 = scalar_lea.vmem %s6, 24
      %v3957 = vld [vmem:[%s3956] sm:$0xff]
      %v3958 = vld [vmem:[%s3956 + $0x8] sm:$0xff]
      %v3959 = vld [vmem:[%s3956 + $0x10] sm:$0xf]
      %3976 = vrot.lane.b32.xlu0 %v3940, 127
      %v3977 = vpop.permute.xlu0 %3976
      %3978 = vrot.lane.b32.xlu0 %v3941, 127
      %v3979 = vpop.permute.xlu0 %3978
      %3980 = vrot.lane.b32.xlu0 %v3942, 127
      %v3981 = vpop.permute.xlu0 %3980
      %3982 = vrot.lane.b32.xlu0 %v3943, 127
      %v3983 = vpop.permute.xlu0 %3982
      %3984 = vrot.lane.b32.xlu0 %v3944, 127
      %v3985 = vpop.permute.xlu0 %3984
      %3986 = vrot.lane.b32.xlu0 %v3945, 127
      %v3987 = vpop.permute.xlu0 %3986
      %3988 = vrot.lane.b32.xlu0 %v3946, 127
      %v3989 = vpop.permute.xlu0 %3988
      %3990 = vrot.lane.b32.xlu0 %v3947, 127
      %v3991 = vpop.permute.xlu0 %3990
      %3992 = vrot.lane.b32.xlu0 %v3948, 127
      %v3993 = vpop.permute.xlu0 %3992
      %3994 = vrot.lane.b32.xlu0 %v3949, 127
      %v3995 = vpop.permute.xlu0 %3994
      %3996 = vrot.lane.b32.xlu0 %v3950, 127
      %v3997 = vpop.permute.xlu0 %3996
      %3998 = vrot.lane.b32.xlu0 %v3951, 127
      %v3999 = vpop.permute.xlu0 %3998
      %4000 = vrot.lane.b32.xlu0 %v3952, 127
      %v4001 = vpop.permute.xlu0 %4000
      %4002 = vrot.lane.b32.xlu0 %v3953, 127
      %v4003 = vpop.permute.xlu0 %4002
      %4004 = vrot.lane.b32.xlu0 %v3954, 127
      %v4005 = vpop.permute.xlu0 %4004
      %4006 = vrot.lane.b32.xlu0 %v3955, 127
      %v4007 = vpop.permute.xlu0 %4006
      %v4008 = vsel %vm617, %v3977, %v3979
      %v4009 = vsel %vm617, %v3981, %v3983
      %v4010 = vsel %vm617, %v3985, %v3987
      %v4011 = vsel %vm617, %v3989, %v3991
      %v4012 = vsel %vm617, %v3993, %v3995
      %v4013 = vsel %vm617, %v3997, %v3999
      %v4014 = vsel %vm617, %v4001, %v4003
      %v4015 = vsel %vm617, %v4005, %v4007
      %v4033 = vsel %vm2007, %v3957, 0
      %v4036 = vsel %vm2007, %v3958, 0
      %v4039 = vsel %vm2007, %v3959, 0
      %4041 = vmatpush.msra.mxu0 0.0
      %4042 = vmatpush.msra.mxu0 0.0
      %4043 = vmatpush.msra.mxu0 0.0
      %4044 = vmatpush.msra.mxu0 0.0
      %4045 = vmatpush.msra.mxu0 0.0
      %4046 = vmatpush.msra.mxu0 0.0
      %4047 = vmatpush.msra.mxu0 0.0
      %4048 = vmatpush.msra.mxu0 0.0
      %4049 = vmatpush.msra.mxu0 %v4015
      %4050 = vmatpush.msra.mxu0 %v4014
      %4051 = vmatpush.msra.mxu0 %v4013
      %4052 = vmatpush.msra.mxu0 %v4012
      %4053 = vmatpush.msra.mxu0 %v4011
      %4054 = vmatpush.msra.mxu0 %v4010
      %4055 = vmatpush.msra.mxu0 %v4009
      %4056 = vmatpush.msra.mxu0 %v4008
      %4057 = vmatmul.f32.gmra.mxu0 %v4033
      %v4058 = vpop.f32.mrf.mxu0
      %v4059 = vadd.f32 0.0, %v4058
      %4060 = vmatmul.f32.gmra.mxu0 %v4036
      %v4061 = vpop.f32.mrf.mxu0
      %v4062 = vadd.f32 0.0, %v4061
      %4063 = vmatmul.f32.gmra.mxu0 %v4039
      %v4064 = vpop.f32.mrf.mxu0
      %v4065 = vadd.f32 0.0, %v4064
      %4066 = vdwg.mxu0
      %4067 = vmatpush.msra.mxu0 0.0
      %4068 = vmatpush.msra.mxu0 0.0
      %4069 = vmatpush.msra.mxu0 0.0
      %4070 = vmatpush.msra.mxu0 0.0
      %4071 = vmatpush.msra.mxu0 0.0
      %4072 = vmatpush.msra.mxu0 0.0
      %4073 = vmatpush.msra.mxu0 0.0
      %4074 = vmatpush.msra.mxu0 0.0
      %4075 = vmatpush.msra.mxu0 %v4007
      %4076 = vmatpush.msra.mxu0 %v4003
      %4077 = vmatpush.msra.mxu0 %v3999
      %4078 = vmatpush.msra.mxu0 %v3995
      %4079 = vmatpush.msra.mxu0 %v3991
      %4080 = vmatpush.msra.mxu0 %v3987
      %4081 = vmatpush.msra.mxu0 %v3983
      %4082 = vmatpush.msra.mxu0 %v3979
      %4083 = vmatmul.f32.gmra.mxu0 %v4033
      %v4084 = vpop.f32.mrf.mxu0
      %v4085 = vadd.f32 0.0, %v4084
      %4086 = vmatmul.f32.gmra.mxu0 %v4036
      %v4087 = vpop.f32.mrf.mxu0
      %v4088 = vadd.f32 0.0, %v4087
      %4089 = vmatmul.f32.gmra.mxu0 %v4039
      %v4090 = vpop.f32.mrf.mxu0
      %v4091 = vadd.f32 0.0, %v4090
      %4092 = vdwg.mxu0
      %v4094 = vsel %vm2007, %v3937, 0
      %v4097 = vsel %vm2007, %v3938, 0
      %v4100 = vsel %vm2007, %v3939, 0
      %4102 = vmatpush.msra.mxu0 0.0
      %4103 = vmatpush.msra.mxu0 0.0
      %4104 = vmatpush.msra.mxu0 0.0
      %4105 = vmatpush.msra.mxu0 0.0
      %4106 = vmatpush.msra.mxu0 0.0
      %4107 = vmatpush.msra.mxu0 0.0
      %4108 = vmatpush.msra.mxu0 0.0
      %4109 = vmatpush.msra.mxu0 0.0
      %4110 = vmatpush.msra.mxu0 %v3954
      %4111 = vmatpush.msra.mxu0 %v3952
      %4112 = vmatpush.msra.mxu0 %v3950
      %4113 = vmatpush.msra.mxu0 %v3948
      %4114 = vmatpush.msra.mxu0 %v3946
      %4115 = vmatpush.msra.mxu0 %v3944
      %4116 = vmatpush.msra.mxu0 %v3942
      %4117 = vmatpush.msra.mxu0 %v3940
      %4118 = vmatmul.f32.gmra.mxu0 %v4094
      %v4119 = vpop.f32.mrf.mxu0
      %v4120 = vadd.f32 %v4059, %v4119
      %4121 = vmatmul.f32.gmra.mxu0 %v4097
      %v4122 = vpop.f32.mrf.mxu0
      %v4123 = vadd.f32 %v4062, %v4122
      %4124 = vmatmul.f32.gmra.mxu0 %v4100
      %v4125 = vpop.f32.mrf.mxu0
      %v4126 = vadd.f32 %v4065, %v4125
      %4127 = vdwg.mxu0
      %4128 = vmatpush.msra.mxu0 0.0
      %4129 = vmatpush.msra.mxu0 0.0
      %4130 = vmatpush.msra.mxu0 0.0
      %4131 = vmatpush.msra.mxu0 0.0
      %4132 = vmatpush.msra.mxu0 0.0
      %4133 = vmatpush.msra.mxu0 0.0
      %4134 = vmatpush.msra.mxu0 0.0
      %4135 = vmatpush.msra.mxu0 0.0
      %4136 = vmatpush.msra.mxu0 %v3955
      %4137 = vmatpush.msra.mxu0 %v3953
      %4138 = vmatpush.msra.mxu0 %v3951
      %4139 = vmatpush.msra.mxu0 %v3949
      %4140 = vmatpush.msra.mxu0 %v3947
      %4141 = vmatpush.msra.mxu0 %v3945
      %4142 = vmatpush.msra.mxu0 %v3943
      %4143 = vmatpush.msra.mxu0 %v3941
      %4144 = vmatmul.f32.gmra.mxu0 %v4094
      %v4145 = vpop.f32.mrf.mxu0
      %v4146 = vadd.f32 %v4085, %v4145
      %4147 = vmatmul.f32.gmra.mxu0 %v4097
      %v4148 = vpop.f32.mrf.mxu0
      %v4149 = vadd.f32 %v4088, %v4148
      %4150 = vmatmul.f32.gmra.mxu0 %v4100
      %v4151 = vpop.f32.mrf.mxu0
      %v4152 = vadd.f32 %v4091, %v4151
      %4153 = vdwg.mxu0
      %s4154 = scalar_lea.vmem %s6, 48
      %v4155 = vld [vmem:[%s4154] sm:$0xff]
      %v4156 = vld [vmem:[%s4154 + $0x8] sm:$0xff]
      %v4157 = vld [vmem:[%s4154 + $0x10] sm:$0xf]
      %4158 = vrot.lane.b32.xlu0 %v3940, 126
      %v4159 = vpop.permute.xlu0 %4158
      %4160 = vrot.lane.b32.xlu0 %v3941, 126
      %v4161 = vpop.permute.xlu0 %4160
      %4162 = vrot.lane.b32.xlu0 %v3942, 126
      %v4163 = vpop.permute.xlu0 %4162
      %4164 = vrot.lane.b32.xlu0 %v3943, 126
      %v4165 = vpop.permute.xlu0 %4164
      %4166 = vrot.lane.b32.xlu0 %v3944, 126
      %v4167 = vpop.permute.xlu0 %4166
      %4168 = vrot.lane.b32.xlu0 %v3945, 126
      %v4169 = vpop.permute.xlu0 %4168
      %4170 = vrot.lane.b32.xlu0 %v3946, 126
      %v4171 = vpop.permute.xlu0 %4170
      %4172 = vrot.lane.b32.xlu0 %v3947, 126
      %v4173 = vpop.permute.xlu0 %4172
      %4174 = vrot.lane.b32.xlu0 %v3948, 126
      %v4175 = vpop.permute.xlu0 %4174
      %4176 = vrot.lane.b32.xlu0 %v3949, 126
      %v4177 = vpop.permute.xlu0 %4176
      %4178 = vrot.lane.b32.xlu0 %v3950, 126
      %v4179 = vpop.permute.xlu0 %4178
      %4180 = vrot.lane.b32.xlu0 %v3951, 126
      %v4181 = vpop.permute.xlu0 %4180
      %4182 = vrot.lane.b32.xlu0 %v3952, 126
      %v4183 = vpop.permute.xlu0 %4182
      %4184 = vrot.lane.b32.xlu0 %v3953, 126
      %v4185 = vpop.permute.xlu0 %4184
      %4186 = vrot.lane.b32.xlu0 %v3954, 126
      %v4187 = vpop.permute.xlu0 %4186
      %4188 = vrot.lane.b32.xlu0 %v3955, 126
      %v4189 = vpop.permute.xlu0 %4188
      %v4190 = vsel %vm1092, %v4159, %v4161
      %v4191 = vsel %vm1092, %v4163, %v4165
      %v4192 = vsel %vm1092, %v4167, %v4169
      %v4193 = vsel %vm1092, %v4171, %v4173
      %v4194 = vsel %vm1092, %v4175, %v4177
      %v4195 = vsel %vm1092, %v4179, %v4181
      %v4196 = vsel %vm1092, %v4183, %v4185
      %v4197 = vsel %vm1092, %v4187, %v4189
      %v4215 = vsel %vm2007, %v4155, 0
      %v4218 = vsel %vm2007, %v4156, 0
      %v4221 = vsel %vm2007, %v4157, 0
      %4223 = vmatpush.msra.mxu0 0.0
      %4224 = vmatpush.msra.mxu0 0.0
      %4225 = vmatpush.msra.mxu0 0.0
      %4226 = vmatpush.msra.mxu0 0.0
      %4227 = vmatpush.msra.mxu0 0.0
      %4228 = vmatpush.msra.mxu0 0.0
      %4229 = vmatpush.msra.mxu0 0.0
      %4230 = vmatpush.msra.mxu0 0.0
      %4231 = vmatpush.msra.mxu0 %v4197
      %4232 = vmatpush.msra.mxu0 %v4196
      %4233 = vmatpush.msra.mxu0 %v4195
      %4234 = vmatpush.msra.mxu0 %v4194
      %4235 = vmatpush.msra.mxu0 %v4193
      %4236 = vmatpush.msra.mxu0 %v4192
      %4237 = vmatpush.msra.mxu0 %v4191
      %4238 = vmatpush.msra.mxu0 %v4190
      %4239 = vmatmul.f32.gmra.mxu0 %v4215
      %v4240 = vpop.f32.mrf.mxu0
      %v4241 = vadd.f32 0.0, %v4240
      %4242 = vmatmul.f32.gmra.mxu0 %v4218
      %v4243 = vpop.f32.mrf.mxu0
      %v4244 = vadd.f32 0.0, %v4243
      %4245 = vmatmul.f32.gmra.mxu0 %v4221
      %v4246 = vpop.f32.mrf.mxu0
      %v4247 = vadd.f32 0.0, %v4246
      %4248 = vdwg.mxu0
      %4249 = vmatpush.msra.mxu0 0.0
      %4250 = vmatpush.msra.mxu0 0.0
      %4251 = vmatpush.msra.mxu0 0.0
      %4252 = vmatpush.msra.mxu0 0.0
      %4253 = vmatpush.msra.mxu0 0.0
      %4254 = vmatpush.msra.mxu0 0.0
      %4255 = vmatpush.msra.mxu0 0.0
      %4256 = vmatpush.msra.mxu0 0.0
      %4257 = vmatpush.msra.mxu0 %v4189
      %4258 = vmatpush.msra.mxu0 %v4185
      %4259 = vmatpush.msra.mxu0 %v4181
      %4260 = vmatpush.msra.mxu0 %v4177
      %4261 = vmatpush.msra.mxu0 %v4173
      %4262 = vmatpush.msra.mxu0 %v4169
      %4263 = vmatpush.msra.mxu0 %v4165
      %4264 = vmatpush.msra.mxu0 %v4161
      %4265 = vmatmul.f32.gmra.mxu0 %v4215
      %v4266 = vpop.f32.mrf.mxu0
      %v4267 = vadd.f32 0.0, %v4266
      %4268 = vmatmul.f32.gmra.mxu0 %v4218
      %v4269 = vpop.f32.mrf.mxu0
      %v4270 = vadd.f32 0.0, %v4269
      %4271 = vmatmul.f32.gmra.mxu0 %v4221
      %v4272 = vpop.f32.mrf.mxu0
      %v4273 = vadd.f32 0.0, %v4272
      %4274 = vdwg.mxu0
      %v4275 = vadd.f32 %v4120, %v4241
      %v4276 = vadd.f32 %v4146, %v4267
      %v4277 = vadd.f32 %v4123, %v4244
      %v4278 = vadd.f32 %v4149, %v4270
      %v4279 = vadd.f32 %v4126, %v4247
      %v4280 = vadd.f32 %v4152, %v4273
      %s4281 = scalar_lea.vmem %s6, 72
      %v4282 = vld [vmem:[%s4281] sm:$0xff]
      %v4283 = vld [vmem:[%s4281 + $0x8] sm:$0xff]
      %v4284 = vld [vmem:[%s4281 + $0x10] sm:$0xf]
      %4285 = vrot.lane.b32.xlu0 %v3940, 125
      %v4286 = vpop.permute.xlu0 %4285
      %4287 = vrot.lane.b32.xlu0 %v3941, 125
      %v4288 = vpop.permute.xlu0 %4287
      %4289 = vrot.lane.b32.xlu0 %v3942, 125
      %v4290 = vpop.permute.xlu0 %4289
      %4291 = vrot.lane.b32.xlu0 %v3943, 125
      %v4292 = vpop.permute.xlu0 %4291
      %4293 = vrot.lane.b32.xlu0 %v3944, 125
      %v4294 = vpop.permute.xlu0 %4293
      %4295 = vrot.lane.b32.xlu0 %v3945, 125
      %v4296 = vpop.permute.xlu0 %4295
      %4297 = vrot.lane.b32.xlu0 %v3946, 125
      %v4298 = vpop.permute.xlu0 %4297
      %4299 = vrot.lane.b32.xlu0 %v3947, 125
      %v4300 = vpop.permute.xlu0 %4299
      %4301 = vrot.lane.b32.xlu0 %v3948, 125
      %v4302 = vpop.permute.xlu0 %4301
      %4303 = vrot.lane.b32.xlu0 %v3949, 125
      %v4304 = vpop.permute.xlu0 %4303
      %4305 = vrot.lane.b32.xlu0 %v3950, 125
      %v4306 = vpop.permute.xlu0 %4305
      %4307 = vrot.lane.b32.xlu0 %v3951, 125
      %v4308 = vpop.permute.xlu0 %4307
      %4309 = vrot.lane.b32.xlu0 %v3952, 125
      %v4310 = vpop.permute.xlu0 %4309
      %4311 = vrot.lane.b32.xlu0 %v3953, 125
      %v4312 = vpop.permute.xlu0 %4311
      %4313 = vrot.lane.b32.xlu0 %v3954, 125
      %v4314 = vpop.permute.xlu0 %4313
      %4315 = vrot.lane.b32.xlu0 %v3955, 125
      %v4316 = vpop.permute.xlu0 %4315
      %v4317 = vsel %vm1401, %v4286, %v4288
      %v4318 = vsel %vm1401, %v4290, %v4292
      %v4319 = vsel %vm1401, %v4294, %v4296
      %v4320 = vsel %vm1401, %v4298, %v4300
      %v4321 = vsel %vm1401, %v4302, %v4304
      %v4322 = vsel %vm1401, %v4306, %v4308
      %v4323 = vsel %vm1401, %v4310, %v4312
      %v4324 = vsel %vm1401, %v4314, %v4316
      %v4342 = vsel %vm2007, %v4282, 0
      %v4345 = vsel %vm2007, %v4283, 0
      %v4348 = vsel %vm2007, %v4284, 0
      %4350 = vmatpush.msra.mxu0 0.0
      %4351 = vmatpush.msra.mxu0 0.0
      %4352 = vmatpush.msra.mxu0 0.0
      %4353 = vmatpush.msra.mxu0 0.0
      %4354 = vmatpush.msra.mxu0 0.0
      %4355 = vmatpush.msra.mxu0 0.0
      %4356 = vmatpush.msra.mxu0 0.0
      %4357 = vmatpush.msra.mxu0 0.0
      %4358 = vmatpush.msra.mxu0 %v4324
      %4359 = vmatpush.msra.mxu0 %v4323
      %4360 = vmatpush.msra.mxu0 %v4322
      %4361 = vmatpush.msra.mxu0 %v4321
      %4362 = vmatpush.msra.mxu0 %v4320
      %4363 = vmatpush.msra.mxu0 %v4319
      %4364 = vmatpush.msra.mxu0 %v4318
      %4365 = vmatpush.msra.mxu0 %v4317
      %4366 = vmatmul.f32.gmra.mxu0 %v4342
      %v4367 = vpop.f32.mrf.mxu0
      %v4368 = vadd.f32 0.0, %v4367
      %4369 = vmatmul.f32.gmra.mxu0 %v4345
      %v4370 = vpop.f32.mrf.mxu0
      %v4371 = vadd.f32 0.0, %v4370
      %4372 = vmatmul.f32.gmra.mxu0 %v4348
      %v4373 = vpop.f32.mrf.mxu0
      %v4374 = vadd.f32 0.0, %v4373
      %4375 = vdwg.mxu0
      %4376 = vmatpush.msra.mxu0 0.0
      %4377 = vmatpush.msra.mxu0 0.0
      %4378 = vmatpush.msra.mxu0 0.0
      %4379 = vmatpush.msra.mxu0 0.0
      %4380 = vmatpush.msra.mxu0 0.0
      %4381 = vmatpush.msra.mxu0 0.0
      %4382 = vmatpush.msra.mxu0 0.0
      %4383 = vmatpush.msra.mxu0 0.0
      %4384 = vmatpush.msra.mxu0 %v4316
      %4385 = vmatpush.msra.mxu0 %v4312
      %4386 = vmatpush.msra.mxu0 %v4308
      %4387 = vmatpush.msra.mxu0 %v4304
      %4388 = vmatpush.msra.mxu0 %v4300
      %4389 = vmatpush.msra.mxu0 %v4296
      %4390 = vmatpush.msra.mxu0 %v4292
      %4391 = vmatpush.msra.mxu0 %v4288
      %4392 = vmatmul.f32.gmra.mxu0 %v4342
      %v4393 = vpop.f32.mrf.mxu0
      %v4394 = vadd.f32 0.0, %v4393
      %4395 = vmatmul.f32.gmra.mxu0 %v4345
      %v4396 = vpop.f32.mrf.mxu0
      %v4397 = vadd.f32 0.0, %v4396
      %4398 = vmatmul.f32.gmra.mxu0 %v4348
      %v4399 = vpop.f32.mrf.mxu0
      %v4400 = vadd.f32 0.0, %v4399
      %4401 = vdwg.mxu0
      %v4402 = vadd.f32 %v4275, %v4368
      %v4403 = vadd.f32 %v4276, %v4394
      %v4404 = vadd.f32 %v4277, %v4371
      %v4405 = vadd.f32 %v4278, %v4397
      %v4406 = vadd.f32 %v4279, %v4374
      %v4407 = vadd.f32 %v4280, %v4400
      %v4408 = vld [vmem:[%s7] sm:$0xff]
      %v4409 = vld [vmem:[%s7 + $0x8] sm:$0xff]
      %v4410 = vld [vmem:[%s7 + $0x10] sm:$0xf]
      %4412 = vset.pattern.permute.xlu0 0
      %4413 = vperm.xlu0 %4412, %v4408
      %v4414 = vpop.permute.xlu0 %4413
      %4417 = vset.pattern.permute.xlu0 0
      %4418 = vperm.xlu0 %4417, %v4409
      %v4419 = vpop.permute.xlu0 %4418
      %4422 = vset.pattern.permute.xlu0 0
      %4423 = vperm.xlu0 %4422, %v4410
      %v4424 = vpop.permute.xlu0 %4423
      %v4426 = vadd.f32 %v4402, %v4414
      %v4427 = vadd.f32 %v4403, %v4414
      %v4428 = vadd.f32 %v4404, %v4419
      %v4429 = vadd.f32 %v4405, %v4419
      %v4430 = vadd.f32 %v4406, %v4424
      %v4431 = vadd.f32 %v4407, %v4424
      %v4432 = vmax.f32 %v4426, 0.0
      %v4433 = vmax.f32 %v4427, 0.0
      %v4434 = vmax.f32 %v4428, 0.0
      %v4435 = vmax.f32 %v4429, 0.0
      %v4436 = vmax.f32 %v4430, 0.0
      %v4437 = vmax.f32 %v4431, 0.0
      %4438 = vst [vmem:[#allocation3] sm:$0xff] %v4432
      %vm4439 = vcmask 547840
      %4440 = vst.msk [vmem:[#allocation3 + $0x8] sm:$0xff] %vm4439, %v4433
      %4441 = vst [vmem:[#allocation3 + $0x20] sm:$0xff] %v4434
      %4442 = vst.msk [vmem:[#allocation3 + $0x28] sm:$0xff] %vm4439, %v4435
      %4443 = vst [vmem:[#allocation3 + $0x40] sm:$0xf] %v4436
      %vm4444 = vcmask 543744
      %4445 = vst.msk [vmem:[#allocation3 + $0x48] sm:$0xf] %vm4444, %v4437
      %v4446 = vld [vmem:[%s8] sm:$0xff]
      %v4447 = vld [vmem:[%s8 + $0x8] sm:$0xff]
      %v4448 = vld [vmem:[%s8 + $0x10] sm:$0xf]
      %v4449 = vld [vmem:[#allocation3] sm:$0xff]
      %v4450 = vld [vmem:[#allocation3 + $0x8] sm:$0xff]
      %v4451 = vld [vmem:[#allocation3 + $0x20] sm:$0xff]
      %v4452 = vld [vmem:[#allocation3 + $0x28] sm:$0xff]
      %v4453 = vld [vmem:[#allocation3 + $0x40] sm:$0xf]
      %v4454 = vld [vmem:[#allocation3 + $0x48] sm:$0xf]
      %s4455 = scalar_lea.vmem %s8, 24
      %v4456 = vld [vmem:[%s4455] sm:$0xff]
      %v4457 = vld [vmem:[%s4455 + $0x8] sm:$0xff]
      %v4458 = vld [vmem:[%s4455 + $0x10] sm:$0xf]
      %4465 = vrot.lane.b32.xlu0 %v4449, 127
      %v4466 = vpop.permute.xlu0 %4465
      %4467 = vrot.lane.b32.xlu0 %v4450, 127
      %v4468 = vpop.permute.xlu0 %4467
      %4469 = vrot.lane.b32.xlu0 %v4451, 127
      %v4470 = vpop.permute.xlu0 %4469
      %4471 = vrot.lane.b32.xlu0 %v4452, 127
      %v4472 = vpop.permute.xlu0 %4471
      %4473 = vrot.lane.b32.xlu0 %v4453, 127
      %v4474 = vpop.permute.xlu0 %4473
      %4475 = vrot.lane.b32.xlu0 %v4454, 127
      %v4476 = vpop.permute.xlu0 %4475
      %v4477 = vsel %vm617, %v4466, %v4468
      %v4478 = vsel %vm617, %v4470, %v4472
      %v4479 = vsel %vm617, %v4474, %v4476
      %vm4484 = vcmask 162816
      %v4486 = vsel %vm4484, %v4456, 0
      %v4489 = vsel %vm4484, %v4457, 0
      %v4492 = vsel %vm4484, %v4458, 0
      %v4494 = vsel %vm674, %v4479, 0
      %v4496 = vsel %vm674, %v4476, 0
      %4498 = vmatpush.msra.mxu0 0.0
      %4499 = vmatpush.msra.mxu0 0.0
      %4500 = vmatpush.msra.mxu0 0.0
      %4501 = vmatpush.msra.mxu0 0.0
      %4502 = vmatpush.msra.mxu0 0.0
      %4503 = vmatpush.msra.mxu0 0.0
      %4504 = vmatpush.msra.mxu0 0.0
      %4505 = vmatpush.msra.mxu0 0.0
      %4506 = vmatpush.msra.mxu0 0.0
      %4507 = vmatpush.msra.mxu0 0.0
      %4508 = vmatpush.msra.mxu0 0.0
      %4509 = vmatpush.msra.mxu0 0.0
      %4510 = vmatpush.msra.mxu0 0.0
      %4511 = vmatpush.msra.mxu0 %v4494
      %4512 = vmatpush.msra.mxu0 %v4478
      %4513 = vmatpush.msra.mxu0 %v4477
      %4514 = vmatmul.f32.gmra.mxu0 %v4486
      %v4515 = vpop.f32.mrf.mxu0
      %v4516 = vadd.f32 0.0, %v4515
      %4517 = vmatmul.f32.gmra.mxu0 %v4489
      %v4518 = vpop.f32.mrf.mxu0
      %v4519 = vadd.f32 0.0, %v4518
      %4520 = vmatmul.f32.gmra.mxu0 %v4492
      %v4521 = vpop.f32.mrf.mxu0
      %v4522 = vadd.f32 0.0, %v4521
      %4523 = vdwg.mxu0
      %4524 = vmatpush.msra.mxu0 0.0
      %4525 = vmatpush.msra.mxu0 0.0
      %4526 = vmatpush.msra.mxu0 0.0
      %4527 = vmatpush.msra.mxu0 0.0
      %4528 = vmatpush.msra.mxu0 0.0
      %4529 = vmatpush.msra.mxu0 0.0
      %4530 = vmatpush.msra.mxu0 0.0
      %4531 = vmatpush.msra.mxu0 0.0
      %4532 = vmatpush.msra.mxu0 0.0
      %4533 = vmatpush.msra.mxu0 0.0
      %4534 = vmatpush.msra.mxu0 0.0
      %4535 = vmatpush.msra.mxu0 0.0
      %4536 = vmatpush.msra.mxu0 0.0
      %4537 = vmatpush.msra.mxu0 %v4496
      %4538 = vmatpush.msra.mxu0 %v4472
      %4539 = vmatpush.msra.mxu0 %v4468
      %4540 = vmatmul.f32.gmra.mxu0 %v4486
      %v4541 = vpop.f32.mrf.mxu0
      %v4542 = vadd.f32 0.0, %v4541
      %4543 = vmatmul.f32.gmra.mxu0 %v4489
      %v4544 = vpop.f32.mrf.mxu0
      %v4545 = vadd.f32 0.0, %v4544
      %4546 = vmatmul.f32.gmra.mxu0 %v4492
      %v4547 = vpop.f32.mrf.mxu0
      %v4548 = vadd.f32 0.0, %v4547
      %4549 = vdwg.mxu0
      %v4551 = vsel %vm4484, %v4446, 0
      %v4554 = vsel %vm4484, %v4447, 0
      %v4557 = vsel %vm4484, %v4448, 0
      %v4559 = vsel %vm674, %v4453, 0
      %v4561 = vsel %vm674, %v4454, 0
      %4563 = vmatpush.msra.mxu0 0.0
      %4564 = vmatpush.msra.mxu0 0.0
      %4565 = vmatpush.msra.mxu0 0.0
      %4566 = vmatpush.msra.mxu0 0.0
      %4567 = vmatpush.msra.mxu0 0.0
      %4568 = vmatpush.msra.mxu0 0.0
      %4569 = vmatpush.msra.mxu0 0.0
      %4570 = vmatpush.msra.mxu0 0.0
      %4571 = vmatpush.msra.mxu0 0.0
      %4572 = vmatpush.msra.mxu0 0.0
      %4573 = vmatpush.msra.mxu0 0.0
      %4574 = vmatpush.msra.mxu0 0.0
      %4575 = vmatpush.msra.mxu0 0.0
      %4576 = vmatpush.msra.mxu0 %v4559
      %4577 = vmatpush.msra.mxu0 %v4451
      %4578 = vmatpush.msra.mxu0 %v4449
      %4579 = vmatmul.f32.gmra.mxu0 %v4551
      %v4580 = vpop.f32.mrf.mxu0
      %v4581 = vadd.f32 %v4516, %v4580
      %4582 = vmatmul.f32.gmra.mxu0 %v4554
      %v4583 = vpop.f32.mrf.mxu0
      %v4584 = vadd.f32 %v4519, %v4583
      %4585 = vmatmul.f32.gmra.mxu0 %v4557
      %v4586 = vpop.f32.mrf.mxu0
      %v4587 = vadd.f32 %v4522, %v4586
      %4588 = vdwg.mxu0
      %4589 = vmatpush.msra.mxu0 0.0
      %4590 = vmatpush.msra.mxu0 0.0
      %4591 = vmatpush.msra.mxu0 0.0
      %4592 = vmatpush.msra.mxu0 0.0
      %4593 = vmatpush.msra.mxu0 0.0
      %4594 = vmatpush.msra.mxu0 0.0
      %4595 = vmatpush.msra.mxu0 0.0
      %4596 = vmatpush.msra.mxu0 0.0
      %4597 = vmatpush.msra.mxu0 0.0
      %4598 = vmatpush.msra.mxu0 0.0
      %4599 = vmatpush.msra.mxu0 0.0
      %4600 = vmatpush.msra.mxu0 0.0
      %4601 = vmatpush.msra.mxu0 0.0
      %4602 = vmatpush.msra.mxu0 %v4561
      %4603 = vmatpush.msra.mxu0 %v4452
      %4604 = vmatpush.msra.mxu0 %v4450
      %4605 = vmatmul.f32.gmra.mxu0 %v4551
      %v4606 = vpop.f32.mrf.mxu0
      %v4607 = vadd.f32 %v4542, %v4606
      %4608 = vmatmul.f32.gmra.mxu0 %v4554
      %v4609 = vpop.f32.mrf.mxu0
      %v4610 = vadd.f32 %v4545, %v4609
      %4611 = vmatmul.f32.gmra.mxu0 %v4557
      %v4612 = vpop.f32.mrf.mxu0
      %v4613 = vadd.f32 %v4548, %v4612
      %4614 = vdwg.mxu0
      %s4615 = scalar_lea.vmem %s8, 48
      %v4616 = vld [vmem:[%s4615] sm:$0xff]
      %v4617 = vld [vmem:[%s4615 + $0x8] sm:$0xff]
      %v4618 = vld [vmem:[%s4615 + $0x10] sm:$0xf]
      %4619 = vrot.lane.b32.xlu0 %v4449, 126
      %v4620 = vpop.permute.xlu0 %4619
      %4621 = vrot.lane.b32.xlu0 %v4450, 126
      %v4622 = vpop.permute.xlu0 %4621
      %4623 = vrot.lane.b32.xlu0 %v4451, 126
      %v4624 = vpop.permute.xlu0 %4623
      %4625 = vrot.lane.b32.xlu0 %v4452, 126
      %v4626 = vpop.permute.xlu0 %4625
      %4627 = vrot.lane.b32.xlu0 %v4453, 126
      %v4628 = vpop.permute.xlu0 %4627
      %4629 = vrot.lane.b32.xlu0 %v4454, 126
      %v4630 = vpop.permute.xlu0 %4629
      %v4631 = vsel %vm1092, %v4620, %v4622
      %v4632 = vsel %vm1092, %v4624, %v4626
      %v4633 = vsel %vm1092, %v4628, %v4630
      %v4639 = vsel %vm4484, %v4616, 0
      %v4642 = vsel %vm4484, %v4617, 0
      %v4645 = vsel %vm4484, %v4618, 0
      %v4647 = vsel %vm674, %v4633, 0
      %v4649 = vsel %vm674, %v4630, 0
      %4651 = vmatpush.msra.mxu0 0.0
      %4652 = vmatpush.msra.mxu0 0.0
      %4653 = vmatpush.msra.mxu0 0.0
      %4654 = vmatpush.msra.mxu0 0.0
      %4655 = vmatpush.msra.mxu0 0.0
      %4656 = vmatpush.msra.mxu0 0.0
      %4657 = vmatpush.msra.mxu0 0.0
      %4658 = vmatpush.msra.mxu0 0.0
      %4659 = vmatpush.msra.mxu0 0.0
      %4660 = vmatpush.msra.mxu0 0.0
      %4661 = vmatpush.msra.mxu0 0.0
      %4662 = vmatpush.msra.mxu0 0.0
      %4663 = vmatpush.msra.mxu0 0.0
      %4664 = vmatpush.msra.mxu0 %v4647
      %4665 = vmatpush.msra.mxu0 %v4632
      %4666 = vmatpush.msra.mxu0 %v4631
      %4667 = vmatmul.f32.gmra.mxu0 %v4639
      %v4668 = vpop.f32.mrf.mxu0
      %v4669 = vadd.f32 0.0, %v4668
      %4670 = vmatmul.f32.gmra.mxu0 %v4642
      %v4671 = vpop.f32.mrf.mxu0
      %v4672 = vadd.f32 0.0, %v4671
      %4673 = vmatmul.f32.gmra.mxu0 %v4645
      %v4674 = vpop.f32.mrf.mxu0
      %v4675 = vadd.f32 0.0, %v4674
      %4676 = vdwg.mxu0
      %4677 = vmatpush.msra.mxu0 0.0
      %4678 = vmatpush.msra.mxu0 0.0
      %4679 = vmatpush.msra.mxu0 0.0
      %4680 = vmatpush.msra.mxu0 0.0
      %4681 = vmatpush.msra.mxu0 0.0
      %4682 = vmatpush.msra.mxu0 0.0
      %4683 = vmatpush.msra.mxu0 0.0
      %4684 = vmatpush.msra.mxu0 0.0
      %4685 = vmatpush.msra.mxu0 0.0
      %4686 = vmatpush.msra.mxu0 0.0
      %4687 = vmatpush.msra.mxu0 0.0
      %4688 = vmatpush.msra.mxu0 0.0
      %4689 = vmatpush.msra.mxu0 0.0
      %4690 = vmatpush.msra.mxu0 %v4649
      %4691 = vmatpush.msra.mxu0 %v4626
      %4692 = vmatpush.msra.mxu0 %v4622
      %4693 = vmatmul.f32.gmra.mxu0 %v4639
      %v4694 = vpop.f32.mrf.mxu0
      %v4695 = vadd.f32 0.0, %v4694
      %4696 = vmatmul.f32.gmra.mxu0 %v4642
      %v4697 = vpop.f32.mrf.mxu0
      %v4698 = vadd.f32 0.0, %v4697
      %4699 = vmatmul.f32.gmra.mxu0 %v4645
      %v4700 = vpop.f32.mrf.mxu0
      %v4701 = vadd.f32 0.0, %v4700
      %4702 = vdwg.mxu0
      %v4703 = vadd.f32 %v4581, %v4669
      %v4704 = vadd.f32 %v4607, %v4695
      %v4705 = vadd.f32 %v4584, %v4672
      %v4706 = vadd.f32 %v4610, %v4698
      %v4707 = vadd.f32 %v4587, %v4675
      %v4708 = vadd.f32 %v4613, %v4701
      %s4709 = scalar_lea.vmem %s8, 72
      %v4710 = vld [vmem:[%s4709] sm:$0xff]
      %v4711 = vld [vmem:[%s4709 + $0x8] sm:$0xff]
      %v4712 = vld [vmem:[%s4709 + $0x10] sm:$0xf]
      %4713 = vrot.lane.b32.xlu0 %v4449, 125
      %v4714 = vpop.permute.xlu0 %4713
      %4715 = vrot.lane.b32.xlu0 %v4450, 125
      %v4716 = vpop.permute.xlu0 %4715
      %4717 = vrot.lane.b32.xlu0 %v4451, 125
      %v4718 = vpop.permute.xlu0 %4717
      %4719 = vrot.lane.b32.xlu0 %v4452, 125
      %v4720 = vpop.permute.xlu0 %4719
      %4721 = vrot.lane.b32.xlu0 %v4453, 125
      %v4722 = vpop.permute.xlu0 %4721
      %4723 = vrot.lane.b32.xlu0 %v4454, 125
      %v4724 = vpop.permute.xlu0 %4723
      %v4725 = vsel %vm1401, %v4714, %v4716
      %v4726 = vsel %vm1401, %v4718, %v4720
      %v4727 = vsel %vm1401, %v4722, %v4724
      %v4733 = vsel %vm4484, %v4710, 0
      %v4736 = vsel %vm4484, %v4711, 0
      %v4739 = vsel %vm4484, %v4712, 0
      %v4741 = vsel %vm674, %v4727, 0
      %v4743 = vsel %vm674, %v4724, 0
      %4745 = vmatpush.msra.mxu0 0.0
      %4746 = vmatpush.msra.mxu0 0.0
      %4747 = vmatpush.msra.mxu0 0.0
      %4748 = vmatpush.msra.mxu0 0.0
      %4749 = vmatpush.msra.mxu0 0.0
      %4750 = vmatpush.msra.mxu0 0.0
      %4751 = vmatpush.msra.mxu0 0.0
      %4752 = vmatpush.msra.mxu0 0.0
      %4753 = vmatpush.msra.mxu0 0.0
      %4754 = vmatpush.msra.mxu0 0.0
      %4755 = vmatpush.msra.mxu0 0.0
      %4756 = vmatpush.msra.mxu0 0.0
      %4757 = vmatpush.msra.mxu0 0.0
      %4758 = vmatpush.msra.mxu0 %v4741
      %4759 = vmatpush.msra.mxu0 %v4726
      %4760 = vmatpush.msra.mxu0 %v4725
      %4761 = vmatmul.f32.gmra.mxu0 %v4733
      %v4762 = vpop.f32.mrf.mxu0
      %v4763 = vadd.f32 0.0, %v4762
      %4764 = vmatmul.f32.gmra.mxu0 %v4736
      %v4765 = vpop.f32.mrf.mxu0
      %v4766 = vadd.f32 0.0, %v4765
      %4767 = vmatmul.f32.gmra.mxu0 %v4739
      %v4768 = vpop.f32.mrf.mxu0
      %v4769 = vadd.f32 0.0, %v4768
      %4770 = vdwg.mxu0
      %4771 = vmatpush.msra.mxu0 0.0
      %4772 = vmatpush.msra.mxu0 0.0
      %4773 = vmatpush.msra.mxu0 0.0
      %4774 = vmatpush.msra.mxu0 0.0
      %4775 = vmatpush.msra.mxu0 0.0
      %4776 = vmatpush.msra.mxu0 0.0
      %4777 = vmatpush.msra.mxu0 0.0
      %4778 = vmatpush.msra.mxu0 0.0
      %4779 = vmatpush.msra.mxu0 0.0
      %4780 = vmatpush.msra.mxu0 0.0
      %4781 = vmatpush.msra.mxu0 0.0
      %4782 = vmatpush.msra.mxu0 0.0
      %4783 = vmatpush.msra.mxu0 0.0
      %4784 = vmatpush.msra.mxu0 %v4743
      %4785 = vmatpush.msra.mxu0 %v4720
      %4786 = vmatpush.msra.mxu0 %v4716
      %4787 = vmatmul.f32.gmra.mxu0 %v4733
      %v4788 = vpop.f32.mrf.mxu0
      %v4789 = vadd.f32 0.0, %v4788
      %4790 = vmatmul.f32.gmra.mxu0 %v4736
      %v4791 = vpop.f32.mrf.mxu0
      %v4792 = vadd.f32 0.0, %v4791
      %4793 = vmatmul.f32.gmra.mxu0 %v4739
      %v4794 = vpop.f32.mrf.mxu0
      %v4795 = vadd.f32 0.0, %v4794
      %4796 = vdwg.mxu0
      %v4797 = vadd.f32 %v4703, %v4763
      %v4798 = vadd.f32 %v4704, %v4789
      %v4799 = vadd.f32 %v4705, %v4766
      %v4800 = vadd.f32 %v4706, %v4792
      %v4801 = vadd.f32 %v4707, %v4769
      %v4802 = vadd.f32 %v4708, %v4795
      %v4803 = vld [vmem:[%s9] sm:$0xff]
      %v4804 = vld [vmem:[%s9 + $0x8] sm:$0xff]
      %v4805 = vld [vmem:[%s9 + $0x10] sm:$0xf]
      %4807 = vset.pattern.permute.xlu0 0
      %4808 = vperm.xlu0 %4807, %v4803
      %v4809 = vpop.permute.xlu0 %4808
      %4812 = vset.pattern.permute.xlu0 0
      %4813 = vperm.xlu0 %4812, %v4804
      %v4814 = vpop.permute.xlu0 %4813
      %4817 = vset.pattern.permute.xlu0 0
      %4818 = vperm.xlu0 %4817, %v4805
      %v4819 = vpop.permute.xlu0 %4818
      %v4821 = vadd.f32 %v4797, %v4809
      %v4822 = vadd.f32 %v4798, %v4809
      %v4823 = vadd.f32 %v4799, %v4814
      %v4824 = vadd.f32 %v4800, %v4814
      %v4825 = vadd.f32 %v4801, %v4819
      %v4826 = vadd.f32 %v4802, %v4819
      %v4827 = vmax.f32 %v4821, 0.0
      %v4828 = vmax.f32 %v4822, 0.0
      %v4829 = vmax.f32 %v4823, 0.0
      %v4830 = vmax.f32 %v4824, 0.0
      %v4831 = vmax.f32 %v4825, 0.0
      %v4832 = vmax.f32 %v4826, 0.0
      %v4833 = vsel %vm2007, %v4828, 0.0
      %v4834 = vadd.f32 %v4827, %v4833
      %4835 = vadd.xlane.f32.xlu0 %v4834
      %v4836 = vpop.xlane.xlu0 %4835
      %v4837 = vsel %vm2007, %v4830, 0.0
      %v4838 = vadd.f32 %v4829, %v4837
      %4839 = vadd.xlane.f32.xlu0 %v4838
      %v4840 = vpop.xlane.xlu0 %4839
      %v4841 = vsel %vm674, %v4831, 0.0
      %vm4842 = vcmask 519168
      %v4843 = vsel %vm4842, %v4832, 0.0
      %v4844 = vadd.f32 %v4841, %v4843
      %4845 = vadd.xlane.f32.xlu0 %v4844
      %v4846 = vpop.xlane.xlu0 %4845
      %v4847 = vrcp.pop 192.0
      %v4848 = vmul.f32 192.0, %v4847
      %v4849 = vsub.f32 1.0, %v4848
      %v4850 = vmul.f32 %v4847, %v4849
      %v4851 = vadd.f32 %v4847, %v4850
      %vm4852 = vweird.f32 %v4847
      %v4853 = vsel %vm4852, %v4847, %v4851
      %v4854 = vmul.f32 %v4836, %v4853
      %v4855 = vmul.f32 %v4840, %v4853
      %v4856 = vmul.f32 %v4846, %v4853
      %v4857 = vld [vmem:[%s10] sm:$0xff]
      %v4858 = vld [vmem:[%s10 + $0x8] sm:$0xff]
      %v4859 = vld [vmem:[%s10 + $0x10] sm:$0xff]
      %v4860 = vld [vmem:[%s10 + $0x18] sm:$0xff]
      %v4861 = vld [vmem:[%s11] sm:$0xff]
      %v4862 = vld [vmem:[%s11 + $0x8] sm:$0xff]
      %v4863 = vld [vmem:[%s11 + $0x10] sm:$0xff]
      %v4864 = vld [vmem:[%s11 + $0x18] sm:$0xff]
      %v4866 = vsel %vm4484, %v4857, 0
      %v4869 = vsel %vm4484, %v4858, 0
      %v4872 = vsel %vm4484, %v4859, 0
      %v4875 = vsel %vm4484, %v4860, 0
      %v4878 = vsel %vm674, %v4856, 0
      %4880 = vmatpush.msra.mxu0 0.0
      %4881 = vmatpush.msra.mxu0 0.0
      %4882 = vmatpush.msra.mxu0 0.0
      %4883 = vmatpush.msra.mxu0 0.0
      %4884 = vmatpush.msra.mxu0 0.0
      %4885 = vmatpush.msra.mxu0 0.0
      %4886 = vmatpush.msra.mxu0 0.0
      %4887 = vmatpush.msra.mxu0 0.0
      %4888 = vmatpush.msra.mxu0 0.0
      %4889 = vmatpush.msra.mxu0 0.0
      %4890 = vmatpush.msra.mxu0 0.0
      %4891 = vmatpush.msra.mxu0 0.0
      %4892 = vmatpush.msra.mxu0 0.0
      %4893 = vmatpush.msra.mxu0 %v4878
      %4894 = vmatpush.msra.mxu0 %v4855
      %4895 = vmatpush.msra.mxu0 %v4854
      %4896 = vmatmul.f32.gmra.mxu0 %v4866
      %v4897 = vpop.f32.mrf.mxu0
      %v4898 = vadd.f32 %v4861, %v4897
      %4899 = vmatmul.f32.gmra.mxu0 %v4869
      %v4900 = vpop.f32.mrf.mxu0
      %v4901 = vadd.f32 %v4862, %v4900
      %4902 = vmatmul.f32.gmra.mxu0 %v4872
      %v4903 = vpop.f32.mrf.mxu0
      %v4904 = vadd.f32 %v4863, %v4903
      %4905 = vmatmul.f32.gmra.mxu0 %v4875
      %v4906 = vpop.f32.mrf.mxu0
      %v4907 = vadd.f32 %v4864, %v4906
      %4908 = vdwg.mxu0
      %v4909 = vtanh.pop %v4898
      %v4910 = vtanh.pop %v4901
      %v4911 = vtanh.pop %v4904
      %v4912 = vtanh.pop %v4907
      %v4913 = vld [vmem:[%s12] sm:$0xff]
      %v4914 = vld [vmem:[%s13] sm:$0xff]
      %vm4915 = vcmask 261120
      %v4917 = vsel %vm4915, %v4913, 0
      %4919 = vmatpush.msra.mxu0 0.0
      %4920 = vmatpush.msra.mxu0 0.0
      %4921 = vmatpush.msra.mxu0 0.0
      %4922 = vmatpush.msra.mxu0 0.0
      %4923 = vmatpush.msra.mxu0 0.0
      %4924 = vmatpush.msra.mxu0 0.0
      %4925 = vmatpush.msra.mxu0 0.0
      %4926 = vmatpush.msra.mxu0 0.0
      %4927 = vmatpush.msra.mxu0 0.0
      %4928 = vmatpush.msra.mxu0 0.0
      %4929 = vmatpush.msra.mxu0 0.0
      %4930 = vmatpush.msra.mxu0 0.0
      %4931 = vmatpush.msra.mxu0 %v4912
      %4932 = vmatpush.msra.mxu0 %v4911
      %4933 = vmatpush.msra.mxu0 %v4910
      %4934 = vmatpush.msra.mxu0 %v4909
      %4935 = vmatmul.f32.gmra.mxu0 %v4917
      %v4936 = vpop.f32.mrf.mxu0
      %v4937 = vadd.f32 %v4914, %v4936
      %4938 = vdwg.mxu0
      %v4939 = vtanh.pop %v4937
      %v4940 = vld [vmem:[%s14] sm:$0x1]
      %v4941 = vld [vmem:[#allocation4] sm:$0x1]
      %vm4942 = vcmask 64512
      %v4944 = vsel %vm4942, %v4940, 0
      %4946 = vmatpush.msra.mxu0 0.0
      %4947 = vmatpush.msra.mxu0 0.0
      %4948 = vmatpush.msra.mxu0 0.0
      %4949 = vmatpush.msra.mxu0 0.0
      %4950 = vmatpush.msra.mxu0 0.0
      %4951 = vmatpush.msra.mxu0 0.0
      %4952 = vmatpush.msra.mxu0 0.0
      %4953 = vmatpush.msra.mxu0 0.0
      %4954 = vmatpush.msra.mxu0 0.0
      %4955 = vmatpush.msra.mxu0 0.0
      %4956 = vmatpush.msra.mxu0 0.0
      %4957 = vmatpush.msra.mxu0 0.0
      %4958 = vmatpush.msra.mxu0 0.0
      %4959 = vmatpush.msra.mxu0 0.0
      %4960 = vmatpush.msra.mxu0 0.0
      %4961 = vmatpush.msra.mxu0 %v4939
      %4962 = vmatmul.f32.gmra.mxu0 %v4944
      %v4963 = vpop.f32.mrf.mxu0
      %v4964 = vadd.f32 %v4941, %v4963
      %4965 = vdwg.mxu0
      %vm4966 = vcmask 0
      %4967 = vst.msk [vmem:[%s519] sm:$0x1] %vm4966, %v4964
      %p4968 = scmp.lt.s32.totalorder %s29, 1
      %s4969 = scalar_select %p4968, %s29, 1
      %s4970 = scalar_lea.vmem %s16, %s4969
      // Predicated region
      $region85: #{vsb_forward.1} parent=83 // pred_check
        %p4971 = pneg %p388
      $region86: #{vsb_forward.1} parent=83 // pred_check_branch
        %4973 = sbr.rel (%p4971) target = $region88
      $region87: #{vsb_forward.1} parent=83 // pred_region
        _
      $region88: #{vsb_forward.1} parent=83 // pred_fallthru
        _
    $region84: #{vsb_forward.1} parent=5 // pred_fallthru
      _
    %p4974 = scmp.le.s32.totalorder 2, %s24
    // Predicated region
    $region89: #{vsb_forward.1} parent=5 // pred_check
      %p4975 = pneg %p4974
    $region90: #{vsb_forward.1} parent=5 // pred_check_branch
      %4977 = sbr.rel (%p4975) target = $region92
    $region91: #{vsb_forward.1} parent=5 // pred_region
      %s4978 = ssub.s32 %s24, 2
      // Predicated region
      $region93: #{vsb_forward.1} parent=91 // pred_check
        %p4979 = pneg %p394
      $region94: #{vsb_forward.1} parent=91 // pred_check_branch
        %4981 = sbr.rel (%p4979) target = $region96
      $region95: #{vsb_forward.1} parent=91 // pred_region
        %p4982 = scmp.lt.s32.totalorder %s30, 1
        %s4983 = scalar_select %p4982, %s30, 1
        %s4984 = scalar_lea.vmem %s16, %s4983
      $region96: #{vsb_forward.1} parent=91 // pred_fallthru
        _
    $region92: #{vsb_forward.1} parent=5 // pred_fallthru
      _
  $region6: #{vsb_forward.1} parent=0 // loop_footer
    %s28 = sadd.s32 1, %s24
  $region7: #{vsb_forward.1} parent=0 // loop_footer_branch
    %23 = sbr.rel target = $region3
  $region8: #{vsb_forward.1} parent=0 // loop_exit
    _

</llo_original>
